<compile_context>
chip_gen: v5e
topology: v5e:2x2
jax: 0.10.0
libtpu: 0.0.40
codegen_flags: <defaults>
</compile_context>

<pallas_src>
import jax
import jax.numpy as jnp
from jax.experimental import pallas as pl
from jax.experimental.pallas import tpu as pltpu


def _mlp_kernel(x_ref, w1_ref, b1_ref, w2_ref, b2_ref, w3_ref, b3_ref, o_ref):
    # Cast the f32 input block to bf16 in-kernel (no extra XLA cast pass over HBM).
    x = x_ref[...].astype(jnp.bfloat16)

    # Layer 1: [TB, in_dim](bf16) @ [in_dim, DIM](bf16) -> f32 acc, bias+ReLU in f32.
    h1 = jnp.dot(x, w1_ref[...], preferred_element_type=jnp.float32)
    h1 = jnp.maximum(h1 + b1_ref[...], 0.0)
    # Dropout(0.2) -> identity (eval mode)

    # Layer 2: [TB, DIM](bf16) @ [DIM, DIM](bf16) -> f32 acc, bias+ReLU in f32.
    h2 = jnp.dot(h1.astype(jnp.bfloat16), w2_ref[...], preferred_element_type=jnp.float32)
    h2 = jnp.maximum(h2 + b2_ref[...], 0.0)
    # Dropout(0.2) -> identity (eval mode)

    # Layer 3: Linear(DIM, 1) as VPU multiply + lane (XLU) reduction; w3 is [1, DIM].
    w3 = w3_ref[...].astype(jnp.float32)
    o_ref[...] = jnp.sum(h2 * w3, axis=-1, keepdims=True) + b3_ref[0, 0]


def discriminator_forward(feat, params, *, tb=None):
    """feat: [B, in_dim] f32.  params: dict of w1,b1,w2,b2,w3,b3 (weights bf16, biases f32)."""
    B, in_dim = feat.shape
    dim = params["w1"].shape[1]

    feat = feat.astype(jnp.float32)

    # Batch tiling:
    #  * B <= 1024: single block, grid=(1,) -> weights stream from HBM exactly
    #    once, never duplicated across v7x TensorCores (weight-BW-bound regime).
    #  * B  > 1024: 512-row tiles (fine on v6e/v7x; still OK on v5e), batch
    #    padded to a multiple of the tile, batch axis marked "parallel".
    if tb is None:
        tb = B if B <= 1024 else 512
    if B % tb != 0:
        b_pad = pl.cdiv(B, tb) * tb
        feat = jnp.pad(feat, ((0, b_pad - B), (0, 0)))
    else:
        b_pad = B
    grid = (b_pad // tb,)
    semantics = ("parallel",) if grid[0] > 1 else ("arbitrary",)

    # Resident operands (constant index_maps): single-buffered, a 2nd pipeline
    # buffer is pure VMEM waste.
    resident = dict(pipeline_mode=pl.Buffered(1))

    weight_bytes = 2 * (in_dim * dim + dim * dim + dim) + 4 * (2 * dim + 1)
    cost = pl.CostEstimate(
        flops=2 * b_pad * (in_dim + dim) * dim + 2 * b_pad * dim,
        transcendentals=0,
        bytes_accessed=weight_bytes + 4 * b_pad * in_dim + 4 * b_pad,
    )

    out = pl.pallas_call(
        _mlp_kernel,
        out_shape=jax.ShapeDtypeStruct((b_pad, 1), jnp.float32),
        grid=grid,
        in_specs=[
            pl.BlockSpec((tb, in_dim), lambda i: (i, 0)),               # feat (batch-tiled, f32)
            pl.BlockSpec((in_dim, dim), lambda i: (0, 0), **resident),  # w1 (resident, bf16)
            pl.BlockSpec((1, dim), lambda i: (0, 0), **resident),       # b1 (f32)
            pl.BlockSpec((dim, dim), lambda i: (0, 0), **resident),     # w2 (resident, bf16)
            pl.BlockSpec((1, dim), lambda i: (0, 0), **resident),       # b2 (f32)
            pl.BlockSpec((1, dim), lambda i: (0, 0), **resident),       # w3 as [1, DIM] (bf16)
            pl.BlockSpec(memory_space=pltpu.MemorySpace.SMEM),          # b3 scalar in SMEM
        ],
        out_specs=pl.BlockSpec((tb, 1), lambda i: (i, 0)),
        compiler_params=pltpu.CompilerParams(dimension_semantics=semantics),
        cost_estimate=cost,
    )(
        feat,
        params["w1"], params["b1"],
        params["w2"], params["b2"],
        params["w3"], params["b3"],
    )
    return out[:B]


def init_params(key, in_dim, DIM=1024):
    """Synthetic init mirroring the PyTorch module.

    nn.Linear(in, out): weight [out, in] (xavier_normal_), bias zeros.  Layers 1/2
    are stored transposed as [in, out] so the kernel matmuls directly; layer 3 is
    stored in its native [1, DIM] layout for the lane reduction.  Weights are kept
    in bf16 (streamed as-is), biases in f32.
    """
    k1, k2, k3 = jax.random.split(key, 3)

    def xavier_normal(k, shape, fan_in, fan_out):
        std = jnp.sqrt(2.0 / (fan_in + fan_out))
        return (std * jax.random.normal(k, shape, dtype=jnp.float32)).astype(jnp.bfloat16)

    return {
        "w1": xavier_normal(k1, (in_dim, DIM), in_dim, DIM),
        "b1": jnp.zeros((1, DIM), jnp.float32),
        "w2": xavier_normal(k2, (DIM, DIM), DIM, DIM),
        "b2": jnp.zeros((1, DIM), jnp.float32),
        "w3": xavier_normal(k3, (1, DIM), DIM, 1),
        "b3": jnp.zeros((1, 1), jnp.float32),
    }


if __name__ == "__main__":
    key = jax.random.PRNGKey(0)
    k_feat, k_params = jax.random.split(key)

    B, in_dim = 8, 256
    feat = jax.random.normal(k_feat, (B, in_dim), dtype=jnp.float32)
    params = init_params(k_params, in_dim, DIM=1024)

    logit = discriminator_forward(feat, params)
    jax.block_until_ready(logit)

    # Full-f32 reference (weights cast up to f32); loose tolerance covers the
    # bf16 rounding of the input/activation operands inside the kernel.
    w1f = params["w1"].astype(jnp.float32)
    w2f = params["w2"].astype(jnp.float32)
    w3f = params["w3"].astype(jnp.float32)
    h1 = jnp.maximum(feat @ w1f + params["b1"], 0.0)
    h2 = jnp.maximum(h1 @ w2f + params["b2"], 0.0)
    ref = jnp.sum(h2 * w3f, axis=-1, keepdims=True) + params["b3"]

    assert logit.shape == (B, 1), logit.shape
    assert jnp.allclose(logit, ref, atol=5e-2, rtol=5e-2), (
        jnp.max(jnp.abs(logit - ref)))

    print("KERNEL_OK")
</pallas_src>

<mosaic_0001>
module attributes {stable_mosaic.version = 11 : i64} {
  func.func @_mlp_kernel(%arg0: i32, %arg1: memref<8x256xf32, #tpu.memory_space<vmem>>, %arg2: memref<256x1024xbf16, #tpu.memory_space<vmem>>, %arg3: memref<1x1024xf32, #tpu.memory_space<vmem>>, %arg4: memref<1024x1024xbf16, #tpu.memory_space<vmem>>, %arg5: memref<1x1024xf32, #tpu.memory_space<vmem>>, %arg6: memref<1x1024xbf16, #tpu.memory_space<vmem>>, %arg7: memref<1x1xf32, #tpu.memory_space<smem>>, %arg8: memref<8x1xf32, #tpu.memory_space<vmem>>) attributes {dimension_semantics = [#tpu.dimension_semantics<arbitrary>], iteration_bounds = array<i64: 1>, scalar_prefetch = 0 : i64, scratch_operands = 0 : i64, tpu.core_type = #tpu.core_type<tc>, window_params = [{transform_indices = @transform_0, window_bounds = array<i64: 8, 256>}, {pipeline_mode = #tpu.pipeline_mode<synchronous>, transform_indices = @transform_1, window_bounds = array<i64: 256, 1024>}, {pipeline_mode = #tpu.pipeline_mode<synchronous>, transform_indices = @transform_2, window_bounds = array<i64: 1, 1024>}, {pipeline_mode = #tpu.pipeline_mode<synchronous>, transform_indices = @transform_3, window_bounds = array<i64: 1024, 1024>}, {pipeline_mode = #tpu.pipeline_mode<synchronous>, transform_indices = @transform_4, window_bounds = array<i64: 1, 1024>}, {pipeline_mode = #tpu.pipeline_mode<synchronous>, transform_indices = @transform_5, window_bounds = array<i64: 1, 1024>}, {transform_indices = @transform_6, window_bounds = array<i64: 1, 1>}, {transform_indices = @transform_7, window_bounds = array<i64: 8, 1>}]} {
    %c0 = arith.constant 0 : index
    %c0_0 = arith.constant 0 : index
    %0 = vector.load %arg1[%c0, %c0_0] : memref<8x256xf32, #tpu.memory_space<vmem>>, vector<8x256xf32>
    %1 = arith.truncf %0 : vector<8x256xf32> to vector<8x256xbf16>
    %c0_1 = arith.constant 0 : index
    %c0_2 = arith.constant 0 : index
    %2 = vector.load %arg2[%c0_1, %c0_2] : memref<256x1024xbf16, #tpu.memory_space<vmem>>, vector<256x1024xbf16>
    %cst = arith.constant dense<0.000000e+00> : vector<8x1024xf32>
    %3 = tpu.matmul %1, %2, %cst {dimension_numbers = #tpu.dot_dimension_numbers<[1], [0], [0], [1], [0, 0, 1, 1], [], []>} : vector<8x256xbf16>, vector<256x1024xbf16>, vector<8x1024xf32> -> vector<8x1024xf32>
    %c0_3 = arith.constant 0 : index
    %c0_4 = arith.constant 0 : index
    %4 = vector.load %arg3[%c0_3, %c0_4] : memref<1x1024xf32, #tpu.memory_space<vmem>>, vector<1x1024xf32>
    %5 = vector.broadcast %4 : vector<1x1024xf32> to vector<8x1024xf32>
    %6 = arith.addf %3, %5 : vector<8x1024xf32>
    %cst_5 = arith.constant 0.000000e+00 : f32
    %7 = vector.broadcast %cst_5 : f32 to vector<8x1024xf32>
    %8 = arith.maximumf %6, %7 : vector<8x1024xf32>
    %9 = arith.truncf %8 : vector<8x1024xf32> to vector<8x1024xbf16>
    %c0_6 = arith.constant 0 : index
    %c0_7 = arith.constant 0 : index
    %10 = vector.load %arg4[%c0_6, %c0_7] : memref<1024x1024xbf16, #tpu.memory_space<vmem>>, vector<1024x1024xbf16>
    %cst_8 = arith.constant dense<0.000000e+00> : vector<8x1024xf32>
    %11 = tpu.matmul %9, %10, %cst_8 {dimension_numbers = #tpu.dot_dimension_numbers<[1], [0], [0], [1], [0, 0, 1, 1], [], []>} : vector<8x1024xbf16>, vector<1024x1024xbf16>, vector<8x1024xf32> -> vector<8x1024xf32>
    %c0_9 = arith.constant 0 : index
    %c0_10 = arith.constant 0 : index
    %12 = vector.load %arg5[%c0_9, %c0_10] : memref<1x1024xf32, #tpu.memory_space<vmem>>, vector<1x1024xf32>
    %13 = vector.broadcast %12 : vector<1x1024xf32> to vector<8x1024xf32>
    %14 = arith.addf %11, %13 : vector<8x1024xf32>
    %cst_11 = arith.constant 0.000000e+00 : f32
    %15 = vector.broadcast %cst_11 : f32 to vector<8x1024xf32>
    %16 = arith.maximumf %14, %15 : vector<8x1024xf32>
    %c0_12 = arith.constant 0 : index
    %c0_13 = arith.constant 0 : index
    %17 = vector.load %arg6[%c0_12, %c0_13] : memref<1x1024xbf16, #tpu.memory_space<vmem>>, vector<1x1024xbf16>
    %18 = arith.extf %17 : vector<1x1024xbf16> to vector<1x1024xf32>
    %19 = vector.broadcast %18 : vector<1x1024xf32> to vector<8x1024xf32>
    %20 = arith.mulf %16, %19 : vector<8x1024xf32>
    %cst_14 = arith.constant dense<0.000000e+00> : vector<8xf32>
    %21 = vector.multi_reduction <add>, %20, %cst_14 [1] : vector<8x1024xf32> to vector<8xf32>
    %22 = vector.shape_cast %21 : vector<8xf32> to vector<8x1xf32>
    %c0_15 = arith.constant 0 : index
    %c0_16 = arith.constant 0 : index
    %23 = memref.load %arg7[%c0_15, %c0_16] : memref<1x1xf32, #tpu.memory_space<smem>>
    %24 = vector.broadcast %23 : f32 to vector<8x1xf32>
    %25 = arith.addf %22, %24 : vector<8x1xf32>
    %c0_17 = arith.constant 0 : index
    %c0_18 = arith.constant 0 : index
    %26 = vector.load %arg8[%c0_17, %c0_18] : memref<8x1xf32, #tpu.memory_space<vmem>>, vector<8x1xf32>
    tpu.vector_store %arg8[%c0_17, %c0_18], %25 {strides = array<i32>} : memref<8x1xf32, #tpu.memory_space<vmem>>, vector<8x1xf32>,
    return
  }
  func.func @transform_0(%arg0: i32) -> (i32, i32) {
    %c0_i32 = arith.constant 0 : i32
    %c0_i32_0 = arith.constant 0 : i32
    return %arg0, %c0_i32 : i32, i32
  }
  func.func @transform_1(%arg0: i32) -> (i32, i32) {
    %c0_i32 = arith.constant 0 : i32
    %c0_i32_0 = arith.constant 0 : i32
    %c0_i32_1 = arith.constant 0 : i32
    return %c0_i32, %c0_i32_0 : i32, i32
  }
  func.func @transform_2(%arg0: i32) -> (i32, i32) {
    %c0_i32 = arith.constant 0 : i32
    %c0_i32_0 = arith.constant 0 : i32
    %c0_i32_1 = arith.constant 0 : i32
    return %c0_i32, %c0_i32_0 : i32, i32
  }
  func.func @transform_3(%arg0: i32) -> (i32, i32) {
    %c0_i32 = arith.constant 0 : i32
    %c0_i32_0 = arith.constant 0 : i32
    %c0_i32_1 = arith.constant 0 : i32
    return %c0_i32, %c0_i32_0 : i32, i32
  }
  func.func @transform_4(%arg0: i32) -> (i32, i32) {
    %c0_i32 = arith.constant 0 : i32
    %c0_i32_0 = arith.constant 0 : i32
    %c0_i32_1 = arith.constant 0 : i32
    return %c0_i32, %c0_i32_0 : i32, i32
  }
  func.func @transform_5(%arg0: i32) -> (i32, i32) {
    %c0_i32 = arith.constant 0 : i32
    %c0_i32_0 = arith.constant 0 : i32
    %c0_i32_1 = arith.constant 0 : i32
    return %c0_i32, %c0_i32_0 : i32, i32
  }
  func.func @transform_6(%arg0: i32) -> (i32, i32) {
    %c0_i32 = arith.constant 0 : i32
    %c0_i32_0 = arith.constant 0 : i32
    %c0_i32_1 = arith.constant 0 : i32
    return %c0_i32, %c0_i32_0 : i32, i32
  }
  func.func @transform_7(%arg0: i32) -> (i32, i32) {
    %c0_i32 = arith.constant 0 : i32
    %c0_i32_0 = arith.constant 0 : i32
    return %arg0, %c0_i32 : i32, i32
  }
}

</mosaic_0001>

<llo_original>
// kernel: tpu_custom_call.1
$region0: #{tpu_custom_call.1}
  #allocation0 [shape = 'u32[]', space=smem, size = 0x4, offset = 0x4, fixed_abs, tag = 'smem constant byte address 0x4 - core index']
  #allocation1 [shape = 'u32[72,128]{1,0:T(1,128)}', space=vmem, size = 0x9000, scoped, tag = 'internal scratch']
  #allocation2 [shape = 'f32[1,1]{1,0:T(1,128)S(6)}', space=smem, size = 0x200, scoped, tag = 'scoped memory for tpu_custom_call.1']
  %s0 = inlined_call_operand.hbm [shape: f32[8,256], index: 0, kind: input, shape index: {}]
  %s1 = inlined_call_operand.hbm [shape: bf16[256,1024], index: 1, kind: input, shape index: {}]
  %s2 = inlined_call_operand.hbm [shape: f32[1,1024], index: 2, kind: input, shape index: {}]
  %s3 = inlined_call_operand.hbm [shape: bf16[1024,1024], index: 3, kind: input, shape index: {}]
  %s4 = inlined_call_operand.hbm [shape: f32[1,1024], index: 4, kind: input, shape index: {}]
  %s5 = inlined_call_operand.hbm [shape: bf16[1,1024], index: 5, kind: input, shape index: {}]
  %s6 = inlined_call_operand.<no memory space> [shape: f32[1,1], index: 6, kind: input, shape index: {}]
  %s7 = inlined_call_operand.vmem [shape: f32[8,1], index: 7, kind: output, shape index: {}]
  %s8 = sld [smem:[#allocation0]]
  $region62: #{tpu_custom_call.1} parent=0
    _
  %s10 = ssub.s32 1, %s8
  %s11 = scalar_select 0, %s10, %s8
  %12 = sst [smem:[#allocation2]] %s6
  $region1: #{tpu_custom_call.1} parent=0
    #allocation3 [shape = 'u8[8192]{0}', space=vmem, size = 0x2000, scoped, tag = 'input window, operand 0, single buffered']
    #allocation4 [shape = 's32[1]{0}', space=sflag, size = 0x4, scoped, tag = 'scoped memory for tpu_custom_call.1']
    #allocation5 [shape = 'u8[524288]{0}', space=vmem, size = 0x80000, scoped, tag = 'input window, operand 1, single buffered']
    #allocation6 [shape = 's32[1]{0}', space=sflag, size = 0x4, scoped, tag = 'scoped memory for tpu_custom_call.1']
    #allocation7 [shape = 'u8[4096]{0}', space=vmem, size = 0x1000, scoped, tag = 'input window, operand 2, single buffered']
    #allocation8 [shape = 'u8[2097152]{0}', space=vmem, size = 0x200000, scoped, tag = 'input window, operand 3, single buffered']
    #allocation9 [shape = 's32[1]{0}', space=sflag, size = 0x4, scoped, tag = 'scoped memory for tpu_custom_call.1']
    #allocation10 [shape = 'u8[4096]{0}', space=vmem, size = 0x1000, scoped, tag = 'input window, operand 4, single buffered']
    #allocation11 [shape = 'u8[4096]{0}', space=vmem, size = 0x1000, scoped, tag = 'input window, operand 5, single buffered']
    #allocation12 [shape = 's32[1]{0}', space=sflag, size = 0x4, scoped, tag = 'scoped memory for tpu_custom_call.1']
    %13 = vsyncpa [#allocation4], 0
    %14 = vsyncpa [#allocation6], 0
    %15 = vsyncpa [#allocation9], 0
    %16 = vsyncpa [#allocation12], 0
    // Predicated region
    $region2: #{tpu_custom_call.1} parent=1 // pred_check
      _
    $region3: #{tpu_custom_call.1} parent=1 // pred_check_branch
      %18 = sbr.rel (0) target = $region5
    $region4: #{tpu_custom_call.1} parent=1 // pred_region
      %20 = vsyncadd [#allocation4], 0
      %s22 = sshll.u32 %s0, 4
      %s23 = int_to_ptr.hbm [resolvable:$true] %s22
      %s24 = sshll.u32 [#allocation3], 4
      %s25 = int_to_ptr.vmem [resolvable:$true] %s24
      %27 = dma.hbm_to_vmem [thread:$0]  %s23, 256, %s25, [#allocation4]
    $region5: #{tpu_custom_call.1} parent=1 // pred_fallthru
      _
    // Predicated region
    $region6: #{tpu_custom_call.1} parent=1 // pred_check
      _
    $region7: #{tpu_custom_call.1} parent=1 // pred_check_branch
      %29 = sbr.rel (0) target = $region9
    $region8: #{tpu_custom_call.1} parent=1 // pred_region
      %31 = vsyncadd [#allocation6], 0
      %s32 = sshll.u32 %s1, 4
      %s33 = int_to_ptr.hbm [resolvable:$true] %s32
      %s34 = sshll.u32 [#allocation5], 4
      %s35 = int_to_ptr.vmem [resolvable:$true] %s34
      %40 = dma.hbm_to_vmem [thread:$0]  %s33, 16384, %s35, [#allocation6], 512, 512, 32
    $region9: #{tpu_custom_call.1} parent=1 // pred_fallthru
      _
    // Predicated region
    $region10: #{tpu_custom_call.1} parent=1 // pred_check
      _
    $region11: #{tpu_custom_call.1} parent=1 // pred_check_branch
      %42 = sbr.rel (0) target = $region13
    $region12: #{tpu_custom_call.1} parent=1 // pred_region
      %44 = vsyncadd [#allocation6], 0
      %s46 = sshll.u32 %s2, 4
      %s47 = int_to_ptr.hbm [resolvable:$true] %s46
      %s48 = sshll.u32 [#allocation7], 4
      %s49 = int_to_ptr.vmem [resolvable:$true] %s48
      %51 = dma.hbm_to_vmem [thread:$0]  %s47, 128, %s49, [#allocation6]
    $region13: #{tpu_custom_call.1} parent=1 // pred_fallthru
      _
    // Predicated region
    $region14: #{tpu_custom_call.1} parent=1 // pred_check
      _
    $region15: #{tpu_custom_call.1} parent=1 // pred_check_branch
      %53 = sbr.rel (0) target = $region17
    $region16: #{tpu_custom_call.1} parent=1 // pred_region
      %55 = vsyncadd [#allocation9], 0
      %s56 = sshll.u32 %s3, 4
      %s57 = int_to_ptr.hbm [resolvable:$true] %s56
      %s58 = sshll.u32 [#allocation8], 4
      %s59 = int_to_ptr.vmem [resolvable:$true] %s58
      %64 = dma.hbm_to_vmem [thread:$0]  %s57, 65536, %s59, [#allocation9], 512, 512, 32
    $region17: #{tpu_custom_call.1} parent=1 // pred_fallthru
      _
    // Predicated region
    $region18: #{tpu_custom_call.1} parent=1 // pred_check
      _
    $region19: #{tpu_custom_call.1} parent=1 // pred_check_branch
      %66 = sbr.rel (0) target = $region21
    $region20: #{tpu_custom_call.1} parent=1 // pred_region
      %68 = vsyncadd [#allocation9], 0
      %s70 = sshll.u32 %s4, 4
      %s71 = int_to_ptr.hbm [resolvable:$true] %s70
      %s72 = sshll.u32 [#allocation10], 4
      %s73 = int_to_ptr.vmem [resolvable:$true] %s72
      %75 = dma.hbm_to_vmem [thread:$0]  %s71, 128, %s73, [#allocation9]
    $region21: #{tpu_custom_call.1} parent=1 // pred_fallthru
      _
    // Predicated region
    $region22: #{tpu_custom_call.1} parent=1 // pred_check
      _
    $region23: #{tpu_custom_call.1} parent=1 // pred_check_branch
      %77 = sbr.rel (0) target = $region25
    $region24: #{tpu_custom_call.1} parent=1 // pred_region
      %79 = vsyncadd [#allocation12], 0
      %s81 = sshll.u32 %s5, 4
      %s82 = int_to_ptr.hbm [resolvable:$true] %s81
      %s83 = sshll.u32 [#allocation11], 4
      %s84 = int_to_ptr.vmem [resolvable:$true] %s83
      %86 = dma.hbm_to_vmem [thread:$0]  %s82, 128, %s84, [#allocation12]
    $region25: #{tpu_custom_call.1} parent=1 // pred_fallthru
      _
    // Predicated region
    $region26: #{tpu_custom_call.1} parent=1 // pred_check
      _
    $region27: #{tpu_custom_call.1} parent=1 // pred_check_branch
      %88 = sbr.rel (0) target = $region29
    $region28: #{tpu_custom_call.1} parent=1 // pred_region
      _
    $region29: #{tpu_custom_call.1} parent=1 // pred_fallthru
      _
    // Predicated region
    $region30: #{tpu_custom_call.1} parent=1 // pred_check
      _
    $region31: #{tpu_custom_call.1} parent=1 // pred_check_branch
      %90 = sbr.rel (0) target = $region33
    $region32: #{tpu_custom_call.1} parent=1 // pred_region
      %92 = dma.done [#allocation4], 256
    $region33: #{tpu_custom_call.1} parent=1 // pred_fallthru
      _
    // Predicated region
    $region34: #{tpu_custom_call.1} parent=1 // pred_check
      _
    $region35: #{tpu_custom_call.1} parent=1 // pred_check_branch
      %94 = sbr.rel (0) target = $region37
    $region36: #{tpu_custom_call.1} parent=1 // pred_region
      %96 = dma.done [#allocation6], 16384
    $region37: #{tpu_custom_call.1} parent=1 // pred_fallthru
      _
    // Predicated region
    $region38: #{tpu_custom_call.1} parent=1 // pred_check
      _
    $region39: #{tpu_custom_call.1} parent=1 // pred_check_branch
      %98 = sbr.rel (0) target = $region41
    $region40: #{tpu_custom_call.1} parent=1 // pred_region
      %100 = dma.done [#allocation6], 128
    $region41: #{tpu_custom_call.1} parent=1 // pred_fallthru
      _
    // Predicated region
    $region42: #{tpu_custom_call.1} parent=1 // pred_check
      _
    $region43: #{tpu_custom_call.1} parent=1 // pred_check_branch
      %102 = sbr.rel (0) target = $region45
    $region44: #{tpu_custom_call.1} parent=1 // pred_region
      %104 = dma.done [#allocation9], 65536
    $region45: #{tpu_custom_call.1} parent=1 // pred_fallthru
      _
    // Predicated region
    $region46: #{tpu_custom_call.1} parent=1 // pred_check
      _
    $region47: #{tpu_custom_call.1} parent=1 // pred_check_branch
      %106 = sbr.rel (0) target = $region49
    $region48: #{tpu_custom_call.1} parent=1 // pred_region
      %108 = dma.done [#allocation9], 128
    $region49: #{tpu_custom_call.1} parent=1 // pred_fallthru
      _
    // Predicated region
    $region50: #{tpu_custom_call.1} parent=1 // pred_check
      _
    $region51: #{tpu_custom_call.1} parent=1 // pred_check_branch
      %110 = sbr.rel (0) target = $region53
    $region52: #{tpu_custom_call.1} parent=1 // pred_region
      %112 = dma.done [#allocation12], 128
    $region53: #{tpu_custom_call.1} parent=1 // pred_fallthru
      _
    %v113 = vld [vmem:[#allocation3] sm:$0xff]
    %v114 = vld [vmem:[#allocation3 + $0x8] sm:$0xff]
    %v115 = vpack.c.bf16 %v113, %v113
    %v116 = vpack.c.bf16 %v114, %v114
    %v117 = vld [vmem:[#allocation5] sm:$0xff]
    %v118 = vld [vmem:[#allocation5 + $0x8] sm:$0xff]
    %v119 = vld [vmem:[#allocation5 + $0x10] sm:$0xff]
    %v120 = vld [vmem:[#allocation5 + $0x18] sm:$0xff]
    %v121 = vld [vmem:[#allocation5 + $0x20] sm:$0xff]
    %v122 = vld [vmem:[#allocation5 + $0x28] sm:$0xff]
    %v123 = vld [vmem:[#allocation5 + $0x30] sm:$0xff]
    %v124 = vld [vmem:[#allocation5 + $0x38] sm:$0xff]
    %v125 = vld [vmem:[#allocation5 + $0x40] sm:$0xff]
    %v126 = vld [vmem:[#allocation5 + $0x48] sm:$0xff]
    %v127 = vld [vmem:[#allocation5 + $0x50] sm:$0xff]
    %v128 = vld [vmem:[#allocation5 + $0x58] sm:$0xff]
    %v129 = vld [vmem:[#allocation5 + $0x60] sm:$0xff]
    %v130 = vld [vmem:[#allocation5 + $0x68] sm:$0xff]
    %v131 = vld [vmem:[#allocation5 + $0x70] sm:$0xff]
    %v132 = vld [vmem:[#allocation5 + $0x78] sm:$0xff]
    %v133 = vld [vmem:[#allocation5 + $0x80] sm:$0xff]
    %v134 = vld [vmem:[#allocation5 + $0x88] sm:$0xff]
    %v135 = vld [vmem:[#allocation5 + $0x90] sm:$0xff]
    %v136 = vld [vmem:[#allocation5 + $0x98] sm:$0xff]
    %v137 = vld [vmem:[#allocation5 + $0xa0] sm:$0xff]
    %v138 = vld [vmem:[#allocation5 + $0xa8] sm:$0xff]
    %v139 = vld [vmem:[#allocation5 + $0xb0] sm:$0xff]
    %v140 = vld [vmem:[#allocation5 + $0xb8] sm:$0xff]
    %v141 = vld [vmem:[#allocation5 + $0xc0] sm:$0xff]
    %v142 = vld [vmem:[#allocation5 + $0xc8] sm:$0xff]
    %v143 = vld [vmem:[#allocation5 + $0xd0] sm:$0xff]
    %v144 = vld [vmem:[#allocation5 + $0xd8] sm:$0xff]
    %v145 = vld [vmem:[#allocation5 + $0xe0] sm:$0xff]
    %v146 = vld [vmem:[#allocation5 + $0xe8] sm:$0xff]
    %v147 = vld [vmem:[#allocation5 + $0xf0] sm:$0xff]
    %v148 = vld [vmem:[#allocation5 + $0xf8] sm:$0xff]
    %v149 = vld [vmem:[#allocation5 + $0x100] sm:$0xff]
    %v150 = vld [vmem:[#allocation5 + $0x108] sm:$0xff]
    %v151 = vld [vmem:[#allocation5 + $0x110] sm:$0xff]
    %v152 = vld [vmem:[#allocation5 + $0x118] sm:$0xff]
    %v153 = vld [vmem:[#allocation5 + $0x120] sm:$0xff]
    %v154 = vld [vmem:[#allocation5 + $0x128] sm:$0xff]
    %v155 = vld [vmem:[#allocation5 + $0x130] sm:$0xff]
    %v156 = vld [vmem:[#allocation5 + $0x138] sm:$0xff]
    %v157 = vld [vmem:[#allocation5 + $0x140] sm:$0xff]
    %v158 = vld [vmem:[#allocation5 + $0x148] sm:$0xff]
    %v159 = vld [vmem:[#allocation5 + $0x150] sm:$0xff]
    %v160 = vld [vmem:[#allocation5 + $0x158] sm:$0xff]
    %v161 = vld [vmem:[#allocation5 + $0x160] sm:$0xff]
    %v162 = vld [vmem:[#allocation5 + $0x168] sm:$0xff]
    %v163 = vld [vmem:[#allocation5 + $0x170] sm:$0xff]
    %v164 = vld [vmem:[#allocation5 + $0x178] sm:$0xff]
    %v165 = vld [vmem:[#allocation5 + $0x180] sm:$0xff]
    %v166 = vld [vmem:[#allocation5 + $0x188] sm:$0xff]
    %v167 = vld [vmem:[#allocation5 + $0x190] sm:$0xff]
    %v168 = vld [vmem:[#allocation5 + $0x198] sm:$0xff]
    %v169 = vld [vmem:[#allocation5 + $0x1a0] sm:$0xff]
    %v170 = vld [vmem:[#allocation5 + $0x1a8] sm:$0xff]
    %v171 = vld [vmem:[#allocation5 + $0x1b0] sm:$0xff]
    %v172 = vld [vmem:[#allocation5 + $0x1b8] sm:$0xff]
    %v173 = vld [vmem:[#allocation5 + $0x1c0] sm:$0xff]
    %v174 = vld [vmem:[#allocation5 + $0x1c8] sm:$0xff]
    %v175 = vld [vmem:[#allocation5 + $0x1d0] sm:$0xff]
    %v176 = vld [vmem:[#allocation5 + $0x1d8] sm:$0xff]
    %v177 = vld [vmem:[#allocation5 + $0x1e0] sm:$0xff]
    %v178 = vld [vmem:[#allocation5 + $0x1e8] sm:$0xff]
    %v179 = vld [vmem:[#allocation5 + $0x1f0] sm:$0xff]
    %v180 = vld [vmem:[#allocation5 + $0x1f8] sm:$0xff]
    %v181 = vld [vmem:[#allocation5 + $0x200] sm:$0xff]
    %v182 = vld [vmem:[#allocation5 + $0x208] sm:$0xff]
    %v183 = vld [vmem:[#allocation5 + $0x210] sm:$0xff]
    %v184 = vld [vmem:[#allocation5 + $0x218] sm:$0xff]
    %v185 = vld [vmem:[#allocation5 + $0x220] sm:$0xff]
    %v186 = vld [vmem:[#allocation5 + $0x228] sm:$0xff]
    %v187 = vld [vmem:[#allocation5 + $0x230] sm:$0xff]
    %v188 = vld [vmem:[#allocation5 + $0x238] sm:$0xff]
    %v189 = vld [vmem:[#allocation5 + $0x240] sm:$0xff]
    %v190 = vld [vmem:[#allocation5 + $0x248] sm:$0xff]
    %v191 = vld [vmem:[#allocation5 + $0x250] sm:$0xff]
    %v192 = vld [vmem:[#allocation5 + $0x258] sm:$0xff]
    %v193 = vld [vmem:[#allocation5 + $0x260] sm:$0xff]
    %v194 = vld [vmem:[#allocation5 + $0x268] sm:$0xff]
    %v195 = vld [vmem:[#allocation5 + $0x270] sm:$0xff]
    %v196 = vld [vmem:[#allocation5 + $0x278] sm:$0xff]
    %v197 = vld [vmem:[#allocation5 + $0x280] sm:$0xff]
    %v198 = vld [vmem:[#allocation5 + $0x288] sm:$0xff]
    %v199 = vld [vmem:[#allocation5 + $0x290] sm:$0xff]
    %v200 = vld [vmem:[#allocation5 + $0x298] sm:$0xff]
    %v201 = vld [vmem:[#allocation5 + $0x2a0] sm:$0xff]
    %v202 = vld [vmem:[#allocation5 + $0x2a8] sm:$0xff]
    %v203 = vld [vmem:[#allocation5 + $0x2b0] sm:$0xff]
    %v204 = vld [vmem:[#allocation5 + $0x2b8] sm:$0xff]
    %v205 = vld [vmem:[#allocation5 + $0x2c0] sm:$0xff]
    %v206 = vld [vmem:[#allocation5 + $0x2c8] sm:$0xff]
    %v207 = vld [vmem:[#allocation5 + $0x2d0] sm:$0xff]
    %v208 = vld [vmem:[#allocation5 + $0x2d8] sm:$0xff]
    %v209 = vld [vmem:[#allocation5 + $0x2e0] sm:$0xff]
    %v210 = vld [vmem:[#allocation5 + $0x2e8] sm:$0xff]
    %v211 = vld [vmem:[#allocation5 + $0x2f0] sm:$0xff]
    %v212 = vld [vmem:[#allocation5 + $0x2f8] sm:$0xff]
    %v213 = vld [vmem:[#allocation5 + $0x300] sm:$0xff]
    %v214 = vld [vmem:[#allocation5 + $0x308] sm:$0xff]
    %v215 = vld [vmem:[#allocation5 + $0x310] sm:$0xff]
    %v216 = vld [vmem:[#allocation5 + $0x318] sm:$0xff]
    %v217 = vld [vmem:[#allocation5 + $0x320] sm:$0xff]
    %v218 = vld [vmem:[#allocation5 + $0x328] sm:$0xff]
    %v219 = vld [vmem:[#allocation5 + $0x330] sm:$0xff]
    %v220 = vld [vmem:[#allocation5 + $0x338] sm:$0xff]
    %v221 = vld [vmem:[#allocation5 + $0x340] sm:$0xff]
    %v222 = vld [vmem:[#allocation5 + $0x348] sm:$0xff]
    %v223 = vld [vmem:[#allocation5 + $0x350] sm:$0xff]
    %v224 = vld [vmem:[#allocation5 + $0x358] sm:$0xff]
    %v225 = vld [vmem:[#allocation5 + $0x360] sm:$0xff]
    %v226 = vld [vmem:[#allocation5 + $0x368] sm:$0xff]
    %v227 = vld [vmem:[#allocation5 + $0x370] sm:$0xff]
    %v228 = vld [vmem:[#allocation5 + $0x378] sm:$0xff]
    %v229 = vld [vmem:[#allocation5 + $0x380] sm:$0xff]
    %v230 = vld [vmem:[#allocation5 + $0x388] sm:$0xff]
    %v231 = vld [vmem:[#allocation5 + $0x390] sm:$0xff]
    %v232 = vld [vmem:[#allocation5 + $0x398] sm:$0xff]
    %v233 = vld [vmem:[#allocation5 + $0x3a0] sm:$0xff]
    %v234 = vld [vmem:[#allocation5 + $0x3a8] sm:$0xff]
    %v235 = vld [vmem:[#allocation5 + $0x3b0] sm:$0xff]
    %v236 = vld [vmem:[#allocation5 + $0x3b8] sm:$0xff]
    %v237 = vld [vmem:[#allocation5 + $0x3c0] sm:$0xff]
    %v238 = vld [vmem:[#allocation5 + $0x3c8] sm:$0xff]
    %v239 = vld [vmem:[#allocation5 + $0x3d0] sm:$0xff]
    %v240 = vld [vmem:[#allocation5 + $0x3d8] sm:$0xff]
    %v241 = vld [vmem:[#allocation5 + $0x3e0] sm:$0xff]
    %v242 = vld [vmem:[#allocation5 + $0x3e8] sm:$0xff]
    %v243 = vld [vmem:[#allocation5 + $0x3f0] sm:$0xff]
    %v244 = vld [vmem:[#allocation5 + $0x3f8] sm:$0xff]
    %v245 = vld [vmem:[#allocation7] sm:$0xff]
    %v247 = vperm.slane %v245, 0
    %v248 = vperm.slane %v245, 1
    %v249 = vperm.slane %v245, 2
    %v250 = vperm.slane %v245, 3
    %v251 = vperm.slane %v245, 4
    %v252 = vperm.slane %v245, 5
    %v253 = vperm.slane %v245, 6
    %v254 = vperm.slane %v245, 7
    %v391 = vunpack.c.l.b16 %v117
    %v392 = vunpack.c.h.b16 %v117
    %v393 = vunpack.c.l.b16 %v118
    %v394 = vunpack.c.h.b16 %v118
    %v395 = vunpack.c.l.b16 %v119
    %v396 = vunpack.c.h.b16 %v119
    %v397 = vunpack.c.l.b16 %v120
    %v398 = vunpack.c.h.b16 %v120
    %v399 = vunpack.c.l.b16 %v121
    %v400 = vunpack.c.h.b16 %v121
    %v401 = vunpack.c.l.b16 %v122
    %v402 = vunpack.c.h.b16 %v122
    %v403 = vunpack.c.l.b16 %v123
    %v404 = vunpack.c.h.b16 %v123
    %v405 = vunpack.c.l.b16 %v124
    %v406 = vunpack.c.h.b16 %v124
    %v407 = vunpack.c.l.b16 %v125
    %v408 = vunpack.c.h.b16 %v125
    %v409 = vunpack.c.l.b16 %v126
    %v410 = vunpack.c.h.b16 %v126
    %v411 = vunpack.c.l.b16 %v127
    %v412 = vunpack.c.h.b16 %v127
    %v413 = vunpack.c.l.b16 %v128
    %v414 = vunpack.c.h.b16 %v128
    %v415 = vunpack.c.l.b16 %v129
    %v416 = vunpack.c.h.b16 %v129
    %v417 = vunpack.c.l.b16 %v130
    %v418 = vunpack.c.h.b16 %v130
    %v419 = vunpack.c.l.b16 %v131
    %v420 = vunpack.c.h.b16 %v131
    %v421 = vunpack.c.l.b16 %v132
    %v422 = vunpack.c.h.b16 %v132
    %v423 = vunpack.c.l.b16 %v133
    %v424 = vunpack.c.h.b16 %v133
    %v425 = vunpack.c.l.b16 %v134
    %v426 = vunpack.c.h.b16 %v134
    %v427 = vunpack.c.l.b16 %v135
    %v428 = vunpack.c.h.b16 %v135
    %v429 = vunpack.c.l.b16 %v136
    %v430 = vunpack.c.h.b16 %v136
    %v431 = vunpack.c.l.b16 %v137
    %v432 = vunpack.c.h.b16 %v137
    %v433 = vunpack.c.l.b16 %v138
    %v434 = vunpack.c.h.b16 %v138
    %v435 = vunpack.c.l.b16 %v139
    %v436 = vunpack.c.h.b16 %v139
    %v437 = vunpack.c.l.b16 %v140
    %v438 = vunpack.c.h.b16 %v140
    %v439 = vunpack.c.l.b16 %v141
    %v440 = vunpack.c.h.b16 %v141
    %v441 = vunpack.c.l.b16 %v142
    %v442 = vunpack.c.h.b16 %v142
    %v443 = vunpack.c.l.b16 %v143
    %v444 = vunpack.c.h.b16 %v143
    %v445 = vunpack.c.l.b16 %v144
    %v446 = vunpack.c.h.b16 %v144
    %v447 = vunpack.c.l.b16 %v145
    %v448 = vunpack.c.h.b16 %v145
    %v449 = vunpack.c.l.b16 %v146
    %v450 = vunpack.c.h.b16 %v146
    %v451 = vunpack.c.l.b16 %v147
    %v452 = vunpack.c.h.b16 %v147
    %v453 = vunpack.c.l.b16 %v148
    %v454 = vunpack.c.h.b16 %v148
    %v455 = vunpack.c.l.b16 %v149
    %v456 = vunpack.c.h.b16 %v149
    %v457 = vunpack.c.l.b16 %v150
    %v458 = vunpack.c.h.b16 %v150
    %v459 = vunpack.c.l.b16 %v151
    %v460 = vunpack.c.h.b16 %v151
    %v461 = vunpack.c.l.b16 %v152
    %v462 = vunpack.c.h.b16 %v152
    %v463 = vunpack.c.l.b16 %v153
    %v464 = vunpack.c.h.b16 %v153
    %v465 = vunpack.c.l.b16 %v154
    %v466 = vunpack.c.h.b16 %v154
    %v467 = vunpack.c.l.b16 %v155
    %v468 = vunpack.c.h.b16 %v155
    %v469 = vunpack.c.l.b16 %v156
    %v470 = vunpack.c.h.b16 %v156
    %v471 = vunpack.c.l.b16 %v157
    %v472 = vunpack.c.h.b16 %v157
    %v473 = vunpack.c.l.b16 %v158
    %v474 = vunpack.c.h.b16 %v158
    %v475 = vunpack.c.l.b16 %v159
    %v476 = vunpack.c.h.b16 %v159
    %v477 = vunpack.c.l.b16 %v160
    %v478 = vunpack.c.h.b16 %v160
    %v479 = vunpack.c.l.b16 %v161
    %v480 = vunpack.c.h.b16 %v161
    %v481 = vunpack.c.l.b16 %v162
    %v482 = vunpack.c.h.b16 %v162
    %v483 = vunpack.c.l.b16 %v163
    %v484 = vunpack.c.h.b16 %v163
    %v485 = vunpack.c.l.b16 %v164
    %v486 = vunpack.c.h.b16 %v164
    %v487 = vunpack.c.l.b16 %v165
    %v488 = vunpack.c.h.b16 %v165
    %v489 = vunpack.c.l.b16 %v166
    %v490 = vunpack.c.h.b16 %v166
    %v491 = vunpack.c.l.b16 %v167
    %v492 = vunpack.c.h.b16 %v167
    %v493 = vunpack.c.l.b16 %v168
    %v494 = vunpack.c.h.b16 %v168
    %v495 = vunpack.c.l.b16 %v169
    %v496 = vunpack.c.h.b16 %v169
    %v497 = vunpack.c.l.b16 %v170
    %v498 = vunpack.c.h.b16 %v170
    %v499 = vunpack.c.l.b16 %v171
    %v500 = vunpack.c.h.b16 %v171
    %v501 = vunpack.c.l.b16 %v172
    %v502 = vunpack.c.h.b16 %v172
    %v503 = vunpack.c.l.b16 %v173
    %v504 = vunpack.c.h.b16 %v173
    %v505 = vunpack.c.l.b16 %v174
    %v506 = vunpack.c.h.b16 %v174
    %v507 = vunpack.c.l.b16 %v175
    %v508 = vunpack.c.h.b16 %v175
    %v509 = vunpack.c.l.b16 %v176
    %v510 = vunpack.c.h.b16 %v176
    %v511 = vunpack.c.l.b16 %v177
    %v512 = vunpack.c.h.b16 %v177
    %v513 = vunpack.c.l.b16 %v178
    %v514 = vunpack.c.h.b16 %v178
    %v515 = vunpack.c.l.b16 %v179
    %v516 = vunpack.c.h.b16 %v179
    %v517 = vunpack.c.l.b16 %v180
    %v518 = vunpack.c.h.b16 %v180
    %v519 = vunpack.c.l.b16 %v181
    %v520 = vunpack.c.h.b16 %v181
    %v521 = vunpack.c.l.b16 %v182
    %v522 = vunpack.c.h.b16 %v182
    %v523 = vunpack.c.l.b16 %v183
    %v524 = vunpack.c.h.b16 %v183
    %v525 = vunpack.c.l.b16 %v184
    %v526 = vunpack.c.h.b16 %v184
    %v527 = vunpack.c.l.b16 %v185
    %v528 = vunpack.c.h.b16 %v185
    %v529 = vunpack.c.l.b16 %v186
    %v530 = vunpack.c.h.b16 %v186
    %v531 = vunpack.c.l.b16 %v187
    %v532 = vunpack.c.h.b16 %v187
    %v533 = vunpack.c.l.b16 %v188
    %v534 = vunpack.c.h.b16 %v188
    %v535 = vunpack.c.l.b16 %v189
    %v536 = vunpack.c.h.b16 %v189
    %v537 = vunpack.c.l.b16 %v190
    %v538 = vunpack.c.h.b16 %v190
    %v539 = vunpack.c.l.b16 %v191
    %v540 = vunpack.c.h.b16 %v191
    %v541 = vunpack.c.l.b16 %v192
    %v542 = vunpack.c.h.b16 %v192
    %v543 = vunpack.c.l.b16 %v193
    %v544 = vunpack.c.h.b16 %v193
    %v545 = vunpack.c.l.b16 %v194
    %v546 = vunpack.c.h.b16 %v194
    %v547 = vunpack.c.l.b16 %v195
    %v548 = vunpack.c.h.b16 %v195
    %v549 = vunpack.c.l.b16 %v196
    %v550 = vunpack.c.h.b16 %v196
    %v551 = vunpack.c.l.b16 %v197
    %v552 = vunpack.c.h.b16 %v197
    %v553 = vunpack.c.l.b16 %v198
    %v554 = vunpack.c.h.b16 %v198
    %v555 = vunpack.c.l.b16 %v199
    %v556 = vunpack.c.h.b16 %v199
    %v557 = vunpack.c.l.b16 %v200
    %v558 = vunpack.c.h.b16 %v200
    %v559 = vunpack.c.l.b16 %v201
    %v560 = vunpack.c.h.b16 %v201
    %v561 = vunpack.c.l.b16 %v202
    %v562 = vunpack.c.h.b16 %v202
    %v563 = vunpack.c.l.b16 %v203
    %v564 = vunpack.c.h.b16 %v203
    %v565 = vunpack.c.l.b16 %v204
    %v566 = vunpack.c.h.b16 %v204
    %v567 = vunpack.c.l.b16 %v205
    %v568 = vunpack.c.h.b16 %v205
    %v569 = vunpack.c.l.b16 %v206
    %v570 = vunpack.c.h.b16 %v206
    %v571 = vunpack.c.l.b16 %v207
    %v572 = vunpack.c.h.b16 %v207
    %v573 = vunpack.c.l.b16 %v208
    %v574 = vunpack.c.h.b16 %v208
    %v575 = vunpack.c.l.b16 %v209
    %v576 = vunpack.c.h.b16 %v209
    %v577 = vunpack.c.l.b16 %v210
    %v578 = vunpack.c.h.b16 %v210
    %v579 = vunpack.c.l.b16 %v211
    %v580 = vunpack.c.h.b16 %v211
    %v581 = vunpack.c.l.b16 %v212
    %v582 = vunpack.c.h.b16 %v212
    %v583 = vunpack.c.l.b16 %v213
    %v584 = vunpack.c.h.b16 %v213
    %v585 = vunpack.c.l.b16 %v214
    %v586 = vunpack.c.h.b16 %v214
    %v587 = vunpack.c.l.b16 %v215
    %v588 = vunpack.c.h.b16 %v215
    %v589 = vunpack.c.l.b16 %v216
    %v590 = vunpack.c.h.b16 %v216
    %v591 = vunpack.c.l.b16 %v217
    %v592 = vunpack.c.h.b16 %v217
    %v593 = vunpack.c.l.b16 %v218
    %v594 = vunpack.c.h.b16 %v218
    %v595 = vunpack.c.l.b16 %v219
    %v596 = vunpack.c.h.b16 %v219
    %v597 = vunpack.c.l.b16 %v220
    %v598 = vunpack.c.h.b16 %v220
    %v599 = vunpack.c.l.b16 %v221
    %v600 = vunpack.c.h.b16 %v221
    %v601 = vunpack.c.l.b16 %v222
    %v602 = vunpack.c.h.b16 %v222
    %v603 = vunpack.c.l.b16 %v223
    %v604 = vunpack.c.h.b16 %v223
    %v605 = vunpack.c.l.b16 %v224
    %v606 = vunpack.c.h.b16 %v224
    %v607 = vunpack.c.l.b16 %v225
    %v608 = vunpack.c.h.b16 %v225
    %v609 = vunpack.c.l.b16 %v226
    %v610 = vunpack.c.h.b16 %v226
    %v611 = vunpack.c.l.b16 %v227
    %v612 = vunpack.c.h.b16 %v227
    %v613 = vunpack.c.l.b16 %v228
    %v614 = vunpack.c.h.b16 %v228
    %v615 = vunpack.c.l.b16 %v229
    %v616 = vunpack.c.h.b16 %v229
    %v617 = vunpack.c.l.b16 %v230
    %v618 = vunpack.c.h.b16 %v230
    %v619 = vunpack.c.l.b16 %v231
    %v620 = vunpack.c.h.b16 %v231
    %v621 = vunpack.c.l.b16 %v232
    %v622 = vunpack.c.h.b16 %v232
    %v623 = vunpack.c.l.b16 %v233
    %v624 = vunpack.c.h.b16 %v233
    %v625 = vunpack.c.l.b16 %v234
    %v626 = vunpack.c.h.b16 %v234
    %v627 = vunpack.c.l.b16 %v235
    %v628 = vunpack.c.h.b16 %v235
    %v629 = vunpack.c.l.b16 %v236
    %v630 = vunpack.c.h.b16 %v236
    %v631 = vunpack.c.l.b16 %v237
    %v632 = vunpack.c.h.b16 %v237
    %v633 = vunpack.c.l.b16 %v238
    %v634 = vunpack.c.h.b16 %v238
    %v635 = vunpack.c.l.b16 %v239
    %v636 = vunpack.c.h.b16 %v239
    %v637 = vunpack.c.l.b16 %v240
    %v638 = vunpack.c.h.b16 %v240
    %v639 = vunpack.c.l.b16 %v241
    %v640 = vunpack.c.h.b16 %v241
    %v641 = vunpack.c.l.b16 %v242
    %v642 = vunpack.c.h.b16 %v242
    %v643 = vunpack.c.l.b16 %v243
    %v644 = vunpack.c.h.b16 %v243
    %v645 = vunpack.c.l.b16 %v244
    %v646 = vunpack.c.h.b16 %v244
    %v647 = vpack.c.b16 %v399, %v391
    %v648 = vpack.c.b16 %v400, %v392
    %v649 = vpack.c.b16 %v401, %v393
    %v650 = vpack.c.b16 %v402, %v394
    %v651 = vpack.c.b16 %v403, %v395
    %v652 = vpack.c.b16 %v404, %v396
    %v653 = vpack.c.b16 %v405, %v397
    %v654 = vpack.c.b16 %v406, %v398
    %v655 = vpack.c.b16 %v415, %v407
    %v656 = vpack.c.b16 %v416, %v408
    %v657 = vpack.c.b16 %v417, %v409
    %v658 = vpack.c.b16 %v418, %v410
    %v659 = vpack.c.b16 %v419, %v411
    %v660 = vpack.c.b16 %v420, %v412
    %v661 = vpack.c.b16 %v421, %v413
    %v662 = vpack.c.b16 %v422, %v414
    %v663 = vpack.c.b16 %v431, %v423
    %v664 = vpack.c.b16 %v432, %v424
    %v665 = vpack.c.b16 %v433, %v425
    %v666 = vpack.c.b16 %v434, %v426
    %v667 = vpack.c.b16 %v435, %v427
    %v668 = vpack.c.b16 %v436, %v428
    %v669 = vpack.c.b16 %v437, %v429
    %v670 = vpack.c.b16 %v438, %v430
    %v671 = vpack.c.b16 %v447, %v439
    %v672 = vpack.c.b16 %v448, %v440
    %v673 = vpack.c.b16 %v449, %v441
    %v674 = vpack.c.b16 %v450, %v442
    %v675 = vpack.c.b16 %v451, %v443
    %v676 = vpack.c.b16 %v452, %v444
    %v677 = vpack.c.b16 %v453, %v445
    %v678 = vpack.c.b16 %v454, %v446
    %v679 = vpack.c.b16 %v463, %v455
    %v680 = vpack.c.b16 %v464, %v456
    %v681 = vpack.c.b16 %v465, %v457
    %v682 = vpack.c.b16 %v466, %v458
    %v683 = vpack.c.b16 %v467, %v459
    %v684 = vpack.c.b16 %v468, %v460
    %v685 = vpack.c.b16 %v469, %v461
    %v686 = vpack.c.b16 %v470, %v462
    %v687 = vpack.c.b16 %v479, %v471
    %v688 = vpack.c.b16 %v480, %v472
    %v689 = vpack.c.b16 %v481, %v473
    %v690 = vpack.c.b16 %v482, %v474
    %v691 = vpack.c.b16 %v483, %v475
    %v692 = vpack.c.b16 %v484, %v476
    %v693 = vpack.c.b16 %v485, %v477
    %v694 = vpack.c.b16 %v486, %v478
    %v695 = vpack.c.b16 %v495, %v487
    %v696 = vpack.c.b16 %v496, %v488
    %v697 = vpack.c.b16 %v497, %v489
    %v698 = vpack.c.b16 %v498, %v490
    %v699 = vpack.c.b16 %v499, %v491
    %v700 = vpack.c.b16 %v500, %v492
    %v701 = vpack.c.b16 %v501, %v493
    %v702 = vpack.c.b16 %v502, %v494
    %v703 = vpack.c.b16 %v511, %v503
    %v704 = vpack.c.b16 %v512, %v504
    %v705 = vpack.c.b16 %v513, %v505
    %v706 = vpack.c.b16 %v514, %v506
    %v707 = vpack.c.b16 %v515, %v507
    %v708 = vpack.c.b16 %v516, %v508
    %v709 = vpack.c.b16 %v517, %v509
    %v710 = vpack.c.b16 %v518, %v510
    %v711 = vpack.c.b16 %v527, %v519
    %v712 = vpack.c.b16 %v528, %v520
    %v713 = vpack.c.b16 %v529, %v521
    %v714 = vpack.c.b16 %v530, %v522
    %v715 = vpack.c.b16 %v531, %v523
    %v716 = vpack.c.b16 %v532, %v524
    %v717 = vpack.c.b16 %v533, %v525
    %v718 = vpack.c.b16 %v534, %v526
    %v719 = vpack.c.b16 %v543, %v535
    %v720 = vpack.c.b16 %v544, %v536
    %v721 = vpack.c.b16 %v545, %v537
    %v722 = vpack.c.b16 %v546, %v538
    %v723 = vpack.c.b16 %v547, %v539
    %v724 = vpack.c.b16 %v548, %v540
    %v725 = vpack.c.b16 %v549, %v541
    %v726 = vpack.c.b16 %v550, %v542
    %v727 = vpack.c.b16 %v559, %v551
    %v728 = vpack.c.b16 %v560, %v552
    %v729 = vpack.c.b16 %v561, %v553
    %v730 = vpack.c.b16 %v562, %v554
    %v731 = vpack.c.b16 %v563, %v555
    %v732 = vpack.c.b16 %v564, %v556
    %v733 = vpack.c.b16 %v565, %v557
    %v734 = vpack.c.b16 %v566, %v558
    %v735 = vpack.c.b16 %v575, %v567
    %v736 = vpack.c.b16 %v576, %v568
    %v737 = vpack.c.b16 %v577, %v569
    %v738 = vpack.c.b16 %v578, %v570
    %v739 = vpack.c.b16 %v579, %v571
    %v740 = vpack.c.b16 %v580, %v572
    %v741 = vpack.c.b16 %v581, %v573
    %v742 = vpack.c.b16 %v582, %v574
    %v743 = vpack.c.b16 %v591, %v583
    %v744 = vpack.c.b16 %v592, %v584
    %v745 = vpack.c.b16 %v593, %v585
    %v746 = vpack.c.b16 %v594, %v586
    %v747 = vpack.c.b16 %v595, %v587
    %v748 = vpack.c.b16 %v596, %v588
    %v749 = vpack.c.b16 %v597, %v589
    %v750 = vpack.c.b16 %v598, %v590
    %v751 = vpack.c.b16 %v607, %v599
    %v752 = vpack.c.b16 %v608, %v600
    %v753 = vpack.c.b16 %v609, %v601
    %v754 = vpack.c.b16 %v610, %v602
    %v755 = vpack.c.b16 %v611, %v603
    %v756 = vpack.c.b16 %v612, %v604
    %v757 = vpack.c.b16 %v613, %v605
    %v758 = vpack.c.b16 %v614, %v606
    %v759 = vpack.c.b16 %v623, %v615
    %v760 = vpack.c.b16 %v624, %v616
    %v761 = vpack.c.b16 %v625, %v617
    %v762 = vpack.c.b16 %v626, %v618
    %v763 = vpack.c.b16 %v627, %v619
    %v764 = vpack.c.b16 %v628, %v620
    %v765 = vpack.c.b16 %v629, %v621
    %v766 = vpack.c.b16 %v630, %v622
    %v767 = vpack.c.b16 %v639, %v631
    %v768 = vpack.c.b16 %v640, %v632
    %v769 = vpack.c.b16 %v641, %v633
    %v770 = vpack.c.b16 %v642, %v634
    %v771 = vpack.c.b16 %v643, %v635
    %v772 = vpack.c.b16 %v644, %v636
    %v773 = vpack.c.b16 %v645, %v637
    %v774 = vpack.c.b16 %v646, %v638
    %903 = vmatpush.bf16.msra.mxu0 %v703
    %904 = vmatpush.bf16.msra.mxu0 %v695
    %905 = vmatpush.bf16.msra.mxu0 %v687
    %906 = vmatpush.bf16.msra.mxu0 %v679
    %907 = vmatpush.bf16.msra.mxu0 %v671
    %908 = vmatpush.bf16.msra.mxu0 %v663
    %909 = vmatpush.bf16.msra.mxu0 %v655
    %910 = vmatpush.bf16.msra.mxu0 %v647
    %911 = vmatmul.bf16.gmra.mxu0 %v115
    %v912 = vpop.f32.mrf.mxu0
    %v913 = vadd.f32 %v247, %v912
    %v914 = vpop.f32.mrf.mxu0
    %915 = vdwg.mxu0
    %916 = vmatpush.bf16.msra.mxu0 %v767
    %917 = vmatpush.bf16.msra.mxu0 %v759
    %918 = vmatpush.bf16.msra.mxu0 %v751
    %919 = vmatpush.bf16.msra.mxu0 %v743
    %920 = vmatpush.bf16.msra.mxu0 %v735
    %921 = vmatpush.bf16.msra.mxu0 %v727
    %922 = vmatpush.bf16.msra.mxu0 %v719
    %923 = vmatpush.bf16.msra.mxu0 %v711
    %924 = vmatmul.bf16.gmra.mxu0 %v116
    %v925 = vpop.f32.mrf.mxu0
    %v926 = vadd.f32 %v913, %v925
    %v927 = vpop.f32.mrf.mxu0
    %928 = vdwg.mxu0
    %929 = vmatpush.bf16.msra.mxu0 %v704
    %930 = vmatpush.bf16.msra.mxu0 %v696
    %931 = vmatpush.bf16.msra.mxu0 %v688
    %932 = vmatpush.bf16.msra.mxu0 %v680
    %933 = vmatpush.bf16.msra.mxu0 %v672
    %934 = vmatpush.bf16.msra.mxu0 %v664
    %935 = vmatpush.bf16.msra.mxu0 %v656
    %936 = vmatpush.bf16.msra.mxu0 %v648
    %937 = vmatmul.bf16.gmra.mxu0 %v115
    %v938 = vpop.f32.mrf.mxu0
    %v939 = vadd.f32 %v248, %v938
    %v940 = vpop.f32.mrf.mxu0
    %941 = vdwg.mxu0
    %942 = vmatpush.bf16.msra.mxu0 %v768
    %943 = vmatpush.bf16.msra.mxu0 %v760
    %944 = vmatpush.bf16.msra.mxu0 %v752
    %945 = vmatpush.bf16.msra.mxu0 %v744
    %946 = vmatpush.bf16.msra.mxu0 %v736
    %947 = vmatpush.bf16.msra.mxu0 %v728
    %948 = vmatpush.bf16.msra.mxu0 %v720
    %949 = vmatpush.bf16.msra.mxu0 %v712
    %950 = vmatmul.bf16.gmra.mxu0 %v116
    %v951 = vpop.f32.mrf.mxu0
    %v952 = vadd.f32 %v939, %v951
    %v953 = vpop.f32.mrf.mxu0
    %954 = vdwg.mxu0
    %955 = vmatpush.bf16.msra.mxu0 %v705
    %956 = vmatpush.bf16.msra.mxu0 %v697
    %957 = vmatpush.bf16.msra.mxu0 %v689
    %958 = vmatpush.bf16.msra.mxu0 %v681
    %959 = vmatpush.bf16.msra.mxu0 %v673
    %960 = vmatpush.bf16.msra.mxu0 %v665
    %961 = vmatpush.bf16.msra.mxu0 %v657
    %962 = vmatpush.bf16.msra.mxu0 %v649
    %963 = vmatmul.bf16.gmra.mxu0 %v115
    %v964 = vpop.f32.mrf.mxu0
    %v965 = vadd.f32 %v249, %v964
    %v966 = vpop.f32.mrf.mxu0
    %967 = vdwg.mxu0
    %968 = vmatpush.bf16.msra.mxu0 %v769
    %969 = vmatpush.bf16.msra.mxu0 %v761
    %970 = vmatpush.bf16.msra.mxu0 %v753
    %971 = vmatpush.bf16.msra.mxu0 %v745
    %972 = vmatpush.bf16.msra.mxu0 %v737
    %973 = vmatpush.bf16.msra.mxu0 %v729
    %974 = vmatpush.bf16.msra.mxu0 %v721
    %975 = vmatpush.bf16.msra.mxu0 %v713
    %976 = vmatmul.bf16.gmra.mxu0 %v116
    %v977 = vpop.f32.mrf.mxu0
    %v978 = vadd.f32 %v965, %v977
    %v979 = vpop.f32.mrf.mxu0
    %980 = vdwg.mxu0
    %981 = vmatpush.bf16.msra.mxu0 %v706
    %982 = vmatpush.bf16.msra.mxu0 %v698
    %983 = vmatpush.bf16.msra.mxu0 %v690
    %984 = vmatpush.bf16.msra.mxu0 %v682
    %985 = vmatpush.bf16.msra.mxu0 %v674
    %986 = vmatpush.bf16.msra.mxu0 %v666
    %987 = vmatpush.bf16.msra.mxu0 %v658
    %988 = vmatpush.bf16.msra.mxu0 %v650
    %989 = vmatmul.bf16.gmra.mxu0 %v115
    %v990 = vpop.f32.mrf.mxu0
    %v991 = vadd.f32 %v250, %v990
    %v992 = vpop.f32.mrf.mxu0
    %993 = vdwg.mxu0
    %994 = vmatpush.bf16.msra.mxu0 %v770
    %995 = vmatpush.bf16.msra.mxu0 %v762
    %996 = vmatpush.bf16.msra.mxu0 %v754
    %997 = vmatpush.bf16.msra.mxu0 %v746
    %998 = vmatpush.bf16.msra.mxu0 %v738
    %999 = vmatpush.bf16.msra.mxu0 %v730
    %1000 = vmatpush.bf16.msra.mxu0 %v722
    %1001 = vmatpush.bf16.msra.mxu0 %v714
    %1002 = vmatmul.bf16.gmra.mxu0 %v116
    %v1003 = vpop.f32.mrf.mxu0
    %v1004 = vadd.f32 %v991, %v1003
    %v1005 = vpop.f32.mrf.mxu0
    %1006 = vdwg.mxu0
    %1007 = vmatpush.bf16.msra.mxu0 %v707
    %1008 = vmatpush.bf16.msra.mxu0 %v699
    %1009 = vmatpush.bf16.msra.mxu0 %v691
    %1010 = vmatpush.bf16.msra.mxu0 %v683
    %1011 = vmatpush.bf16.msra.mxu0 %v675
    %1012 = vmatpush.bf16.msra.mxu0 %v667
    %1013 = vmatpush.bf16.msra.mxu0 %v659
    %1014 = vmatpush.bf16.msra.mxu0 %v651
    %1015 = vmatmul.bf16.gmra.mxu0 %v115
    %v1016 = vpop.f32.mrf.mxu0
    %v1017 = vadd.f32 %v251, %v1016
    %v1018 = vpop.f32.mrf.mxu0
    %1019 = vdwg.mxu0
    %1020 = vmatpush.bf16.msra.mxu0 %v771
    %1021 = vmatpush.bf16.msra.mxu0 %v763
    %1022 = vmatpush.bf16.msra.mxu0 %v755
    %1023 = vmatpush.bf16.msra.mxu0 %v747
    %1024 = vmatpush.bf16.msra.mxu0 %v739
    %1025 = vmatpush.bf16.msra.mxu0 %v731
    %1026 = vmatpush.bf16.msra.mxu0 %v723
    %1027 = vmatpush.bf16.msra.mxu0 %v715
    %1028 = vmatmul.bf16.gmra.mxu0 %v116
    %v1029 = vpop.f32.mrf.mxu0
    %v1030 = vadd.f32 %v1017, %v1029
    %v1031 = vpop.f32.mrf.mxu0
    %1032 = vdwg.mxu0
    %1033 = vmatpush.bf16.msra.mxu0 %v708
    %1034 = vmatpush.bf16.msra.mxu0 %v700
    %1035 = vmatpush.bf16.msra.mxu0 %v692
    %1036 = vmatpush.bf16.msra.mxu0 %v684
    %1037 = vmatpush.bf16.msra.mxu0 %v676
    %1038 = vmatpush.bf16.msra.mxu0 %v668
    %1039 = vmatpush.bf16.msra.mxu0 %v660
    %1040 = vmatpush.bf16.msra.mxu0 %v652
    %1041 = vmatmul.bf16.gmra.mxu0 %v115
    %v1042 = vpop.f32.mrf.mxu0
    %v1043 = vadd.f32 %v252, %v1042
    %v1044 = vpop.f32.mrf.mxu0
    %1045 = vdwg.mxu0
    %1046 = vmatpush.bf16.msra.mxu0 %v772
    %1047 = vmatpush.bf16.msra.mxu0 %v764
    %1048 = vmatpush.bf16.msra.mxu0 %v756
    %1049 = vmatpush.bf16.msra.mxu0 %v748
    %1050 = vmatpush.bf16.msra.mxu0 %v740
    %1051 = vmatpush.bf16.msra.mxu0 %v732
    %1052 = vmatpush.bf16.msra.mxu0 %v724
    %1053 = vmatpush.bf16.msra.mxu0 %v716
    %1054 = vmatmul.bf16.gmra.mxu0 %v116
    %v1055 = vpop.f32.mrf.mxu0
    %v1056 = vadd.f32 %v1043, %v1055
    %v1057 = vpop.f32.mrf.mxu0
    %1058 = vdwg.mxu0
    %1059 = vmatpush.bf16.msra.mxu0 %v709
    %1060 = vmatpush.bf16.msra.mxu0 %v701
    %1061 = vmatpush.bf16.msra.mxu0 %v693
    %1062 = vmatpush.bf16.msra.mxu0 %v685
    %1063 = vmatpush.bf16.msra.mxu0 %v677
    %1064 = vmatpush.bf16.msra.mxu0 %v669
    %1065 = vmatpush.bf16.msra.mxu0 %v661
    %1066 = vmatpush.bf16.msra.mxu0 %v653
    %1067 = vmatmul.bf16.gmra.mxu0 %v115
    %v1068 = vpop.f32.mrf.mxu0
    %v1069 = vadd.f32 %v253, %v1068
    %v1070 = vpop.f32.mrf.mxu0
    %1071 = vdwg.mxu0
    %1072 = vmatpush.bf16.msra.mxu0 %v773
    %1073 = vmatpush.bf16.msra.mxu0 %v765
    %1074 = vmatpush.bf16.msra.mxu0 %v757
    %1075 = vmatpush.bf16.msra.mxu0 %v749
    %1076 = vmatpush.bf16.msra.mxu0 %v741
    %1077 = vmatpush.bf16.msra.mxu0 %v733
    %1078 = vmatpush.bf16.msra.mxu0 %v725
    %1079 = vmatpush.bf16.msra.mxu0 %v717
    %1080 = vmatmul.bf16.gmra.mxu0 %v116
    %v1081 = vpop.f32.mrf.mxu0
    %v1082 = vadd.f32 %v1069, %v1081
    %v1083 = vpop.f32.mrf.mxu0
    %1084 = vdwg.mxu0
    %1085 = vmatpush.bf16.msra.mxu0 %v710
    %1086 = vmatpush.bf16.msra.mxu0 %v702
    %1087 = vmatpush.bf16.msra.mxu0 %v694
    %1088 = vmatpush.bf16.msra.mxu0 %v686
    %1089 = vmatpush.bf16.msra.mxu0 %v678
    %1090 = vmatpush.bf16.msra.mxu0 %v670
    %1091 = vmatpush.bf16.msra.mxu0 %v662
    %1092 = vmatpush.bf16.msra.mxu0 %v654
    %1093 = vmatmul.bf16.gmra.mxu0 %v115
    %v1094 = vpop.f32.mrf.mxu0
    %v1095 = vadd.f32 %v254, %v1094
    %v1096 = vpop.f32.mrf.mxu0
    %1097 = vdwg.mxu0
    %1098 = vmatpush.bf16.msra.mxu0 %v774
    %1099 = vmatpush.bf16.msra.mxu0 %v766
    %1100 = vmatpush.bf16.msra.mxu0 %v758
    %1101 = vmatpush.bf16.msra.mxu0 %v750
    %1102 = vmatpush.bf16.msra.mxu0 %v742
    %1103 = vmatpush.bf16.msra.mxu0 %v734
    %1104 = vmatpush.bf16.msra.mxu0 %v726
    %1105 = vmatpush.bf16.msra.mxu0 %v718
    %1106 = vmatmul.bf16.gmra.mxu0 %v116
    %v1107 = vpop.f32.mrf.mxu0
    %v1108 = vadd.f32 %v1095, %v1107
    %v1109 = vpop.f32.mrf.mxu0
    %1110 = vdwg.mxu0
    %v1111 = vmax.f32 %v926, 0.0
    %v1112 = vmax.f32 %v952, 0.0
    %v1113 = vmax.f32 %v978, 0.0
    %v1114 = vmax.f32 %v1004, 0.0
    %v1115 = vmax.f32 %v1030, 0.0
    %v1116 = vmax.f32 %v1056, 0.0
    %v1117 = vmax.f32 %v1082, 0.0
    %v1118 = vmax.f32 %v1108, 0.0
    %v1119 = vpack.c.bf16 %v1111, %v1111
    %v1120 = vpack.c.bf16 %v1112, %v1112
    %v1121 = vpack.c.bf16 %v1113, %v1113
    %v1122 = vpack.c.bf16 %v1114, %v1114
    %v1123 = vpack.c.bf16 %v1115, %v1115
    %v1124 = vpack.c.bf16 %v1116, %v1116
    %v1125 = vpack.c.bf16 %v1117, %v1117
    %v1126 = vpack.c.bf16 %v1118, %v1118
    %v1127 = vld [vmem:[#allocation8] sm:$0xff]
    %v1128 = vld [vmem:[#allocation8 + $0x8] sm:$0xff]
    %v1129 = vld [vmem:[#allocation8 + $0x10] sm:$0xff]
    %v1130 = vld [vmem:[#allocation8 + $0x18] sm:$0xff]
    %v1131 = vld [vmem:[#allocation8 + $0x20] sm:$0xff]
    %v1132 = vld [vmem:[#allocation8 + $0x28] sm:$0xff]
    %v1133 = vld [vmem:[#allocation8 + $0x30] sm:$0xff]
    %v1134 = vld [vmem:[#allocation8 + $0x38] sm:$0xff]
    %v1135 = vld [vmem:[#allocation8 + $0x40] sm:$0xff]
    %v1136 = vld [vmem:[#allocation8 + $0x48] sm:$0xff]
    %v1137 = vld [vmem:[#allocation8 + $0x50] sm:$0xff]
    %v1138 = vld [vmem:[#allocation8 + $0x58] sm:$0xff]
    %v1139 = vld [vmem:[#allocation8 + $0x60] sm:$0xff]
    %v1140 = vld [vmem:[#allocation8 + $0x68] sm:$0xff]
    %v1141 = vld [vmem:[#allocation8 + $0x70] sm:$0xff]
    %v1142 = vld [vmem:[#allocation8 + $0x78] sm:$0xff]
    %v1143 = vld [vmem:[#allocation8 + $0x80] sm:$0xff]
    %v1144 = vld [vmem:[#allocation8 + $0x88] sm:$0xff]
    %v1145 = vld [vmem:[#allocation8 + $0x90] sm:$0xff]
    %v1146 = vld [vmem:[#allocation8 + $0x98] sm:$0xff]
    %v1147 = vld [vmem:[#allocation8 + $0xa0] sm:$0xff]
    %v1148 = vld [vmem:[#allocation8 + $0xa8] sm:$0xff]
    %v1149 = vld [vmem:[#allocation8 + $0xb0] sm:$0xff]
    %v1150 = vld [vmem:[#allocation8 + $0xb8] sm:$0xff]
    %v1151 = vld [vmem:[#allocation8 + $0xc0] sm:$0xff]
    %v1152 = vld [vmem:[#allocation8 + $0xc8] sm:$0xff]
    %v1153 = vld [vmem:[#allocation8 + $0xd0] sm:$0xff]
    %v1154 = vld [vmem:[#allocation8 + $0xd8] sm:$0xff]
    %v1155 = vld [vmem:[#allocation8 + $0xe0] sm:$0xff]
    %v1156 = vld [vmem:[#allocation8 + $0xe8] sm:$0xff]
    %v1157 = vld [vmem:[#allocation8 + $0xf0] sm:$0xff]
    %v1158 = vld [vmem:[#allocation8 + $0xf8] sm:$0xff]
    %v1159 = vld [vmem:[#allocation8 + $0x100] sm:$0xff]
    %v1160 = vld [vmem:[#allocation8 + $0x108] sm:$0xff]
    %v1161 = vld [vmem:[#allocation8 + $0x110] sm:$0xff]
    %v1162 = vld [vmem:[#allocation8 + $0x118] sm:$0xff]
    %v1163 = vld [vmem:[#allocation8 + $0x120] sm:$0xff]
    %v1164 = vld [vmem:[#allocation8 + $0x128] sm:$0xff]
    %v1165 = vld [vmem:[#allocation8 + $0x130] sm:$0xff]
    %v1166 = vld [vmem:[#allocation8 + $0x138] sm:$0xff]
    %v1167 = vld [vmem:[#allocation8 + $0x140] sm:$0xff]
    %v1168 = vld [vmem:[#allocation8 + $0x148] sm:$0xff]
    %v1169 = vld [vmem:[#allocation8 + $0x150] sm:$0xff]
    %v1170 = vld [vmem:[#allocation8 + $0x158] sm:$0xff]
    %v1171 = vld [vmem:[#allocation8 + $0x160] sm:$0xff]
    %v1172 = vld [vmem:[#allocation8 + $0x168] sm:$0xff]
    %v1173 = vld [vmem:[#allocation8 + $0x170] sm:$0xff]
    %v1174 = vld [vmem:[#allocation8 + $0x178] sm:$0xff]
    %v1175 = vld [vmem:[#allocation8 + $0x180] sm:$0xff]
    %v1176 = vld [vmem:[#allocation8 + $0x188] sm:$0xff]
    %v1177 = vld [vmem:[#allocation8 + $0x190] sm:$0xff]
    %v1178 = vld [vmem:[#allocation8 + $0x198] sm:$0xff]
    %v1179 = vld [vmem:[#allocation8 + $0x1a0] sm:$0xff]
    %v1180 = vld [vmem:[#allocation8 + $0x1a8] sm:$0xff]
    %v1181 = vld [vmem:[#allocation8 + $0x1b0] sm:$0xff]
    %v1182 = vld [vmem:[#allocation8 + $0x1b8] sm:$0xff]
    %v1183 = vld [vmem:[#allocation8 + $0x1c0] sm:$0xff]
    %v1184 = vld [vmem:[#allocation8 + $0x1c8] sm:$0xff]
    %v1185 = vld [vmem:[#allocation8 + $0x1d0] sm:$0xff]
    %v1186 = vld [vmem:[#allocation8 + $0x1d8] sm:$0xff]
    %v1187 = vld [vmem:[#allocation8 + $0x1e0] sm:$0xff]
    %v1188 = vld [vmem:[#allocation8 + $0x1e8] sm:$0xff]
    %v1189 = vld [vmem:[#allocation8 + $0x1f0] sm:$0xff]
    %v1190 = vld [vmem:[#allocation8 + $0x1f8] sm:$0xff]
    %v1191 = vld [vmem:[#allocation8 + $0x200] sm:$0xff]
    %v1192 = vld [vmem:[#allocation8 + $0x208] sm:$0xff]
    %v1193 = vld [vmem:[#allocation8 + $0x210] sm:$0xff]
    %v1194 = vld [vmem:[#allocation8 + $0x218] sm:$0xff]
    %v1195 = vld [vmem:[#allocation8 + $0x220] sm:$0xff]
    %v1196 = vld [vmem:[#allocation8 + $0x228] sm:$0xff]
    %v1197 = vld [vmem:[#allocation8 + $0x230] sm:$0xff]
    %v1198 = vld [vmem:[#allocation8 + $0x238] sm:$0xff]
    %v1199 = vld [vmem:[#allocation8 + $0x240] sm:$0xff]
    %v1200 = vld [vmem:[#allocation8 + $0x248] sm:$0xff]
    %v1201 = vld [vmem:[#allocation8 + $0x250] sm:$0xff]
    %v1202 = vld [vmem:[#allocation8 + $0x258] sm:$0xff]
    %v1203 = vld [vmem:[#allocation8 + $0x260] sm:$0xff]
    %v1204 = vld [vmem:[#allocation8 + $0x268] sm:$0xff]
    %v1205 = vld [vmem:[#allocation8 + $0x270] sm:$0xff]
    %v1206 = vld [vmem:[#allocation8 + $0x278] sm:$0xff]
    %v1207 = vld [vmem:[#allocation8 + $0x280] sm:$0xff]
    %v1208 = vld [vmem:[#allocation8 + $0x288] sm:$0xff]
    %v1209 = vld [vmem:[#allocation8 + $0x290] sm:$0xff]
    %v1210 = vld [vmem:[#allocation8 + $0x298] sm:$0xff]
    %v1211 = vld [vmem:[#allocation8 + $0x2a0] sm:$0xff]
    %v1212 = vld [vmem:[#allocation8 + $0x2a8] sm:$0xff]
    %v1213 = vld [vmem:[#allocation8 + $0x2b0] sm:$0xff]
    %v1214 = vld [vmem:[#allocation8 + $0x2b8] sm:$0xff]
    %v1215 = vld [vmem:[#allocation8 + $0x2c0] sm:$0xff]
    %v1216 = vld [vmem:[#allocation8 + $0x2c8] sm:$0xff]
    %v1217 = vld [vmem:[#allocation8 + $0x2d0] sm:$0xff]
    %v1218 = vld [vmem:[#allocation8 + $0x2d8] sm:$0xff]
    %v1219 = vld [vmem:[#allocation8 + $0x2e0] sm:$0xff]
    %v1220 = vld [vmem:[#allocation8 + $0x2e8] sm:$0xff]
    %v1221 = vld [vmem:[#allocation8 + $0x2f0] sm:$0xff]
    %v1222 = vld [vmem:[#allocation8 + $0x2f8] sm:$0xff]
    %v1223 = vld [vmem:[#allocation8 + $0x300] sm:$0xff]
    %v1224 = vld [vmem:[#allocation8 + $0x308] sm:$0xff]
    %v1225 = vld [vmem:[#allocation8 + $0x310] sm:$0xff]
    %v1226 = vld [vmem:[#allocation8 + $0x318] sm:$0xff]
    %v1227 = vld [vmem:[#allocation8 + $0x320] sm:$0xff]
    %v1228 = vld [vmem:[#allocation8 + $0x328] sm:$0xff]
    %v1229 = vld [vmem:[#allocation8 + $0x330] sm:$0xff]
    %v1230 = vld [vmem:[#allocation8 + $0x338] sm:$0xff]
    %v1231 = vld [vmem:[#allocation8 + $0x340] sm:$0xff]
    %v1232 = vld [vmem:[#allocation8 + $0x348] sm:$0xff]
    %v1233 = vld [vmem:[#allocation8 + $0x350] sm:$0xff]
    %v1234 = vld [vmem:[#allocation8 + $0x358] sm:$0xff]
    %v1235 = vld [vmem:[#allocation8 + $0x360] sm:$0xff]
    %v1236 = vld [vmem:[#allocation8 + $0x368] sm:$0xff]
    %v1237 = vld [vmem:[#allocation8 + $0x370] sm:$0xff]
    %v1238 = vld [vmem:[#allocation8 + $0x378] sm:$0xff]
    %v1239 = vld [vmem:[#allocation8 + $0x380] sm:$0xff]
    %v1240 = vld [vmem:[#allocation8 + $0x388] sm:$0xff]
    %v1241 = vld [vmem:[#allocation8 + $0x390] sm:$0xff]
    %v1242 = vld [vmem:[#allocation8 + $0x398] sm:$0xff]
    %v1243 = vld [vmem:[#allocation8 + $0x3a0] sm:$0xff]
    %v1244 = vld [vmem:[#allocation8 + $0x3a8] sm:$0xff]
    %v1245 = vld [vmem:[#allocation8 + $0x3b0] sm:$0xff]
    %v1246 = vld [vmem:[#allocation8 + $0x3b8] sm:$0xff]
    %v1247 = vld [vmem:[#allocation8 + $0x3c0] sm:$0xff]
    %v1248 = vld [vmem:[#allocation8 + $0x3c8] sm:$0xff]
    %v1249 = vld [vmem:[#allocation8 + $0x3d0] sm:$0xff]
    %v1250 = vld [vmem:[#allocation8 + $0x3d8] sm:$0xff]
    %v1251 = vld [vmem:[#allocation8 + $0x3e0] sm:$0xff]
    %v1252 = vld [vmem:[#allocation8 + $0x3e8] sm:$0xff]
    %v1253 = vld [vmem:[#allocation8 + $0x3f0] sm:$0xff]
    %v1254 = vld [vmem:[#allocation8 + $0x3f8] sm:$0xff]
    %v1255 = vld [vmem:[#allocation8 + $0x400] sm:$0xff]
    %v1256 = vld [vmem:[#allocation8 + $0x408] sm:$0xff]
    %v1257 = vld [vmem:[#allocation8 + $0x410] sm:$0xff]
    %v1258 = vld [vmem:[#allocation8 + $0x418] sm:$0xff]
    %v1259 = vld [vmem:[#allocation8 + $0x420] sm:$0xff]
    %v1260 = vld [vmem:[#allocation8 + $0x428] sm:$0xff]
    %v1261 = vld [vmem:[#allocation8 + $0x430] sm:$0xff]
    %v1262 = vld [vmem:[#allocation8 + $0x438] sm:$0xff]
    %v1263 = vld [vmem:[#allocation8 + $0x440] sm:$0xff]
    %v1264 = vld [vmem:[#allocation8 + $0x448] sm:$0xff]
    %v1265 = vld [vmem:[#allocation8 + $0x450] sm:$0xff]
    %v1266 = vld [vmem:[#allocation8 + $0x458] sm:$0xff]
    %v1267 = vld [vmem:[#allocation8 + $0x460] sm:$0xff]
    %v1268 = vld [vmem:[#allocation8 + $0x468] sm:$0xff]
    %v1269 = vld [vmem:[#allocation8 + $0x470] sm:$0xff]
    %v1270 = vld [vmem:[#allocation8 + $0x478] sm:$0xff]
    %v1271 = vld [vmem:[#allocation8 + $0x480] sm:$0xff]
    %v1272 = vld [vmem:[#allocation8 + $0x488] sm:$0xff]
    %v1273 = vld [vmem:[#allocation8 + $0x490] sm:$0xff]
    %v1274 = vld [vmem:[#allocation8 + $0x498] sm:$0xff]
    %v1275 = vld [vmem:[#allocation8 + $0x4a0] sm:$0xff]
    %v1276 = vld [vmem:[#allocation8 + $0x4a8] sm:$0xff]
    %v1277 = vld [vmem:[#allocation8 + $0x4b0] sm:$0xff]
    %v1278 = vld [vmem:[#allocation8 + $0x4b8] sm:$0xff]
    %v1279 = vld [vmem:[#allocation8 + $0x4c0] sm:$0xff]
    %v1280 = vld [vmem:[#allocation8 + $0x4c8] sm:$0xff]
    %v1281 = vld [vmem:[#allocation8 + $0x4d0] sm:$0xff]
    %v1282 = vld [vmem:[#allocation8 + $0x4d8] sm:$0xff]
    %v1283 = vld [vmem:[#allocation8 + $0x4e0] sm:$0xff]
    %v1284 = vld [vmem:[#allocation8 + $0x4e8] sm:$0xff]
    %v1285 = vld [vmem:[#allocation8 + $0x4f0] sm:$0xff]
    %v1286 = vld [vmem:[#allocation8 + $0x4f8] sm:$0xff]
    %v1287 = vld [vmem:[#allocation8 + $0x500] sm:$0xff]
    %v1288 = vld [vmem:[#allocation8 + $0x508] sm:$0xff]
    %v1289 = vld [vmem:[#allocation8 + $0x510] sm:$0xff]
    %v1290 = vld [vmem:[#allocation8 + $0x518] sm:$0xff]
    %v1291 = vld [vmem:[#allocation8 + $0x520] sm:$0xff]
    %v1292 = vld [vmem:[#allocation8 + $0x528] sm:$0xff]
    %v1293 = vld [vmem:[#allocation8 + $0x530] sm:$0xff]
    %v1294 = vld [vmem:[#allocation8 + $0x538] sm:$0xff]
    %v1295 = vld [vmem:[#allocation8 + $0x540] sm:$0xff]
    %v1296 = vld [vmem:[#allocation8 + $0x548] sm:$0xff]
    %v1297 = vld [vmem:[#allocation8 + $0x550] sm:$0xff]
    %v1298 = vld [vmem:[#allocation8 + $0x558] sm:$0xff]
    %v1299 = vld [vmem:[#allocation8 + $0x560] sm:$0xff]
    %v1300 = vld [vmem:[#allocation8 + $0x568] sm:$0xff]
    %v1301 = vld [vmem:[#allocation8 + $0x570] sm:$0xff]
    %v1302 = vld [vmem:[#allocation8 + $0x578] sm:$0xff]
    %v1303 = vld [vmem:[#allocation8 + $0x580] sm:$0xff]
    %v1304 = vld [vmem:[#allocation8 + $0x588] sm:$0xff]
    %v1305 = vld [vmem:[#allocation8 + $0x590] sm:$0xff]
    %v1306 = vld [vmem:[#allocation8 + $0x598] sm:$0xff]
    %v1307 = vld [vmem:[#allocation8 + $0x5a0] sm:$0xff]
    %v1308 = vld [vmem:[#allocation8 + $0x5a8] sm:$0xff]
    %v1309 = vld [vmem:[#allocation8 + $0x5b0] sm:$0xff]
    %v1310 = vld [vmem:[#allocation8 + $0x5b8] sm:$0xff]
    %v1311 = vld [vmem:[#allocation8 + $0x5c0] sm:$0xff]
    %v1312 = vld [vmem:[#allocation8 + $0x5c8] sm:$0xff]
    %v1313 = vld [vmem:[#allocation8 + $0x5d0] sm:$0xff]
    %v1314 = vld [vmem:[#allocation8 + $0x5d8] sm:$0xff]
    %v1315 = vld [vmem:[#allocation8 + $0x5e0] sm:$0xff]
    %v1316 = vld [vmem:[#allocation8 + $0x5e8] sm:$0xff]
    %v1317 = vld [vmem:[#allocation8 + $0x5f0] sm:$0xff]
    %v1318 = vld [vmem:[#allocation8 + $0x5f8] sm:$0xff]
    %v1319 = vld [vmem:[#allocation8 + $0x600] sm:$0xff]
    %v1320 = vld [vmem:[#allocation8 + $0x608] sm:$0xff]
    %v1321 = vld [vmem:[#allocation8 + $0x610] sm:$0xff]
    %v1322 = vld [vmem:[#allocation8 + $0x618] sm:$0xff]
    %v1323 = vld [vmem:[#allocation8 + $0x620] sm:$0xff]
    %v1324 = vld [vmem:[#allocation8 + $0x628] sm:$0xff]
    %v1325 = vld [vmem:[#allocation8 + $0x630] sm:$0xff]
    %v1326 = vld [vmem:[#allocation8 + $0x638] sm:$0xff]
    %v1327 = vld [vmem:[#allocation8 + $0x640] sm:$0xff]
    %v1328 = vld [vmem:[#allocation8 + $0x648] sm:$0xff]
    %v1329 = vld [vmem:[#allocation8 + $0x650] sm:$0xff]
    %v1330 = vld [vmem:[#allocation8 + $0x658] sm:$0xff]
    %v1331 = vld [vmem:[#allocation8 + $0x660] sm:$0xff]
    %v1332 = vld [vmem:[#allocation8 + $0x668] sm:$0xff]
    %v1333 = vld [vmem:[#allocation8 + $0x670] sm:$0xff]
    %v1334 = vld [vmem:[#allocation8 + $0x678] sm:$0xff]
    %v1335 = vld [vmem:[#allocation8 + $0x680] sm:$0xff]
    %v1336 = vld [vmem:[#allocation8 + $0x688] sm:$0xff]
    %v1337 = vld [vmem:[#allocation8 + $0x690] sm:$0xff]
    %v1338 = vld [vmem:[#allocation8 + $0x698] sm:$0xff]
    %v1339 = vld [vmem:[#allocation8 + $0x6a0] sm:$0xff]
    %v1340 = vld [vmem:[#allocation8 + $0x6a8] sm:$0xff]
    %v1341 = vld [vmem:[#allocation8 + $0x6b0] sm:$0xff]
    %v1342 = vld [vmem:[#allocation8 + $0x6b8] sm:$0xff]
    %v1343 = vld [vmem:[#allocation8 + $0x6c0] sm:$0xff]
    %v1344 = vld [vmem:[#allocation8 + $0x6c8] sm:$0xff]
    %v1345 = vld [vmem:[#allocation8 + $0x6d0] sm:$0xff]
    %v1346 = vld [vmem:[#allocation8 + $0x6d8] sm:$0xff]
    %v1347 = vld [vmem:[#allocation8 + $0x6e0] sm:$0xff]
    %v1348 = vld [vmem:[#allocation8 + $0x6e8] sm:$0xff]
    %v1349 = vld [vmem:[#allocation8 + $0x6f0] sm:$0xff]
    %v1350 = vld [vmem:[#allocation8 + $0x6f8] sm:$0xff]
    %v1351 = vld [vmem:[#allocation8 + $0x700] sm:$0xff]
    %v1352 = vld [vmem:[#allocation8 + $0x708] sm:$0xff]
    %v1353 = vld [vmem:[#allocation8 + $0x710] sm:$0xff]
    %v1354 = vld [vmem:[#allocation8 + $0x718] sm:$0xff]
    %v1355 = vld [vmem:[#allocation8 + $0x720] sm:$0xff]
    %v1356 = vld [vmem:[#allocation8 + $0x728] sm:$0xff]
    %v1357 = vld [vmem:[#allocation8 + $0x730] sm:$0xff]
    %v1358 = vld [vmem:[#allocation8 + $0x738] sm:$0xff]
    %v1359 = vld [vmem:[#allocation8 + $0x740] sm:$0xff]
    %v1360 = vld [vmem:[#allocation8 + $0x748] sm:$0xff]
    %v1361 = vld [vmem:[#allocation8 + $0x750] sm:$0xff]
    %v1362 = vld [vmem:[#allocation8 + $0x758] sm:$0xff]
    %v1363 = vld [vmem:[#allocation8 + $0x760] sm:$0xff]
    %v1364 = vld [vmem:[#allocation8 + $0x768] sm:$0xff]
    %v1365 = vld [vmem:[#allocation8 + $0x770] sm:$0xff]
    %v1366 = vld [vmem:[#allocation8 + $0x778] sm:$0xff]
    %v1367 = vld [vmem:[#allocation8 + $0x780] sm:$0xff]
    %v1368 = vld [vmem:[#allocation8 + $0x788] sm:$0xff]
    %v1369 = vld [vmem:[#allocation8 + $0x790] sm:$0xff]
    %v1370 = vld [vmem:[#allocation8 + $0x798] sm:$0xff]
    %v1371 = vld [vmem:[#allocation8 + $0x7a0] sm:$0xff]
    %v1372 = vld [vmem:[#allocation8 + $0x7a8] sm:$0xff]
    %v1373 = vld [vmem:[#allocation8 + $0x7b0] sm:$0xff]
    %v1374 = vld [vmem:[#allocation8 + $0x7b8] sm:$0xff]
    %v1375 = vld [vmem:[#allocation8 + $0x7c0] sm:$0xff]
    %v1376 = vld [vmem:[#allocation8 + $0x7c8] sm:$0xff]
    %v1377 = vld [vmem:[#allocation8 + $0x7d0] sm:$0xff]
    %v1378 = vld [vmem:[#allocation8 + $0x7d8] sm:$0xff]
    %v1379 = vld [vmem:[#allocation8 + $0x7e0] sm:$0xff]
    %v1380 = vld [vmem:[#allocation8 + $0x7e8] sm:$0xff]
    %v1381 = vld [vmem:[#allocation8 + $0x7f0] sm:$0xff]
    %v1382 = vld [vmem:[#allocation8 + $0x7f8] sm:$0xff]
    %v1383 = vld [vmem:[#allocation8 + $0x800] sm:$0xff]
    %v1384 = vld [vmem:[#allocation8 + $0x808] sm:$0xff]
    %v1385 = vld [vmem:[#allocation8 + $0x810] sm:$0xff]
    %v1386 = vld [vmem:[#allocation8 + $0x818] sm:$0xff]
    %v1387 = vld [vmem:[#allocation8 + $0x820] sm:$0xff]
    %v1388 = vld [vmem:[#allocation8 + $0x828] sm:$0xff]
    %v1389 = vld [vmem:[#allocation8 + $0x830] sm:$0xff]
    %v1390 = vld [vmem:[#allocation8 + $0x838] sm:$0xff]
    %v1391 = vld [vmem:[#allocation8 + $0x840] sm:$0xff]
    %v1392 = vld [vmem:[#allocation8 + $0x848] sm:$0xff]
    %v1393 = vld [vmem:[#allocation8 + $0x850] sm:$0xff]
    %v1394 = vld [vmem:[#allocation8 + $0x858] sm:$0xff]
    %v1395 = vld [vmem:[#allocation8 + $0x860] sm:$0xff]
    %v1396 = vld [vmem:[#allocation8 + $0x868] sm:$0xff]
    %v1397 = vld [vmem:[#allocation8 + $0x870] sm:$0xff]
    %v1398 = vld [vmem:[#allocation8 + $0x878] sm:$0xff]
    %v1399 = vld [vmem:[#allocation8 + $0x880] sm:$0xff]
    %v1400 = vld [vmem:[#allocation8 + $0x888] sm:$0xff]
    %v1401 = vld [vmem:[#allocation8 + $0x890] sm:$0xff]
    %v1402 = vld [vmem:[#allocation8 + $0x898] sm:$0xff]
    %v1403 = vld [vmem:[#allocation8 + $0x8a0] sm:$0xff]
    %v1404 = vld [vmem:[#allocation8 + $0x8a8] sm:$0xff]
    %v1405 = vld [vmem:[#allocation8 + $0x8b0] sm:$0xff]
    %v1406 = vld [vmem:[#allocation8 + $0x8b8] sm:$0xff]
    %v1407 = vld [vmem:[#allocation8 + $0x8c0] sm:$0xff]
    %v1408 = vld [vmem:[#allocation8 + $0x8c8] sm:$0xff]
    %v1409 = vld [vmem:[#allocation8 + $0x8d0] sm:$0xff]
    %v1410 = vld [vmem:[#allocation8 + $0x8d8] sm:$0xff]
    %v1411 = vld [vmem:[#allocation8 + $0x8e0] sm:$0xff]
    %v1412 = vld [vmem:[#allocation8 + $0x8e8] sm:$0xff]
    %v1413 = vld [vmem:[#allocation8 + $0x8f0] sm:$0xff]
    %v1414 = vld [vmem:[#allocation8 + $0x8f8] sm:$0xff]
    %v1415 = vld [vmem:[#allocation8 + $0x900] sm:$0xff]
    %v1416 = vld [vmem:[#allocation8 + $0x908] sm:$0xff]
    %v1417 = vld [vmem:[#allocation8 + $0x910] sm:$0xff]
    %v1418 = vld [vmem:[#allocation8 + $0x918] sm:$0xff]
    %v1419 = vld [vmem:[#allocation8 + $0x920] sm:$0xff]
    %v1420 = vld [vmem:[#allocation8 + $0x928] sm:$0xff]
    %v1421 = vld [vmem:[#allocation8 + $0x930] sm:$0xff]
    %v1422 = vld [vmem:[#allocation8 + $0x938] sm:$0xff]
    %v1423 = vld [vmem:[#allocation8 + $0x940] sm:$0xff]
    %v1424 = vld [vmem:[#allocation8 + $0x948] sm:$0xff]
    %v1425 = vld [vmem:[#allocation8 + $0x950] sm:$0xff]
    %v1426 = vld [vmem:[#allocation8 + $0x958] sm:$0xff]
    %v1427 = vld [vmem:[#allocation8 + $0x960] sm:$0xff]
    %v1428 = vld [vmem:[#allocation8 + $0x968] sm:$0xff]
    %v1429 = vld [vmem:[#allocation8 + $0x970] sm:$0xff]
    %v1430 = vld [vmem:[#allocation8 + $0x978] sm:$0xff]
    %v1431 = vld [vmem:[#allocation8 + $0x980] sm:$0xff]
    %v1432 = vld [vmem:[#allocation8 + $0x988] sm:$0xff]
    %v1433 = vld [vmem:[#allocation8 + $0x990] sm:$0xff]
    %v1434 = vld [vmem:[#allocation8 + $0x998] sm:$0xff]
    %v1435 = vld [vmem:[#allocation8 + $0x9a0] sm:$0xff]
    %v1436 = vld [vmem:[#allocation8 + $0x9a8] sm:$0xff]
    %v1437 = vld [vmem:[#allocation8 + $0x9b0] sm:$0xff]
    %v1438 = vld [vmem:[#allocation8 + $0x9b8] sm:$0xff]
    %v1439 = vld [vmem:[#allocation8 + $0x9c0] sm:$0xff]
    %v1440 = vld [vmem:[#allocation8 + $0x9c8] sm:$0xff]
    %v1441 = vld [vmem:[#allocation8 + $0x9d0] sm:$0xff]
    %v1442 = vld [vmem:[#allocation8 + $0x9d8] sm:$0xff]
    %v1443 = vld [vmem:[#allocation8 + $0x9e0] sm:$0xff]
    %v1444 = vld [vmem:[#allocation8 + $0x9e8] sm:$0xff]
    %v1445 = vld [vmem:[#allocation8 + $0x9f0] sm:$0xff]
    %v1446 = vld [vmem:[#allocation8 + $0x9f8] sm:$0xff]
    %v1447 = vld [vmem:[#allocation8 + $0xa00] sm:$0xff]
    %v1448 = vld [vmem:[#allocation8 + $0xa08] sm:$0xff]
    %v1449 = vld [vmem:[#allocation8 + $0xa10] sm:$0xff]
    %v1450 = vld [vmem:[#allocation8 + $0xa18] sm:$0xff]
    %v1451 = vld [vmem:[#allocation8 + $0xa20] sm:$0xff]
    %v1452 = vld [vmem:[#allocation8 + $0xa28] sm:$0xff]
    %v1453 = vld [vmem:[#allocation8 + $0xa30] sm:$0xff]
    %v1454 = vld [vmem:[#allocation8 + $0xa38] sm:$0xff]
    %v1455 = vld [vmem:[#allocation8 + $0xa40] sm:$0xff]
    %v1456 = vld [vmem:[#allocation8 + $0xa48] sm:$0xff]
    %v1457 = vld [vmem:[#allocation8 + $0xa50] sm:$0xff]
    %v1458 = vld [vmem:[#allocation8 + $0xa58] sm:$0xff]
    %v1459 = vld [vmem:[#allocation8 + $0xa60] sm:$0xff]
    %v1460 = vld [vmem:[#allocation8 + $0xa68] sm:$0xff]
    %v1461 = vld [vmem:[#allocation8 + $0xa70] sm:$0xff]
    %v1462 = vld [vmem:[#allocation8 + $0xa78] sm:$0xff]
    %v1463 = vld [vmem:[#allocation8 + $0xa80] sm:$0xff]
    %v1464 = vld [vmem:[#allocation8 + $0xa88] sm:$0xff]
    %v1465 = vld [vmem:[#allocation8 + $0xa90] sm:$0xff]
    %v1466 = vld [vmem:[#allocation8 + $0xa98] sm:$0xff]
    %v1467 = vld [vmem:[#allocation8 + $0xaa0] sm:$0xff]
    %v1468 = vld [vmem:[#allocation8 + $0xaa8] sm:$0xff]
    %v1469 = vld [vmem:[#allocation8 + $0xab0] sm:$0xff]
    %v1470 = vld [vmem:[#allocation8 + $0xab8] sm:$0xff]
    %v1471 = vld [vmem:[#allocation8 + $0xac0] sm:$0xff]
    %v1472 = vld [vmem:[#allocation8 + $0xac8] sm:$0xff]
    %v1473 = vld [vmem:[#allocation8 + $0xad0] sm:$0xff]
    %v1474 = vld [vmem:[#allocation8 + $0xad8] sm:$0xff]
    %v1475 = vld [vmem:[#allocation8 + $0xae0] sm:$0xff]
    %v1476 = vld [vmem:[#allocation8 + $0xae8] sm:$0xff]
    %v1477 = vld [vmem:[#allocation8 + $0xaf0] sm:$0xff]
    %v1478 = vld [vmem:[#allocation8 + $0xaf8] sm:$0xff]
    %v1479 = vld [vmem:[#allocation8 + $0xb00] sm:$0xff]
    %v1480 = vld [vmem:[#allocation8 + $0xb08] sm:$0xff]
    %v1481 = vld [vmem:[#allocation8 + $0xb10] sm:$0xff]
    %v1482 = vld [vmem:[#allocation8 + $0xb18] sm:$0xff]
    %v1483 = vld [vmem:[#allocation8 + $0xb20] sm:$0xff]
    %v1484 = vld [vmem:[#allocation8 + $0xb28] sm:$0xff]
    %v1485 = vld [vmem:[#allocation8 + $0xb30] sm:$0xff]
    %v1486 = vld [vmem:[#allocation8 + $0xb38] sm:$0xff]
    %v1487 = vld [vmem:[#allocation8 + $0xb40] sm:$0xff]
    %v1488 = vld [vmem:[#allocation8 + $0xb48] sm:$0xff]
    %v1489 = vld [vmem:[#allocation8 + $0xb50] sm:$0xff]
    %v1490 = vld [vmem:[#allocation8 + $0xb58] sm:$0xff]
    %v1491 = vld [vmem:[#allocation8 + $0xb60] sm:$0xff]
    %v1492 = vld [vmem:[#allocation8 + $0xb68] sm:$0xff]
    %v1493 = vld [vmem:[#allocation8 + $0xb70] sm:$0xff]
    %v1494 = vld [vmem:[#allocation8 + $0xb78] sm:$0xff]
    %v1495 = vld [vmem:[#allocation8 + $0xb80] sm:$0xff]
    %v1496 = vld [vmem:[#allocation8 + $0xb88] sm:$0xff]
    %v1497 = vld [vmem:[#allocation8 + $0xb90] sm:$0xff]
    %v1498 = vld [vmem:[#allocation8 + $0xb98] sm:$0xff]
    %v1499 = vld [vmem:[#allocation8 + $0xba0] sm:$0xff]
    %v1500 = vld [vmem:[#allocation8 + $0xba8] sm:$0xff]
    %v1501 = vld [vmem:[#allocation8 + $0xbb0] sm:$0xff]
    %v1502 = vld [vmem:[#allocation8 + $0xbb8] sm:$0xff]
    %v1503 = vld [vmem:[#allocation8 + $0xbc0] sm:$0xff]
    %v1504 = vld [vmem:[#allocation8 + $0xbc8] sm:$0xff]
    %v1505 = vld [vmem:[#allocation8 + $0xbd0] sm:$0xff]
    %v1506 = vld [vmem:[#allocation8 + $0xbd8] sm:$0xff]
    %v1507 = vld [vmem:[#allocation8 + $0xbe0] sm:$0xff]
    %v1508 = vld [vmem:[#allocation8 + $0xbe8] sm:$0xff]
    %v1509 = vld [vmem:[#allocation8 + $0xbf0] sm:$0xff]
    %v1510 = vld [vmem:[#allocation8 + $0xbf8] sm:$0xff]
    %v1511 = vld [vmem:[#allocation8 + $0xc00] sm:$0xff]
    %v1512 = vld [vmem:[#allocation8 + $0xc08] sm:$0xff]
    %v1513 = vld [vmem:[#allocation8 + $0xc10] sm:$0xff]
    %v1514 = vld [vmem:[#allocation8 + $0xc18] sm:$0xff]
    %v1515 = vld [vmem:[#allocation8 + $0xc20] sm:$0xff]
    %v1516 = vld [vmem:[#allocation8 + $0xc28] sm:$0xff]
    %v1517 = vld [vmem:[#allocation8 + $0xc30] sm:$0xff]
    %v1518 = vld [vmem:[#allocation8 + $0xc38] sm:$0xff]
    %v1519 = vld [vmem:[#allocation8 + $0xc40] sm:$0xff]
    %v1520 = vld [vmem:[#allocation8 + $0xc48] sm:$0xff]
    %v1521 = vld [vmem:[#allocation8 + $0xc50] sm:$0xff]
    %v1522 = vld [vmem:[#allocation8 + $0xc58] sm:$0xff]
    %v1523 = vld [vmem:[#allocation8 + $0xc60] sm:$0xff]
    %v1524 = vld [vmem:[#allocation8 + $0xc68] sm:$0xff]
    %v1525 = vld [vmem:[#allocation8 + $0xc70] sm:$0xff]
    %v1526 = vld [vmem:[#allocation8 + $0xc78] sm:$0xff]
    %v1527 = vld [vmem:[#allocation8 + $0xc80] sm:$0xff]
    %v1528 = vld [vmem:[#allocation8 + $0xc88] sm:$0xff]
    %v1529 = vld [vmem:[#allocation8 + $0xc90] sm:$0xff]
    %v1530 = vld [vmem:[#allocation8 + $0xc98] sm:$0xff]
    %v1531 = vld [vmem:[#allocation8 + $0xca0] sm:$0xff]
    %v1532 = vld [vmem:[#allocation8 + $0xca8] sm:$0xff]
    %v1533 = vld [vmem:[#allocation8 + $0xcb0] sm:$0xff]
    %v1534 = vld [vmem:[#allocation8 + $0xcb8] sm:$0xff]
    %v1535 = vld [vmem:[#allocation8 + $0xcc0] sm:$0xff]
    %v1536 = vld [vmem:[#allocation8 + $0xcc8] sm:$0xff]
    %v1537 = vld [vmem:[#allocation8 + $0xcd0] sm:$0xff]
    %v1538 = vld [vmem:[#allocation8 + $0xcd8] sm:$0xff]
    %v1539 = vld [vmem:[#allocation8 + $0xce0] sm:$0xff]
    %v1540 = vld [vmem:[#allocation8 + $0xce8] sm:$0xff]
    %v1541 = vld [vmem:[#allocation8 + $0xcf0] sm:$0xff]
    %v1542 = vld [vmem:[#allocation8 + $0xcf8] sm:$0xff]
    %v1543 = vld [vmem:[#allocation8 + $0xd00] sm:$0xff]
    %v1544 = vld [vmem:[#allocation8 + $0xd08] sm:$0xff]
    %v1545 = vld [vmem:[#allocation8 + $0xd10] sm:$0xff]
    %v1546 = vld [vmem:[#allocation8 + $0xd18] sm:$0xff]
    %v1547 = vld [vmem:[#allocation8 + $0xd20] sm:$0xff]
    %v1548 = vld [vmem:[#allocation8 + $0xd28] sm:$0xff]
    %v1549 = vld [vmem:[#allocation8 + $0xd30] sm:$0xff]
    %v1550 = vld [vmem:[#allocation8 + $0xd38] sm:$0xff]
    %v1551 = vld [vmem:[#allocation8 + $0xd40] sm:$0xff]
    %v1552 = vld [vmem:[#allocation8 + $0xd48] sm:$0xff]
    %v1553 = vld [vmem:[#allocation8 + $0xd50] sm:$0xff]
    %v1554 = vld [vmem:[#allocation8 + $0xd58] sm:$0xff]
    %v1555 = vld [vmem:[#allocation8 + $0xd60] sm:$0xff]
    %v1556 = vld [vmem:[#allocation8 + $0xd68] sm:$0xff]
    %v1557 = vld [vmem:[#allocation8 + $0xd70] sm:$0xff]
    %v1558 = vld [vmem:[#allocation8 + $0xd78] sm:$0xff]
    %v1559 = vld [vmem:[#allocation8 + $0xd80] sm:$0xff]
    %v1560 = vld [vmem:[#allocation8 + $0xd88] sm:$0xff]
    %v1561 = vld [vmem:[#allocation8 + $0xd90] sm:$0xff]
    %v1562 = vld [vmem:[#allocation8 + $0xd98] sm:$0xff]
    %v1563 = vld [vmem:[#allocation8 + $0xda0] sm:$0xff]
    %v1564 = vld [vmem:[#allocation8 + $0xda8] sm:$0xff]
    %v1565 = vld [vmem:[#allocation8 + $0xdb0] sm:$0xff]
    %v1566 = vld [vmem:[#allocation8 + $0xdb8] sm:$0xff]
    %v1567 = vld [vmem:[#allocation8 + $0xdc0] sm:$0xff]
    %v1568 = vld [vmem:[#allocation8 + $0xdc8] sm:$0xff]
    %v1569 = vld [vmem:[#allocation8 + $0xdd0] sm:$0xff]
    %v1570 = vld [vmem:[#allocation8 + $0xdd8] sm:$0xff]
    %v1571 = vld [vmem:[#allocation8 + $0xde0] sm:$0xff]
    %v1572 = vld [vmem:[#allocation8 + $0xde8] sm:$0xff]
    %v1573 = vld [vmem:[#allocation8 + $0xdf0] sm:$0xff]
    %v1574 = vld [vmem:[#allocation8 + $0xdf8] sm:$0xff]
    %v1575 = vld [vmem:[#allocation8 + $0xe00] sm:$0xff]
    %v1576 = vld [vmem:[#allocation8 + $0xe08] sm:$0xff]
    %v1577 = vld [vmem:[#allocation8 + $0xe10] sm:$0xff]
    %v1578 = vld [vmem:[#allocation8 + $0xe18] sm:$0xff]
    %v1579 = vld [vmem:[#allocation8 + $0xe20] sm:$0xff]
    %v1580 = vld [vmem:[#allocation8 + $0xe28] sm:$0xff]
    %v1581 = vld [vmem:[#allocation8 + $0xe30] sm:$0xff]
    %v1582 = vld [vmem:[#allocation8 + $0xe38] sm:$0xff]
    %v1583 = vld [vmem:[#allocation8 + $0xe40] sm:$0xff]
    %v1584 = vld [vmem:[#allocation8 + $0xe48] sm:$0xff]
    %v1585 = vld [vmem:[#allocation8 + $0xe50] sm:$0xff]
    %v1586 = vld [vmem:[#allocation8 + $0xe58] sm:$0xff]
    %v1587 = vld [vmem:[#allocation8 + $0xe60] sm:$0xff]
    %v1588 = vld [vmem:[#allocation8 + $0xe68] sm:$0xff]
    %v1589 = vld [vmem:[#allocation8 + $0xe70] sm:$0xff]
    %v1590 = vld [vmem:[#allocation8 + $0xe78] sm:$0xff]
    %v1591 = vld [vmem:[#allocation8 + $0xe80] sm:$0xff]
    %v1592 = vld [vmem:[#allocation8 + $0xe88] sm:$0xff]
    %v1593 = vld [vmem:[#allocation8 + $0xe90] sm:$0xff]
    %v1594 = vld [vmem:[#allocation8 + $0xe98] sm:$0xff]
    %v1595 = vld [vmem:[#allocation8 + $0xea0] sm:$0xff]
    %v1596 = vld [vmem:[#allocation8 + $0xea8] sm:$0xff]
    %v1597 = vld [vmem:[#allocation8 + $0xeb0] sm:$0xff]
    %v1598 = vld [vmem:[#allocation8 + $0xeb8] sm:$0xff]
    %v1599 = vld [vmem:[#allocation8 + $0xec0] sm:$0xff]
    %v1600 = vld [vmem:[#allocation8 + $0xec8] sm:$0xff]
    %v1601 = vld [vmem:[#allocation8 + $0xed0] sm:$0xff]
    %v1602 = vld [vmem:[#allocation8 + $0xed8] sm:$0xff]
    %v1603 = vld [vmem:[#allocation8 + $0xee0] sm:$0xff]
    %v1604 = vld [vmem:[#allocation8 + $0xee8] sm:$0xff]
    %v1605 = vld [vmem:[#allocation8 + $0xef0] sm:$0xff]
    %v1606 = vld [vmem:[#allocation8 + $0xef8] sm:$0xff]
    %v1607 = vld [vmem:[#allocation8 + $0xf00] sm:$0xff]
    %v1608 = vld [vmem:[#allocation8 + $0xf08] sm:$0xff]
    %v1609 = vld [vmem:[#allocation8 + $0xf10] sm:$0xff]
    %v1610 = vld [vmem:[#allocation8 + $0xf18] sm:$0xff]
    %v1611 = vld [vmem:[#allocation8 + $0xf20] sm:$0xff]
    %v1612 = vld [vmem:[#allocation8 + $0xf28] sm:$0xff]
    %v1613 = vld [vmem:[#allocation8 + $0xf30] sm:$0xff]
    %v1614 = vld [vmem:[#allocation8 + $0xf38] sm:$0xff]
    %v1615 = vld [vmem:[#allocation8 + $0xf40] sm:$0xff]
    %v1616 = vld [vmem:[#allocation8 + $0xf48] sm:$0xff]
    %v1617 = vld [vmem:[#allocation8 + $0xf50] sm:$0xff]
    %v1618 = vld [vmem:[#allocation8 + $0xf58] sm:$0xff]
    %v1619 = vld [vmem:[#allocation8 + $0xf60] sm:$0xff]
    %v1620 = vld [vmem:[#allocation8 + $0xf68] sm:$0xff]
    %v1621 = vld [vmem:[#allocation8 + $0xf70] sm:$0xff]
    %v1622 = vld [vmem:[#allocation8 + $0xf78] sm:$0xff]
    %v1623 = vld [vmem:[#allocation8 + $0xf80] sm:$0xff]
    %v1624 = vld [vmem:[#allocation8 + $0xf88] sm:$0xff]
    %v1625 = vld [vmem:[#allocation8 + $0xf90] sm:$0xff]
    %v1626 = vld [vmem:[#allocation8 + $0xf98] sm:$0xff]
    %v1627 = vld [vmem:[#allocation8 + $0xfa0] sm:$0xff]
    %v1628 = vld [vmem:[#allocation8 + $0xfa8] sm:$0xff]
    %v1629 = vld [vmem:[#allocation8 + $0xfb0] sm:$0xff]
    %v1630 = vld [vmem:[#allocation8 + $0xfb8] sm:$0xff]
    %v1631 = vld [vmem:[#allocation8 + $0xfc0] sm:$0xff]
    %v1632 = vld [vmem:[#allocation8 + $0xfc8] sm:$0xff]
    %v1633 = vld [vmem:[#allocation8 + $0xfd0] sm:$0xff]
    %v1634 = vld [vmem:[#allocation8 + $0xfd8] sm:$0xff]
    %v1635 = vld [vmem:[#allocation8 + $0xfe0] sm:$0xff]
    %v1636 = vld [vmem:[#allocation8 + $0xfe8] sm:$0xff]
    %v1637 = vld [vmem:[#allocation8 + $0xff0] sm:$0xff]
    %v1638 = vld [vmem:[#allocation8 + $0xff8] sm:$0xff]
    %v1639 = vld [vmem:[#allocation10] sm:$0xff]
    %v1641 = vperm.slane %v1639, 0
    %v1642 = vperm.slane %v1639, 1
    %v1643 = vperm.slane %v1639, 2
    %v1644 = vperm.slane %v1639, 3
    %v1645 = vperm.slane %v1639, 4
    %v1646 = vperm.slane %v1639, 5
    %v1647 = vperm.slane %v1639, 6
    %v1648 = vperm.slane %v1639, 7
    %v2169 = vunpack.c.l.b16 %v1127
    %v2170 = vunpack.c.h.b16 %v1127
    %v2171 = vunpack.c.l.b16 %v1128
    %v2172 = vunpack.c.h.b16 %v1128
    %v2173 = vunpack.c.l.b16 %v1129
    %v2174 = vunpack.c.h.b16 %v1129
    %v2175 = vunpack.c.l.b16 %v1130
    %v2176 = vunpack.c.h.b16 %v1130
    %v2177 = vunpack.c.l.b16 %v1131
    %v2178 = vunpack.c.h.b16 %v1131
    %v2179 = vunpack.c.l.b16 %v1132
    %v2180 = vunpack.c.h.b16 %v1132
    %v2181 = vunpack.c.l.b16 %v1133
    %v2182 = vunpack.c.h.b16 %v1133
    %v2183 = vunpack.c.l.b16 %v1134
    %v2184 = vunpack.c.h.b16 %v1134
    %v2185 = vunpack.c.l.b16 %v1135
    %v2186 = vunpack.c.h.b16 %v1135
    %v2187 = vunpack.c.l.b16 %v1136
    %v2188 = vunpack.c.h.b16 %v1136
    %v2189 = vunpack.c.l.b16 %v1137
    %v2190 = vunpack.c.h.b16 %v1137
    %v2191 = vunpack.c.l.b16 %v1138
    %v2192 = vunpack.c.h.b16 %v1138
    %v2193 = vunpack.c.l.b16 %v1139
    %v2194 = vunpack.c.h.b16 %v1139
    %v2195 = vunpack.c.l.b16 %v1140
    %v2196 = vunpack.c.h.b16 %v1140
    %v2197 = vunpack.c.l.b16 %v1141
    %v2198 = vunpack.c.h.b16 %v1141
    %v2199 = vunpack.c.l.b16 %v1142
    %v2200 = vunpack.c.h.b16 %v1142
    %v2201 = vunpack.c.l.b16 %v1143
    %v2202 = vunpack.c.h.b16 %v1143
    %v2203 = vunpack.c.l.b16 %v1144
    %v2204 = vunpack.c.h.b16 %v1144
    %v2205 = vunpack.c.l.b16 %v1145
    %v2206 = vunpack.c.h.b16 %v1145
    %v2207 = vunpack.c.l.b16 %v1146
    %v2208 = vunpack.c.h.b16 %v1146
    %v2209 = vunpack.c.l.b16 %v1147
    %v2210 = vunpack.c.h.b16 %v1147
    %v2211 = vunpack.c.l.b16 %v1148
    %v2212 = vunpack.c.h.b16 %v1148
    %v2213 = vunpack.c.l.b16 %v1149
    %v2214 = vunpack.c.h.b16 %v1149
    %v2215 = vunpack.c.l.b16 %v1150
    %v2216 = vunpack.c.h.b16 %v1150
    %v2217 = vunpack.c.l.b16 %v1151
    %v2218 = vunpack.c.h.b16 %v1151
    %v2219 = vunpack.c.l.b16 %v1152
    %v2220 = vunpack.c.h.b16 %v1152
    %v2221 = vunpack.c.l.b16 %v1153
    %v2222 = vunpack.c.h.b16 %v1153
    %v2223 = vunpack.c.l.b16 %v1154
    %v2224 = vunpack.c.h.b16 %v1154
    %v2225 = vunpack.c.l.b16 %v1155
    %v2226 = vunpack.c.h.b16 %v1155
    %v2227 = vunpack.c.l.b16 %v1156
    %v2228 = vunpack.c.h.b16 %v1156
    %v2229 = vunpack.c.l.b16 %v1157
    %v2230 = vunpack.c.h.b16 %v1157
    %v2231 = vunpack.c.l.b16 %v1158
    %v2232 = vunpack.c.h.b16 %v1158
    %v2233 = vunpack.c.l.b16 %v1159
    %v2234 = vunpack.c.h.b16 %v1159
    %v2235 = vunpack.c.l.b16 %v1160
    %v2236 = vunpack.c.h.b16 %v1160
    %v2237 = vunpack.c.l.b16 %v1161
    %v2238 = vunpack.c.h.b16 %v1161
    %v2239 = vunpack.c.l.b16 %v1162
    %v2240 = vunpack.c.h.b16 %v1162
    %v2241 = vunpack.c.l.b16 %v1163
    %v2242 = vunpack.c.h.b16 %v1163
    %v2243 = vunpack.c.l.b16 %v1164
    %v2244 = vunpack.c.h.b16 %v1164
    %v2245 = vunpack.c.l.b16 %v1165
    %v2246 = vunpack.c.h.b16 %v1165
    %v2247 = vunpack.c.l.b16 %v1166
    %v2248 = vunpack.c.h.b16 %v1166
    %v2249 = vunpack.c.l.b16 %v1167
    %v2250 = vunpack.c.h.b16 %v1167
    %v2251 = vunpack.c.l.b16 %v1168
    %v2252 = vunpack.c.h.b16 %v1168
    %v2253 = vunpack.c.l.b16 %v1169
    %v2254 = vunpack.c.h.b16 %v1169
    %v2255 = vunpack.c.l.b16 %v1170
    %v2256 = vunpack.c.h.b16 %v1170
    %v2257 = vunpack.c.l.b16 %v1171
    %v2258 = vunpack.c.h.b16 %v1171
    %v2259 = vunpack.c.l.b16 %v1172
    %v2260 = vunpack.c.h.b16 %v1172
    %v2261 = vunpack.c.l.b16 %v1173
    %v2262 = vunpack.c.h.b16 %v1173
    %v2263 = vunpack.c.l.b16 %v1174
    %v2264 = vunpack.c.h.b16 %v1174
    %v2265 = vunpack.c.l.b16 %v1175
    %v2266 = vunpack.c.h.b16 %v1175
    %v2267 = vunpack.c.l.b16 %v1176
    %v2268 = vunpack.c.h.b16 %v1176
    %v2269 = vunpack.c.l.b16 %v1177
    %v2270 = vunpack.c.h.b16 %v1177
    %v2271 = vunpack.c.l.b16 %v1178
    %v2272 = vunpack.c.h.b16 %v1178
    %v2273 = vunpack.c.l.b16 %v1179
    %v2274 = vunpack.c.h.b16 %v1179
    %v2275 = vunpack.c.l.b16 %v1180
    %v2276 = vunpack.c.h.b16 %v1180
    %v2277 = vunpack.c.l.b16 %v1181
    %v2278 = vunpack.c.h.b16 %v1181
    %v2279 = vunpack.c.l.b16 %v1182
    %v2280 = vunpack.c.h.b16 %v1182
    %v2281 = vunpack.c.l.b16 %v1183
    %v2282 = vunpack.c.h.b16 %v1183
    %v2283 = vunpack.c.l.b16 %v1184
    %v2284 = vunpack.c.h.b16 %v1184
    %v2285 = vunpack.c.l.b16 %v1185
    %v2286 = vunpack.c.h.b16 %v1185
    %v2287 = vunpack.c.l.b16 %v1186
    %v2288 = vunpack.c.h.b16 %v1186
    %v2289 = vunpack.c.l.b16 %v1187
    %v2290 = vunpack.c.h.b16 %v1187
    %v2291 = vunpack.c.l.b16 %v1188
    %v2292 = vunpack.c.h.b16 %v1188
    %v2293 = vunpack.c.l.b16 %v1189
    %v2294 = vunpack.c.h.b16 %v1189
    %v2295 = vunpack.c.l.b16 %v1190
    %v2296 = vunpack.c.h.b16 %v1190
    %v2297 = vunpack.c.l.b16 %v1191
    %v2298 = vunpack.c.h.b16 %v1191
    %v2299 = vunpack.c.l.b16 %v1192
    %v2300 = vunpack.c.h.b16 %v1192
    %v2301 = vunpack.c.l.b16 %v1193
    %v2302 = vunpack.c.h.b16 %v1193
    %v2303 = vunpack.c.l.b16 %v1194
    %v2304 = vunpack.c.h.b16 %v1194
    %v2305 = vunpack.c.l.b16 %v1195
    %v2306 = vunpack.c.h.b16 %v1195
    %v2307 = vunpack.c.l.b16 %v1196
    %v2308 = vunpack.c.h.b16 %v1196
    %v2309 = vunpack.c.l.b16 %v1197
    %v2310 = vunpack.c.h.b16 %v1197
    %v2311 = vunpack.c.l.b16 %v1198
    %v2312 = vunpack.c.h.b16 %v1198
    %v2313 = vunpack.c.l.b16 %v1199
    %v2314 = vunpack.c.h.b16 %v1199
    %v2315 = vunpack.c.l.b16 %v1200
    %v2316 = vunpack.c.h.b16 %v1200
    %v2317 = vunpack.c.l.b16 %v1201
    %v2318 = vunpack.c.h.b16 %v1201
    %v2319 = vunpack.c.l.b16 %v1202
    %v2320 = vunpack.c.h.b16 %v1202
    %v2321 = vunpack.c.l.b16 %v1203
    %v2322 = vunpack.c.h.b16 %v1203
    %v2323 = vunpack.c.l.b16 %v1204
    %v2324 = vunpack.c.h.b16 %v1204
    %v2325 = vunpack.c.l.b16 %v1205
    %v2326 = vunpack.c.h.b16 %v1205
    %v2327 = vunpack.c.l.b16 %v1206
    %v2328 = vunpack.c.h.b16 %v1206
    %v2329 = vunpack.c.l.b16 %v1207
    %v2330 = vunpack.c.h.b16 %v1207
    %v2331 = vunpack.c.l.b16 %v1208
    %v2332 = vunpack.c.h.b16 %v1208
    %v2333 = vunpack.c.l.b16 %v1209
    %v2334 = vunpack.c.h.b16 %v1209
    %v2335 = vunpack.c.l.b16 %v1210
    %v2336 = vunpack.c.h.b16 %v1210
    %v2337 = vunpack.c.l.b16 %v1211
    %v2338 = vunpack.c.h.b16 %v1211
    %v2339 = vunpack.c.l.b16 %v1212
    %v2340 = vunpack.c.h.b16 %v1212
    %v2341 = vunpack.c.l.b16 %v1213
    %v2342 = vunpack.c.h.b16 %v1213
    %v2343 = vunpack.c.l.b16 %v1214
    %v2344 = vunpack.c.h.b16 %v1214
    %v2345 = vunpack.c.l.b16 %v1215
    %v2346 = vunpack.c.h.b16 %v1215
    %v2347 = vunpack.c.l.b16 %v1216
    %v2348 = vunpack.c.h.b16 %v1216
    %v2349 = vunpack.c.l.b16 %v1217
    %v2350 = vunpack.c.h.b16 %v1217
    %v2351 = vunpack.c.l.b16 %v1218
    %v2352 = vunpack.c.h.b16 %v1218
    %v2353 = vunpack.c.l.b16 %v1219
    %v2354 = vunpack.c.h.b16 %v1219
    %v2355 = vunpack.c.l.b16 %v1220
    %v2356 = vunpack.c.h.b16 %v1220
    %v2357 = vunpack.c.l.b16 %v1221
    %v2358 = vunpack.c.h.b16 %v1221
    %v2359 = vunpack.c.l.b16 %v1222
    %v2360 = vunpack.c.h.b16 %v1222
    %v2361 = vunpack.c.l.b16 %v1223
    %v2362 = vunpack.c.h.b16 %v1223
    %v2363 = vunpack.c.l.b16 %v1224
    %v2364 = vunpack.c.h.b16 %v1224
    %v2365 = vunpack.c.l.b16 %v1225
    %v2366 = vunpack.c.h.b16 %v1225
    %v2367 = vunpack.c.l.b16 %v1226
    %v2368 = vunpack.c.h.b16 %v1226
    %v2369 = vunpack.c.l.b16 %v1227
    %v2370 = vunpack.c.h.b16 %v1227
    %v2371 = vunpack.c.l.b16 %v1228
    %v2372 = vunpack.c.h.b16 %v1228
    %v2373 = vunpack.c.l.b16 %v1229
    %v2374 = vunpack.c.h.b16 %v1229
    %v2375 = vunpack.c.l.b16 %v1230
    %v2376 = vunpack.c.h.b16 %v1230
    %v2377 = vunpack.c.l.b16 %v1231
    %v2378 = vunpack.c.h.b16 %v1231
    %v2379 = vunpack.c.l.b16 %v1232
    %v2380 = vunpack.c.h.b16 %v1232
    %v2381 = vunpack.c.l.b16 %v1233
    %v2382 = vunpack.c.h.b16 %v1233
    %v2383 = vunpack.c.l.b16 %v1234
    %v2384 = vunpack.c.h.b16 %v1234
    %v2385 = vunpack.c.l.b16 %v1235
    %v2386 = vunpack.c.h.b16 %v1235
    %v2387 = vunpack.c.l.b16 %v1236
    %v2388 = vunpack.c.h.b16 %v1236
    %v2389 = vunpack.c.l.b16 %v1237
    %v2390 = vunpack.c.h.b16 %v1237
    %v2391 = vunpack.c.l.b16 %v1238
    %v2392 = vunpack.c.h.b16 %v1238
    %v2393 = vunpack.c.l.b16 %v1239
    %v2394 = vunpack.c.h.b16 %v1239
    %v2395 = vunpack.c.l.b16 %v1240
    %v2396 = vunpack.c.h.b16 %v1240
    %v2397 = vunpack.c.l.b16 %v1241
    %v2398 = vunpack.c.h.b16 %v1241
    %v2399 = vunpack.c.l.b16 %v1242
    %v2400 = vunpack.c.h.b16 %v1242
    %v2401 = vunpack.c.l.b16 %v1243
    %v2402 = vunpack.c.h.b16 %v1243
    %v2403 = vunpack.c.l.b16 %v1244
    %v2404 = vunpack.c.h.b16 %v1244
    %v2405 = vunpack.c.l.b16 %v1245
    %v2406 = vunpack.c.h.b16 %v1245
    %v2407 = vunpack.c.l.b16 %v1246
    %v2408 = vunpack.c.h.b16 %v1246
    %v2409 = vunpack.c.l.b16 %v1247
    %v2410 = vunpack.c.h.b16 %v1247
    %v2411 = vunpack.c.l.b16 %v1248
    %v2412 = vunpack.c.h.b16 %v1248
    %v2413 = vunpack.c.l.b16 %v1249
    %v2414 = vunpack.c.h.b16 %v1249
    %v2415 = vunpack.c.l.b16 %v1250
    %v2416 = vunpack.c.h.b16 %v1250
    %v2417 = vunpack.c.l.b16 %v1251
    %v2418 = vunpack.c.h.b16 %v1251
    %v2419 = vunpack.c.l.b16 %v1252
    %v2420 = vunpack.c.h.b16 %v1252
    %v2421 = vunpack.c.l.b16 %v1253
    %v2422 = vunpack.c.h.b16 %v1253
    %v2423 = vunpack.c.l.b16 %v1254
    %v2424 = vunpack.c.h.b16 %v1254
    %v2425 = vunpack.c.l.b16 %v1255
    %v2426 = vunpack.c.h.b16 %v1255
    %v2427 = vunpack.c.l.b16 %v1256
    %v2428 = vunpack.c.h.b16 %v1256
    %v2429 = vunpack.c.l.b16 %v1257
    %v2430 = vunpack.c.h.b16 %v1257
    %v2431 = vunpack.c.l.b16 %v1258
    %v2432 = vunpack.c.h.b16 %v1258
    %v2433 = vunpack.c.l.b16 %v1259
    %v2434 = vunpack.c.h.b16 %v1259
    %v2435 = vunpack.c.l.b16 %v1260
    %v2436 = vunpack.c.h.b16 %v1260
    %v2437 = vunpack.c.l.b16 %v1261
    %v2438 = vunpack.c.h.b16 %v1261
    %v2439 = vunpack.c.l.b16 %v1262
    %v2440 = vunpack.c.h.b16 %v1262
    %v2441 = vunpack.c.l.b16 %v1263
    %v2442 = vunpack.c.h.b16 %v1263
    %v2443 = vunpack.c.l.b16 %v1264
    %v2444 = vunpack.c.h.b16 %v1264
    %v2445 = vunpack.c.l.b16 %v1265
    %v2446 = vunpack.c.h.b16 %v1265
    %v2447 = vunpack.c.l.b16 %v1266
    %v2448 = vunpack.c.h.b16 %v1266
    %v2449 = vunpack.c.l.b16 %v1267
    %v2450 = vunpack.c.h.b16 %v1267
    %v2451 = vunpack.c.l.b16 %v1268
    %v2452 = vunpack.c.h.b16 %v1268
    %v2453 = vunpack.c.l.b16 %v1269
    %v2454 = vunpack.c.h.b16 %v1269
    %v2455 = vunpack.c.l.b16 %v1270
    %v2456 = vunpack.c.h.b16 %v1270
    %v2457 = vunpack.c.l.b16 %v1271
    %v2458 = vunpack.c.h.b16 %v1271
    %v2459 = vunpack.c.l.b16 %v1272
    %v2460 = vunpack.c.h.b16 %v1272
    %v2461 = vunpack.c.l.b16 %v1273
    %v2462 = vunpack.c.h.b16 %v1273
    %v2463 = vunpack.c.l.b16 %v1274
    %v2464 = vunpack.c.h.b16 %v1274
    %v2465 = vunpack.c.l.b16 %v1275
    %v2466 = vunpack.c.h.b16 %v1275
    %v2467 = vunpack.c.l.b16 %v1276
    %v2468 = vunpack.c.h.b16 %v1276
    %v2469 = vunpack.c.l.b16 %v1277
    %v2470 = vunpack.c.h.b16 %v1277
    %v2471 = vunpack.c.l.b16 %v1278
    %v2472 = vunpack.c.h.b16 %v1278
    %v2473 = vunpack.c.l.b16 %v1279
    %v2474 = vunpack.c.h.b16 %v1279
    %v2475 = vunpack.c.l.b16 %v1280
    %v2476 = vunpack.c.h.b16 %v1280
    %v2477 = vunpack.c.l.b16 %v1281
    %v2478 = vunpack.c.h.b16 %v1281
    %v2479 = vunpack.c.l.b16 %v1282
    %v2480 = vunpack.c.h.b16 %v1282
    %v2481 = vunpack.c.l.b16 %v1283
    %v2482 = vunpack.c.h.b16 %v1283
    %v2483 = vunpack.c.l.b16 %v1284
    %v2484 = vunpack.c.h.b16 %v1284
    %v2485 = vunpack.c.l.b16 %v1285
    %v2486 = vunpack.c.h.b16 %v1285
    %v2487 = vunpack.c.l.b16 %v1286
    %v2488 = vunpack.c.h.b16 %v1286
    %v2489 = vunpack.c.l.b16 %v1287
    %v2490 = vunpack.c.h.b16 %v1287
    %v2491 = vunpack.c.l.b16 %v1288
    %v2492 = vunpack.c.h.b16 %v1288
    %v2493 = vunpack.c.l.b16 %v1289
    %v2494 = vunpack.c.h.b16 %v1289
    %v2495 = vunpack.c.l.b16 %v1290
    %v2496 = vunpack.c.h.b16 %v1290
    %v2497 = vunpack.c.l.b16 %v1291
    %v2498 = vunpack.c.h.b16 %v1291
    %v2499 = vunpack.c.l.b16 %v1292
    %v2500 = vunpack.c.h.b16 %v1292
    %v2501 = vunpack.c.l.b16 %v1293
    %v2502 = vunpack.c.h.b16 %v1293
    %v2503 = vunpack.c.l.b16 %v1294
    %v2504 = vunpack.c.h.b16 %v1294
    %v2505 = vunpack.c.l.b16 %v1295
    %v2506 = vunpack.c.h.b16 %v1295
    %v2507 = vunpack.c.l.b16 %v1296
    %v2508 = vunpack.c.h.b16 %v1296
    %v2509 = vunpack.c.l.b16 %v1297
    %v2510 = vunpack.c.h.b16 %v1297
    %v2511 = vunpack.c.l.b16 %v1298
    %v2512 = vunpack.c.h.b16 %v1298
    %v2513 = vunpack.c.l.b16 %v1299
    %v2514 = vunpack.c.h.b16 %v1299
    %v2515 = vunpack.c.l.b16 %v1300
    %v2516 = vunpack.c.h.b16 %v1300
    %v2517 = vunpack.c.l.b16 %v1301
    %v2518 = vunpack.c.h.b16 %v1301
    %v2519 = vunpack.c.l.b16 %v1302
    %v2520 = vunpack.c.h.b16 %v1302
    %v2521 = vunpack.c.l.b16 %v1303
    %v2522 = vunpack.c.h.b16 %v1303
    %v2523 = vunpack.c.l.b16 %v1304
    %v2524 = vunpack.c.h.b16 %v1304
    %v2525 = vunpack.c.l.b16 %v1305
    %v2526 = vunpack.c.h.b16 %v1305
    %v2527 = vunpack.c.l.b16 %v1306
    %v2528 = vunpack.c.h.b16 %v1306
    %v2529 = vunpack.c.l.b16 %v1307
    %v2530 = vunpack.c.h.b16 %v1307
    %v2531 = vunpack.c.l.b16 %v1308
    %v2532 = vunpack.c.h.b16 %v1308
    %v2533 = vunpack.c.l.b16 %v1309
    %v2534 = vunpack.c.h.b16 %v1309
    %v2535 = vunpack.c.l.b16 %v1310
    %v2536 = vunpack.c.h.b16 %v1310
    %v2537 = vunpack.c.l.b16 %v1311
    %v2538 = vunpack.c.h.b16 %v1311
    %v2539 = vunpack.c.l.b16 %v1312
    %v2540 = vunpack.c.h.b16 %v1312
    %v2541 = vunpack.c.l.b16 %v1313
    %v2542 = vunpack.c.h.b16 %v1313
    %v2543 = vunpack.c.l.b16 %v1314
    %v2544 = vunpack.c.h.b16 %v1314
    %v2545 = vunpack.c.l.b16 %v1315
    %v2546 = vunpack.c.h.b16 %v1315
    %v2547 = vunpack.c.l.b16 %v1316
    %v2548 = vunpack.c.h.b16 %v1316
    %v2549 = vunpack.c.l.b16 %v1317
    %v2550 = vunpack.c.h.b16 %v1317
    %v2551 = vunpack.c.l.b16 %v1318
    %v2552 = vunpack.c.h.b16 %v1318
    %v2553 = vunpack.c.l.b16 %v1319
    %v2554 = vunpack.c.h.b16 %v1319
    %v2555 = vunpack.c.l.b16 %v1320
    %v2556 = vunpack.c.h.b16 %v1320
    %v2557 = vunpack.c.l.b16 %v1321
    %v2558 = vunpack.c.h.b16 %v1321
    %v2559 = vunpack.c.l.b16 %v1322
    %v2560 = vunpack.c.h.b16 %v1322
    %v2561 = vunpack.c.l.b16 %v1323
    %v2562 = vunpack.c.h.b16 %v1323
    %v2563 = vunpack.c.l.b16 %v1324
    %v2564 = vunpack.c.h.b16 %v1324
    %v2565 = vunpack.c.l.b16 %v1325
    %v2566 = vunpack.c.h.b16 %v1325
    %v2567 = vunpack.c.l.b16 %v1326
    %v2568 = vunpack.c.h.b16 %v1326
    %v2569 = vunpack.c.l.b16 %v1327
    %v2570 = vunpack.c.h.b16 %v1327
    %v2571 = vunpack.c.l.b16 %v1328
    %v2572 = vunpack.c.h.b16 %v1328
    %v2573 = vunpack.c.l.b16 %v1329
    %v2574 = vunpack.c.h.b16 %v1329
    %v2575 = vunpack.c.l.b16 %v1330
    %v2576 = vunpack.c.h.b16 %v1330
    %v2577 = vunpack.c.l.b16 %v1331
    %v2578 = vunpack.c.h.b16 %v1331
    %v2579 = vunpack.c.l.b16 %v1332
    %v2580 = vunpack.c.h.b16 %v1332
    %v2581 = vunpack.c.l.b16 %v1333
    %v2582 = vunpack.c.h.b16 %v1333
    %v2583 = vunpack.c.l.b16 %v1334
    %v2584 = vunpack.c.h.b16 %v1334
    %v2585 = vunpack.c.l.b16 %v1335
    %v2586 = vunpack.c.h.b16 %v1335
    %v2587 = vunpack.c.l.b16 %v1336
    %v2588 = vunpack.c.h.b16 %v1336
    %v2589 = vunpack.c.l.b16 %v1337
    %v2590 = vunpack.c.h.b16 %v1337
    %v2591 = vunpack.c.l.b16 %v1338
    %v2592 = vunpack.c.h.b16 %v1338
    %v2593 = vunpack.c.l.b16 %v1339
    %v2594 = vunpack.c.h.b16 %v1339
    %v2595 = vunpack.c.l.b16 %v1340
    %v2596 = vunpack.c.h.b16 %v1340
    %v2597 = vunpack.c.l.b16 %v1341
    %v2598 = vunpack.c.h.b16 %v1341
    %v2599 = vunpack.c.l.b16 %v1342
    %v2600 = vunpack.c.h.b16 %v1342
    %v2601 = vunpack.c.l.b16 %v1343
    %v2602 = vunpack.c.h.b16 %v1343
    %v2603 = vunpack.c.l.b16 %v1344
    %v2604 = vunpack.c.h.b16 %v1344
    %v2605 = vunpack.c.l.b16 %v1345
    %v2606 = vunpack.c.h.b16 %v1345
    %v2607 = vunpack.c.l.b16 %v1346
    %v2608 = vunpack.c.h.b16 %v1346
    %v2609 = vunpack.c.l.b16 %v1347
    %v2610 = vunpack.c.h.b16 %v1347
    %v2611 = vunpack.c.l.b16 %v1348
    %v2612 = vunpack.c.h.b16 %v1348
    %v2613 = vunpack.c.l.b16 %v1349
    %v2614 = vunpack.c.h.b16 %v1349
    %v2615 = vunpack.c.l.b16 %v1350
    %v2616 = vunpack.c.h.b16 %v1350
    %v2617 = vunpack.c.l.b16 %v1351
    %v2618 = vunpack.c.h.b16 %v1351
    %v2619 = vunpack.c.l.b16 %v1352
    %v2620 = vunpack.c.h.b16 %v1352
    %v2621 = vunpack.c.l.b16 %v1353
    %v2622 = vunpack.c.h.b16 %v1353
    %v2623 = vunpack.c.l.b16 %v1354
    %v2624 = vunpack.c.h.b16 %v1354
    %v2625 = vunpack.c.l.b16 %v1355
    %v2626 = vunpack.c.h.b16 %v1355
    %v2627 = vunpack.c.l.b16 %v1356
    %v2628 = vunpack.c.h.b16 %v1356
    %v2629 = vunpack.c.l.b16 %v1357
    %v2630 = vunpack.c.h.b16 %v1357
    %v2631 = vunpack.c.l.b16 %v1358
    %v2632 = vunpack.c.h.b16 %v1358
    %v2633 = vunpack.c.l.b16 %v1359
    %v2634 = vunpack.c.h.b16 %v1359
    %v2635 = vunpack.c.l.b16 %v1360
    %v2636 = vunpack.c.h.b16 %v1360
    %v2637 = vunpack.c.l.b16 %v1361
    %v2638 = vunpack.c.h.b16 %v1361
    %v2639 = vunpack.c.l.b16 %v1362
    %v2640 = vunpack.c.h.b16 %v1362
    %v2641 = vunpack.c.l.b16 %v1363
    %v2642 = vunpack.c.h.b16 %v1363
    %v2643 = vunpack.c.l.b16 %v1364
    %v2644 = vunpack.c.h.b16 %v1364
    %v2645 = vunpack.c.l.b16 %v1365
    %v2646 = vunpack.c.h.b16 %v1365
    %v2647 = vunpack.c.l.b16 %v1366
    %v2648 = vunpack.c.h.b16 %v1366
    %v2649 = vunpack.c.l.b16 %v1367
    %v2650 = vunpack.c.h.b16 %v1367
    %v2651 = vunpack.c.l.b16 %v1368
    %v2652 = vunpack.c.h.b16 %v1368
    %v2653 = vunpack.c.l.b16 %v1369
    %v2654 = vunpack.c.h.b16 %v1369
    %v2655 = vunpack.c.l.b16 %v1370
    %v2656 = vunpack.c.h.b16 %v1370
    %v2657 = vunpack.c.l.b16 %v1371
    %v2658 = vunpack.c.h.b16 %v1371
    %v2659 = vunpack.c.l.b16 %v1372
    %v2660 = vunpack.c.h.b16 %v1372
    %v2661 = vunpack.c.l.b16 %v1373
    %v2662 = vunpack.c.h.b16 %v1373
    %v2663 = vunpack.c.l.b16 %v1374
    %v2664 = vunpack.c.h.b16 %v1374
    %v2665 = vunpack.c.l.b16 %v1375
    %v2666 = vunpack.c.h.b16 %v1375
    %v2667 = vunpack.c.l.b16 %v1376
    %v2668 = vunpack.c.h.b16 %v1376
    %v2669 = vunpack.c.l.b16 %v1377
    %v2670 = vunpack.c.h.b16 %v1377
    %v2671 = vunpack.c.l.b16 %v1378
    %v2672 = vunpack.c.h.b16 %v1378
    %v2673 = vunpack.c.l.b16 %v1379
    %v2674 = vunpack.c.h.b16 %v1379
    %v2675 = vunpack.c.l.b16 %v1380
    %v2676 = vunpack.c.h.b16 %v1380
    %v2677 = vunpack.c.l.b16 %v1381
    %v2678 = vunpack.c.h.b16 %v1381
    %v2679 = vunpack.c.l.b16 %v1382
    %v2680 = vunpack.c.h.b16 %v1382
    %v2681 = vunpack.c.l.b16 %v1383
    %v2682 = vunpack.c.h.b16 %v1383
    %v2683 = vunpack.c.l.b16 %v1384
    %v2684 = vunpack.c.h.b16 %v1384
    %v2685 = vunpack.c.l.b16 %v1385
    %v2686 = vunpack.c.h.b16 %v1385
    %v2687 = vunpack.c.l.b16 %v1386
    %v2688 = vunpack.c.h.b16 %v1386
    %v2689 = vunpack.c.l.b16 %v1387
    %v2690 = vunpack.c.h.b16 %v1387
    %v2691 = vunpack.c.l.b16 %v1388
    %v2692 = vunpack.c.h.b16 %v1388
    %v2693 = vunpack.c.l.b16 %v1389
    %v2694 = vunpack.c.h.b16 %v1389
    %v2695 = vunpack.c.l.b16 %v1390
    %v2696 = vunpack.c.h.b16 %v1390
    %v2697 = vunpack.c.l.b16 %v1391
    %v2698 = vunpack.c.h.b16 %v1391
    %v2699 = vunpack.c.l.b16 %v1392
    %v2700 = vunpack.c.h.b16 %v1392
    %v2701 = vunpack.c.l.b16 %v1393
    %v2702 = vunpack.c.h.b16 %v1393
    %v2703 = vunpack.c.l.b16 %v1394
    %v2704 = vunpack.c.h.b16 %v1394
    %v2705 = vunpack.c.l.b16 %v1395
    %v2706 = vunpack.c.h.b16 %v1395
    %v2707 = vunpack.c.l.b16 %v1396
    %v2708 = vunpack.c.h.b16 %v1396
    %v2709 = vunpack.c.l.b16 %v1397
    %v2710 = vunpack.c.h.b16 %v1397
    %v2711 = vunpack.c.l.b16 %v1398
    %v2712 = vunpack.c.h.b16 %v1398
    %v2713 = vunpack.c.l.b16 %v1399
    %v2714 = vunpack.c.h.b16 %v1399
    %v2715 = vunpack.c.l.b16 %v1400
    %v2716 = vunpack.c.h.b16 %v1400
    %v2717 = vunpack.c.l.b16 %v1401
    %v2718 = vunpack.c.h.b16 %v1401
    %v2719 = vunpack.c.l.b16 %v1402
    %v2720 = vunpack.c.h.b16 %v1402
    %v2721 = vunpack.c.l.b16 %v1403
    %v2722 = vunpack.c.h.b16 %v1403
    %v2723 = vunpack.c.l.b16 %v1404
    %v2724 = vunpack.c.h.b16 %v1404
    %v2725 = vunpack.c.l.b16 %v1405
    %v2726 = vunpack.c.h.b16 %v1405
    %v2727 = vunpack.c.l.b16 %v1406
    %v2728 = vunpack.c.h.b16 %v1406
    %v2729 = vunpack.c.l.b16 %v1407
    %v2730 = vunpack.c.h.b16 %v1407
    %v2731 = vunpack.c.l.b16 %v1408
    %v2732 = vunpack.c.h.b16 %v1408
    %v2733 = vunpack.c.l.b16 %v1409
    %v2734 = vunpack.c.h.b16 %v1409
    %v2735 = vunpack.c.l.b16 %v1410
    %v2736 = vunpack.c.h.b16 %v1410
    %v2737 = vunpack.c.l.b16 %v1411
    %v2738 = vunpack.c.h.b16 %v1411
    %v2739 = vunpack.c.l.b16 %v1412
    %v2740 = vunpack.c.h.b16 %v1412
    %v2741 = vunpack.c.l.b16 %v1413
    %v2742 = vunpack.c.h.b16 %v1413
    %v2743 = vunpack.c.l.b16 %v1414
    %v2744 = vunpack.c.h.b16 %v1414
    %v2745 = vunpack.c.l.b16 %v1415
    %v2746 = vunpack.c.h.b16 %v1415
    %v2747 = vunpack.c.l.b16 %v1416
    %v2748 = vunpack.c.h.b16 %v1416
    %v2749 = vunpack.c.l.b16 %v1417
    %v2750 = vunpack.c.h.b16 %v1417
    %v2751 = vunpack.c.l.b16 %v1418
    %v2752 = vunpack.c.h.b16 %v1418
    %v2753 = vunpack.c.l.b16 %v1419
    %v2754 = vunpack.c.h.b16 %v1419
    %v2755 = vunpack.c.l.b16 %v1420
    %v2756 = vunpack.c.h.b16 %v1420
    %v2757 = vunpack.c.l.b16 %v1421
    %v2758 = vunpack.c.h.b16 %v1421
    %v2759 = vunpack.c.l.b16 %v1422
    %v2760 = vunpack.c.h.b16 %v1422
    %v2761 = vunpack.c.l.b16 %v1423
    %v2762 = vunpack.c.h.b16 %v1423
    %v2763 = vunpack.c.l.b16 %v1424
    %v2764 = vunpack.c.h.b16 %v1424
    %v2765 = vunpack.c.l.b16 %v1425
    %v2766 = vunpack.c.h.b16 %v1425
    %v2767 = vunpack.c.l.b16 %v1426
    %v2768 = vunpack.c.h.b16 %v1426
    %v2769 = vunpack.c.l.b16 %v1427
    %v2770 = vunpack.c.h.b16 %v1427
    %v2771 = vunpack.c.l.b16 %v1428
    %v2772 = vunpack.c.h.b16 %v1428
    %v2773 = vunpack.c.l.b16 %v1429
    %v2774 = vunpack.c.h.b16 %v1429
    %v2775 = vunpack.c.l.b16 %v1430
    %v2776 = vunpack.c.h.b16 %v1430
    %v2777 = vunpack.c.l.b16 %v1431
    %v2778 = vunpack.c.h.b16 %v1431
    %v2779 = vunpack.c.l.b16 %v1432
    %v2780 = vunpack.c.h.b16 %v1432
    %v2781 = vunpack.c.l.b16 %v1433
    %v2782 = vunpack.c.h.b16 %v1433
    %v2783 = vunpack.c.l.b16 %v1434
    %v2784 = vunpack.c.h.b16 %v1434
    %v2785 = vunpack.c.l.b16 %v1435
    %v2786 = vunpack.c.h.b16 %v1435
    %v2787 = vunpack.c.l.b16 %v1436
    %v2788 = vunpack.c.h.b16 %v1436
    %v2789 = vunpack.c.l.b16 %v1437
    %v2790 = vunpack.c.h.b16 %v1437
    %v2791 = vunpack.c.l.b16 %v1438
    %v2792 = vunpack.c.h.b16 %v1438
    %v2793 = vunpack.c.l.b16 %v1439
    %v2794 = vunpack.c.h.b16 %v1439
    %v2795 = vunpack.c.l.b16 %v1440
    %v2796 = vunpack.c.h.b16 %v1440
    %v2797 = vunpack.c.l.b16 %v1441
    %v2798 = vunpack.c.h.b16 %v1441
    %v2799 = vunpack.c.l.b16 %v1442
    %v2800 = vunpack.c.h.b16 %v1442
    %v2801 = vunpack.c.l.b16 %v1443
    %v2802 = vunpack.c.h.b16 %v1443
    %v2803 = vunpack.c.l.b16 %v1444
    %v2804 = vunpack.c.h.b16 %v1444
    %v2805 = vunpack.c.l.b16 %v1445
    %v2806 = vunpack.c.h.b16 %v1445
    %v2807 = vunpack.c.l.b16 %v1446
    %v2808 = vunpack.c.h.b16 %v1446
    %v2809 = vunpack.c.l.b16 %v1447
    %v2810 = vunpack.c.h.b16 %v1447
    %v2811 = vunpack.c.l.b16 %v1448
    %v2812 = vunpack.c.h.b16 %v1448
    %v2813 = vunpack.c.l.b16 %v1449
    %v2814 = vunpack.c.h.b16 %v1449
    %v2815 = vunpack.c.l.b16 %v1450
    %v2816 = vunpack.c.h.b16 %v1450
    %v2817 = vunpack.c.l.b16 %v1451
    %v2818 = vunpack.c.h.b16 %v1451
    %v2819 = vunpack.c.l.b16 %v1452
    %v2820 = vunpack.c.h.b16 %v1452
    %v2821 = vunpack.c.l.b16 %v1453
    %v2822 = vunpack.c.h.b16 %v1453
    %v2823 = vunpack.c.l.b16 %v1454
    %v2824 = vunpack.c.h.b16 %v1454
    %v2825 = vunpack.c.l.b16 %v1455
    %v2826 = vunpack.c.h.b16 %v1455
    %v2827 = vunpack.c.l.b16 %v1456
    %v2828 = vunpack.c.h.b16 %v1456
    %v2829 = vunpack.c.l.b16 %v1457
    %v2830 = vunpack.c.h.b16 %v1457
    %v2831 = vunpack.c.l.b16 %v1458
    %v2832 = vunpack.c.h.b16 %v1458
    %v2833 = vunpack.c.l.b16 %v1459
    %v2834 = vunpack.c.h.b16 %v1459
    %v2835 = vunpack.c.l.b16 %v1460
    %v2836 = vunpack.c.h.b16 %v1460
    %v2837 = vunpack.c.l.b16 %v1461
    %v2838 = vunpack.c.h.b16 %v1461
    %v2839 = vunpack.c.l.b16 %v1462
    %v2840 = vunpack.c.h.b16 %v1462
    %v2841 = vunpack.c.l.b16 %v1463
    %v2842 = vunpack.c.h.b16 %v1463
    %v2843 = vunpack.c.l.b16 %v1464
    %v2844 = vunpack.c.h.b16 %v1464
    %v2845 = vunpack.c.l.b16 %v1465
    %v2846 = vunpack.c.h.b16 %v1465
    %v2847 = vunpack.c.l.b16 %v1466
    %v2848 = vunpack.c.h.b16 %v1466
    %v2849 = vunpack.c.l.b16 %v1467
    %v2850 = vunpack.c.h.b16 %v1467
    %v2851 = vunpack.c.l.b16 %v1468
    %v2852 = vunpack.c.h.b16 %v1468
    %v2853 = vunpack.c.l.b16 %v1469
    %v2854 = vunpack.c.h.b16 %v1469
    %v2855 = vunpack.c.l.b16 %v1470
    %v2856 = vunpack.c.h.b16 %v1470
    %v2857 = vunpack.c.l.b16 %v1471
    %v2858 = vunpack.c.h.b16 %v1471
    %v2859 = vunpack.c.l.b16 %v1472
    %v2860 = vunpack.c.h.b16 %v1472
    %v2861 = vunpack.c.l.b16 %v1473
    %v2862 = vunpack.c.h.b16 %v1473
    %v2863 = vunpack.c.l.b16 %v1474
    %v2864 = vunpack.c.h.b16 %v1474
    %v2865 = vunpack.c.l.b16 %v1475
    %v2866 = vunpack.c.h.b16 %v1475
    %v2867 = vunpack.c.l.b16 %v1476
    %v2868 = vunpack.c.h.b16 %v1476
    %v2869 = vunpack.c.l.b16 %v1477
    %v2870 = vunpack.c.h.b16 %v1477
    %v2871 = vunpack.c.l.b16 %v1478
    %v2872 = vunpack.c.h.b16 %v1478
    %v2873 = vunpack.c.l.b16 %v1479
    %v2874 = vunpack.c.h.b16 %v1479
    %v2875 = vunpack.c.l.b16 %v1480
    %v2876 = vunpack.c.h.b16 %v1480
    %v2877 = vunpack.c.l.b16 %v1481
    %v2878 = vunpack.c.h.b16 %v1481
    %v2879 = vunpack.c.l.b16 %v1482
    %v2880 = vunpack.c.h.b16 %v1482
    %v2881 = vunpack.c.l.b16 %v1483
    %v2882 = vunpack.c.h.b16 %v1483
    %v2883 = vunpack.c.l.b16 %v1484
    %v2884 = vunpack.c.h.b16 %v1484
    %v2885 = vunpack.c.l.b16 %v1485
    %v2886 = vunpack.c.h.b16 %v1485
    %v2887 = vunpack.c.l.b16 %v1486
    %v2888 = vunpack.c.h.b16 %v1486
    %v2889 = vunpack.c.l.b16 %v1487
    %v2890 = vunpack.c.h.b16 %v1487
    %v2891 = vunpack.c.l.b16 %v1488
    %v2892 = vunpack.c.h.b16 %v1488
    %v2893 = vunpack.c.l.b16 %v1489
    %v2894 = vunpack.c.h.b16 %v1489
    %v2895 = vunpack.c.l.b16 %v1490
    %v2896 = vunpack.c.h.b16 %v1490
    %v2897 = vunpack.c.l.b16 %v1491
    %v2898 = vunpack.c.h.b16 %v1491
    %v2899 = vunpack.c.l.b16 %v1492
    %v2900 = vunpack.c.h.b16 %v1492
    %v2901 = vunpack.c.l.b16 %v1493
    %v2902 = vunpack.c.h.b16 %v1493
    %v2903 = vunpack.c.l.b16 %v1494
    %v2904 = vunpack.c.h.b16 %v1494
    %v2905 = vunpack.c.l.b16 %v1495
    %v2906 = vunpack.c.h.b16 %v1495
    %v2907 = vunpack.c.l.b16 %v1496
    %v2908 = vunpack.c.h.b16 %v1496
    %v2909 = vunpack.c.l.b16 %v1497
    %v2910 = vunpack.c.h.b16 %v1497
    %v2911 = vunpack.c.l.b16 %v1498
    %v2912 = vunpack.c.h.b16 %v1498
    %v2913 = vunpack.c.l.b16 %v1499
    %v2914 = vunpack.c.h.b16 %v1499
    %v2915 = vunpack.c.l.b16 %v1500
    %v2916 = vunpack.c.h.b16 %v1500
    %v2917 = vunpack.c.l.b16 %v1501
    %v2918 = vunpack.c.h.b16 %v1501
    %v2919 = vunpack.c.l.b16 %v1502
    %v2920 = vunpack.c.h.b16 %v1502
    %v2921 = vunpack.c.l.b16 %v1503
    %v2922 = vunpack.c.h.b16 %v1503
    %v2923 = vunpack.c.l.b16 %v1504
    %v2924 = vunpack.c.h.b16 %v1504
    %v2925 = vunpack.c.l.b16 %v1505
    %v2926 = vunpack.c.h.b16 %v1505
    %v2927 = vunpack.c.l.b16 %v1506
    %v2928 = vunpack.c.h.b16 %v1506
    %v2929 = vunpack.c.l.b16 %v1507
    %v2930 = vunpack.c.h.b16 %v1507
    %v2931 = vunpack.c.l.b16 %v1508
    %v2932 = vunpack.c.h.b16 %v1508
    %v2933 = vunpack.c.l.b16 %v1509
    %v2934 = vunpack.c.h.b16 %v1509
    %v2935 = vunpack.c.l.b16 %v1510
    %v2936 = vunpack.c.h.b16 %v1510
    %v2937 = vunpack.c.l.b16 %v1511
    %v2938 = vunpack.c.h.b16 %v1511
    %v2939 = vunpack.c.l.b16 %v1512
    %v2940 = vunpack.c.h.b16 %v1512
    %v2941 = vunpack.c.l.b16 %v1513
    %v2942 = vunpack.c.h.b16 %v1513
    %v2943 = vunpack.c.l.b16 %v1514
    %v2944 = vunpack.c.h.b16 %v1514
    %v2945 = vunpack.c.l.b16 %v1515
    %v2946 = vunpack.c.h.b16 %v1515
    %v2947 = vunpack.c.l.b16 %v1516
    %v2948 = vunpack.c.h.b16 %v1516
    %v2949 = vunpack.c.l.b16 %v1517
    %v2950 = vunpack.c.h.b16 %v1517
    %v2951 = vunpack.c.l.b16 %v1518
    %v2952 = vunpack.c.h.b16 %v1518
    %v2953 = vunpack.c.l.b16 %v1519
    %v2954 = vunpack.c.h.b16 %v1519
    %v2955 = vunpack.c.l.b16 %v1520
    %v2956 = vunpack.c.h.b16 %v1520
    %v2957 = vunpack.c.l.b16 %v1521
    %v2958 = vunpack.c.h.b16 %v1521
    %v2959 = vunpack.c.l.b16 %v1522
    %v2960 = vunpack.c.h.b16 %v1522
    %v2961 = vunpack.c.l.b16 %v1523
    %v2962 = vunpack.c.h.b16 %v1523
    %v2963 = vunpack.c.l.b16 %v1524
    %v2964 = vunpack.c.h.b16 %v1524
    %v2965 = vunpack.c.l.b16 %v1525
    %v2966 = vunpack.c.h.b16 %v1525
    %v2967 = vunpack.c.l.b16 %v1526
    %v2968 = vunpack.c.h.b16 %v1526
    %v2969 = vunpack.c.l.b16 %v1527
    %v2970 = vunpack.c.h.b16 %v1527
    %v2971 = vunpack.c.l.b16 %v1528
    %v2972 = vunpack.c.h.b16 %v1528
    %v2973 = vunpack.c.l.b16 %v1529
    %v2974 = vunpack.c.h.b16 %v1529
    %v2975 = vunpack.c.l.b16 %v1530
    %v2976 = vunpack.c.h.b16 %v1530
    %v2977 = vunpack.c.l.b16 %v1531
    %v2978 = vunpack.c.h.b16 %v1531
    %v2979 = vunpack.c.l.b16 %v1532
    %v2980 = vunpack.c.h.b16 %v1532
    %v2981 = vunpack.c.l.b16 %v1533
    %v2982 = vunpack.c.h.b16 %v1533
    %v2983 = vunpack.c.l.b16 %v1534
    %v2984 = vunpack.c.h.b16 %v1534
    %v2985 = vunpack.c.l.b16 %v1535
    %v2986 = vunpack.c.h.b16 %v1535
    %v2987 = vunpack.c.l.b16 %v1536
    %v2988 = vunpack.c.h.b16 %v1536
    %v2989 = vunpack.c.l.b16 %v1537
    %v2990 = vunpack.c.h.b16 %v1537
    %v2991 = vunpack.c.l.b16 %v1538
    %v2992 = vunpack.c.h.b16 %v1538
    %v2993 = vunpack.c.l.b16 %v1539
    %v2994 = vunpack.c.h.b16 %v1539
    %v2995 = vunpack.c.l.b16 %v1540
    %v2996 = vunpack.c.h.b16 %v1540
    %v2997 = vunpack.c.l.b16 %v1541
    %v2998 = vunpack.c.h.b16 %v1541
    %v2999 = vunpack.c.l.b16 %v1542
    %v3000 = vunpack.c.h.b16 %v1542
    %v3001 = vunpack.c.l.b16 %v1543
    %v3002 = vunpack.c.h.b16 %v1543
    %v3003 = vunpack.c.l.b16 %v1544
    %v3004 = vunpack.c.h.b16 %v1544
    %v3005 = vunpack.c.l.b16 %v1545
    %v3006 = vunpack.c.h.b16 %v1545
    %v3007 = vunpack.c.l.b16 %v1546
    %v3008 = vunpack.c.h.b16 %v1546
    %v3009 = vunpack.c.l.b16 %v1547
    %v3010 = vunpack.c.h.b16 %v1547
    %v3011 = vunpack.c.l.b16 %v1548
    %v3012 = vunpack.c.h.b16 %v1548
    %v3013 = vunpack.c.l.b16 %v1549
    %v3014 = vunpack.c.h.b16 %v1549
    %v3015 = vunpack.c.l.b16 %v1550
    %v3016 = vunpack.c.h.b16 %v1550
    %v3017 = vunpack.c.l.b16 %v1551
    %v3018 = vunpack.c.h.b16 %v1551
    %v3019 = vunpack.c.l.b16 %v1552
    %v3020 = vunpack.c.h.b16 %v1552
    %v3021 = vunpack.c.l.b16 %v1553
    %v3022 = vunpack.c.h.b16 %v1553
    %v3023 = vunpack.c.l.b16 %v1554
    %v3024 = vunpack.c.h.b16 %v1554
    %v3025 = vunpack.c.l.b16 %v1555
    %v3026 = vunpack.c.h.b16 %v1555
    %v3027 = vunpack.c.l.b16 %v1556
    %v3028 = vunpack.c.h.b16 %v1556
    %v3029 = vunpack.c.l.b16 %v1557
    %v3030 = vunpack.c.h.b16 %v1557
    %v3031 = vunpack.c.l.b16 %v1558
    %v3032 = vunpack.c.h.b16 %v1558
    %v3033 = vunpack.c.l.b16 %v1559
    %v3034 = vunpack.c.h.b16 %v1559
    %v3035 = vunpack.c.l.b16 %v1560
    %v3036 = vunpack.c.h.b16 %v1560
    %v3037 = vunpack.c.l.b16 %v1561
    %v3038 = vunpack.c.h.b16 %v1561
    %v3039 = vunpack.c.l.b16 %v1562
    %v3040 = vunpack.c.h.b16 %v1562
    %v3041 = vunpack.c.l.b16 %v1563
    %v3042 = vunpack.c.h.b16 %v1563
    %v3043 = vunpack.c.l.b16 %v1564
    %v3044 = vunpack.c.h.b16 %v1564
    %v3045 = vunpack.c.l.b16 %v1565
    %v3046 = vunpack.c.h.b16 %v1565
    %v3047 = vunpack.c.l.b16 %v1566
    %v3048 = vunpack.c.h.b16 %v1566
    %v3049 = vunpack.c.l.b16 %v1567
    %v3050 = vunpack.c.h.b16 %v1567
    %v3051 = vunpack.c.l.b16 %v1568
    %v3052 = vunpack.c.h.b16 %v1568
    %v3053 = vunpack.c.l.b16 %v1569
    %v3054 = vunpack.c.h.b16 %v1569
    %v3055 = vunpack.c.l.b16 %v1570
    %v3056 = vunpack.c.h.b16 %v1570
    %v3057 = vunpack.c.l.b16 %v1571
    %v3058 = vunpack.c.h.b16 %v1571
    %v3059 = vunpack.c.l.b16 %v1572
    %v3060 = vunpack.c.h.b16 %v1572
    %v3061 = vunpack.c.l.b16 %v1573
    %v3062 = vunpack.c.h.b16 %v1573
    %v3063 = vunpack.c.l.b16 %v1574
    %v3064 = vunpack.c.h.b16 %v1574
    %v3065 = vunpack.c.l.b16 %v1575
    %v3066 = vunpack.c.h.b16 %v1575
    %v3067 = vunpack.c.l.b16 %v1576
    %v3068 = vunpack.c.h.b16 %v1576
    %v3069 = vunpack.c.l.b16 %v1577
    %v3070 = vunpack.c.h.b16 %v1577
    %v3071 = vunpack.c.l.b16 %v1578
    %v3072 = vunpack.c.h.b16 %v1578
    %v3073 = vunpack.c.l.b16 %v1579
    %v3074 = vunpack.c.h.b16 %v1579
    %v3075 = vunpack.c.l.b16 %v1580
    %v3076 = vunpack.c.h.b16 %v1580
    %v3077 = vunpack.c.l.b16 %v1581
    %v3078 = vunpack.c.h.b16 %v1581
    %v3079 = vunpack.c.l.b16 %v1582
    %v3080 = vunpack.c.h.b16 %v1582
    %v3081 = vunpack.c.l.b16 %v1583
    %v3082 = vunpack.c.h.b16 %v1583
    %v3083 = vunpack.c.l.b16 %v1584
    %v3084 = vunpack.c.h.b16 %v1584
    %v3085 = vunpack.c.l.b16 %v1585
    %v3086 = vunpack.c.h.b16 %v1585
    %v3087 = vunpack.c.l.b16 %v1586
    %v3088 = vunpack.c.h.b16 %v1586
    %v3089 = vunpack.c.l.b16 %v1587
    %v3090 = vunpack.c.h.b16 %v1587
    %v3091 = vunpack.c.l.b16 %v1588
    %v3092 = vunpack.c.h.b16 %v1588
    %v3093 = vunpack.c.l.b16 %v1589
    %v3094 = vunpack.c.h.b16 %v1589
    %v3095 = vunpack.c.l.b16 %v1590
    %v3096 = vunpack.c.h.b16 %v1590
    %v3097 = vunpack.c.l.b16 %v1591
    %v3098 = vunpack.c.h.b16 %v1591
    %v3099 = vunpack.c.l.b16 %v1592
    %v3100 = vunpack.c.h.b16 %v1592
    %v3101 = vunpack.c.l.b16 %v1593
    %v3102 = vunpack.c.h.b16 %v1593
    %v3103 = vunpack.c.l.b16 %v1594
    %v3104 = vunpack.c.h.b16 %v1594
    %v3105 = vunpack.c.l.b16 %v1595
    %v3106 = vunpack.c.h.b16 %v1595
    %v3107 = vunpack.c.l.b16 %v1596
    %v3108 = vunpack.c.h.b16 %v1596
    %v3109 = vunpack.c.l.b16 %v1597
    %v3110 = vunpack.c.h.b16 %v1597
    %v3111 = vunpack.c.l.b16 %v1598
    %v3112 = vunpack.c.h.b16 %v1598
    %v3113 = vunpack.c.l.b16 %v1599
    %v3114 = vunpack.c.h.b16 %v1599
    %v3115 = vunpack.c.l.b16 %v1600
    %v3116 = vunpack.c.h.b16 %v1600
    %v3117 = vunpack.c.l.b16 %v1601
    %v3118 = vunpack.c.h.b16 %v1601
    %v3119 = vunpack.c.l.b16 %v1602
    %v3120 = vunpack.c.h.b16 %v1602
    %v3121 = vunpack.c.l.b16 %v1603
    %v3122 = vunpack.c.h.b16 %v1603
    %v3123 = vunpack.c.l.b16 %v1604
    %v3124 = vunpack.c.h.b16 %v1604
    %v3125 = vunpack.c.l.b16 %v1605
    %v3126 = vunpack.c.h.b16 %v1605
    %v3127 = vunpack.c.l.b16 %v1606
    %v3128 = vunpack.c.h.b16 %v1606
    %v3129 = vunpack.c.l.b16 %v1607
    %v3130 = vunpack.c.h.b16 %v1607
    %v3131 = vunpack.c.l.b16 %v1608
    %v3132 = vunpack.c.h.b16 %v1608
    %v3133 = vunpack.c.l.b16 %v1609
    %v3134 = vunpack.c.h.b16 %v1609
    %v3135 = vunpack.c.l.b16 %v1610
    %v3136 = vunpack.c.h.b16 %v1610
    %v3137 = vunpack.c.l.b16 %v1611
    %v3138 = vunpack.c.h.b16 %v1611
    %v3139 = vunpack.c.l.b16 %v1612
    %v3140 = vunpack.c.h.b16 %v1612
    %v3141 = vunpack.c.l.b16 %v1613
    %v3142 = vunpack.c.h.b16 %v1613
    %v3143 = vunpack.c.l.b16 %v1614
    %v3144 = vunpack.c.h.b16 %v1614
    %v3145 = vunpack.c.l.b16 %v1615
    %v3146 = vunpack.c.h.b16 %v1615
    %v3147 = vunpack.c.l.b16 %v1616
    %v3148 = vunpack.c.h.b16 %v1616
    %v3149 = vunpack.c.l.b16 %v1617
    %v3150 = vunpack.c.h.b16 %v1617
    %v3151 = vunpack.c.l.b16 %v1618
    %v3152 = vunpack.c.h.b16 %v1618
    %v3153 = vunpack.c.l.b16 %v1619
    %v3154 = vunpack.c.h.b16 %v1619
    %v3155 = vunpack.c.l.b16 %v1620
    %v3156 = vunpack.c.h.b16 %v1620
    %v3157 = vunpack.c.l.b16 %v1621
    %v3158 = vunpack.c.h.b16 %v1621
    %v3159 = vunpack.c.l.b16 %v1622
    %v3160 = vunpack.c.h.b16 %v1622
    %v3161 = vunpack.c.l.b16 %v1623
    %v3162 = vunpack.c.h.b16 %v1623
    %v3163 = vunpack.c.l.b16 %v1624
    %v3164 = vunpack.c.h.b16 %v1624
    %v3165 = vunpack.c.l.b16 %v1625
    %v3166 = vunpack.c.h.b16 %v1625
    %v3167 = vunpack.c.l.b16 %v1626
    %v3168 = vunpack.c.h.b16 %v1626
    %v3169 = vunpack.c.l.b16 %v1627
    %v3170 = vunpack.c.h.b16 %v1627
    %v3171 = vunpack.c.l.b16 %v1628
    %v3172 = vunpack.c.h.b16 %v1628
    %v3173 = vunpack.c.l.b16 %v1629
    %v3174 = vunpack.c.h.b16 %v1629
    %v3175 = vunpack.c.l.b16 %v1630
    %v3176 = vunpack.c.h.b16 %v1630
    %v3177 = vunpack.c.l.b16 %v1631
    %v3178 = vunpack.c.h.b16 %v1631
    %v3179 = vunpack.c.l.b16 %v1632
    %v3180 = vunpack.c.h.b16 %v1632
    %v3181 = vunpack.c.l.b16 %v1633
    %v3182 = vunpack.c.h.b16 %v1633
    %v3183 = vunpack.c.l.b16 %v1634
    %v3184 = vunpack.c.h.b16 %v1634
    %v3185 = vunpack.c.l.b16 %v1635
    %v3186 = vunpack.c.h.b16 %v1635
    %v3187 = vunpack.c.l.b16 %v1636
    %v3188 = vunpack.c.h.b16 %v1636
    %v3189 = vunpack.c.l.b16 %v1637
    %v3190 = vunpack.c.h.b16 %v1637
    %v3191 = vunpack.c.l.b16 %v1638
    %v3192 = vunpack.c.h.b16 %v1638
    %v3193 = vpack.c.b16 %v2177, %v2169
    %v3194 = vpack.c.b16 %v2178, %v2170
    %v3195 = vpack.c.b16 %v2179, %v2171
    %v3196 = vpack.c.b16 %v2180, %v2172
    %v3197 = vpack.c.b16 %v2181, %v2173
    %v3198 = vpack.c.b16 %v2182, %v2174
    %v3199 = vpack.c.b16 %v2183, %v2175
    %v3200 = vpack.c.b16 %v2184, %v2176
    %v3201 = vpack.c.b16 %v2193, %v2185
    %v3202 = vpack.c.b16 %v2194, %v2186
    %v3203 = vpack.c.b16 %v2195, %v2187
    %v3204 = vpack.c.b16 %v2196, %v2188
    %v3205 = vpack.c.b16 %v2197, %v2189
    %v3206 = vpack.c.b16 %v2198, %v2190
    %v3207 = vpack.c.b16 %v2199, %v2191
    %v3208 = vpack.c.b16 %v2200, %v2192
    %v3209 = vpack.c.b16 %v2209, %v2201
    %v3210 = vpack.c.b16 %v2210, %v2202
    %v3211 = vpack.c.b16 %v2211, %v2203
    %v3212 = vpack.c.b16 %v2212, %v2204
    %v3213 = vpack.c.b16 %v2213, %v2205
    %v3214 = vpack.c.b16 %v2214, %v2206
    %v3215 = vpack.c.b16 %v2215, %v2207
    %v3216 = vpack.c.b16 %v2216, %v2208
    %v3217 = vpack.c.b16 %v2225, %v2217
    %v3218 = vpack.c.b16 %v2226, %v2218
    %v3219 = vpack.c.b16 %v2227, %v2219
    %v3220 = vpack.c.b16 %v2228, %v2220
    %v3221 = vpack.c.b16 %v2229, %v2221
    %v3222 = vpack.c.b16 %v2230, %v2222
    %v3223 = vpack.c.b16 %v2231, %v2223
    %v3224 = vpack.c.b16 %v2232, %v2224
    %v3225 = vpack.c.b16 %v2241, %v2233
    %v3226 = vpack.c.b16 %v2242, %v2234
    %v3227 = vpack.c.b16 %v2243, %v2235
    %v3228 = vpack.c.b16 %v2244, %v2236
    %v3229 = vpack.c.b16 %v2245, %v2237
    %v3230 = vpack.c.b16 %v2246, %v2238
    %v3231 = vpack.c.b16 %v2247, %v2239
    %v3232 = vpack.c.b16 %v2248, %v2240
    %v3233 = vpack.c.b16 %v2257, %v2249
    %v3234 = vpack.c.b16 %v2258, %v2250
    %v3235 = vpack.c.b16 %v2259, %v2251
    %v3236 = vpack.c.b16 %v2260, %v2252
    %v3237 = vpack.c.b16 %v2261, %v2253
    %v3238 = vpack.c.b16 %v2262, %v2254
    %v3239 = vpack.c.b16 %v2263, %v2255
    %v3240 = vpack.c.b16 %v2264, %v2256
    %v3241 = vpack.c.b16 %v2273, %v2265
    %v3242 = vpack.c.b16 %v2274, %v2266
    %v3243 = vpack.c.b16 %v2275, %v2267
    %v3244 = vpack.c.b16 %v2276, %v2268
    %v3245 = vpack.c.b16 %v2277, %v2269
    %v3246 = vpack.c.b16 %v2278, %v2270
    %v3247 = vpack.c.b16 %v2279, %v2271
    %v3248 = vpack.c.b16 %v2280, %v2272
    %v3249 = vpack.c.b16 %v2289, %v2281
    %v3250 = vpack.c.b16 %v2290, %v2282
    %v3251 = vpack.c.b16 %v2291, %v2283
    %v3252 = vpack.c.b16 %v2292, %v2284
    %v3253 = vpack.c.b16 %v2293, %v2285
    %v3254 = vpack.c.b16 %v2294, %v2286
    %v3255 = vpack.c.b16 %v2295, %v2287
    %v3256 = vpack.c.b16 %v2296, %v2288
    %v3257 = vpack.c.b16 %v2305, %v2297
    %v3258 = vpack.c.b16 %v2306, %v2298
    %v3259 = vpack.c.b16 %v2307, %v2299
    %v3260 = vpack.c.b16 %v2308, %v2300
    %v3261 = vpack.c.b16 %v2309, %v2301
    %v3262 = vpack.c.b16 %v2310, %v2302
    %v3263 = vpack.c.b16 %v2311, %v2303
    %v3264 = vpack.c.b16 %v2312, %v2304
    %v3265 = vpack.c.b16 %v2321, %v2313
    %v3266 = vpack.c.b16 %v2322, %v2314
    %v3267 = vpack.c.b16 %v2323, %v2315
    %v3268 = vpack.c.b16 %v2324, %v2316
    %v3269 = vpack.c.b16 %v2325, %v2317
    %v3270 = vpack.c.b16 %v2326, %v2318
    %v3271 = vpack.c.b16 %v2327, %v2319
    %v3272 = vpack.c.b16 %v2328, %v2320
    %v3273 = vpack.c.b16 %v2337, %v2329
    %v3274 = vpack.c.b16 %v2338, %v2330
    %v3275 = vpack.c.b16 %v2339, %v2331
    %v3276 = vpack.c.b16 %v2340, %v2332
    %v3277 = vpack.c.b16 %v2341, %v2333
    %v3278 = vpack.c.b16 %v2342, %v2334
    %v3279 = vpack.c.b16 %v2343, %v2335
    %v3280 = vpack.c.b16 %v2344, %v2336
    %v3281 = vpack.c.b16 %v2353, %v2345
    %v3282 = vpack.c.b16 %v2354, %v2346
    %v3283 = vpack.c.b16 %v2355, %v2347
    %v3284 = vpack.c.b16 %v2356, %v2348
    %v3285 = vpack.c.b16 %v2357, %v2349
    %v3286 = vpack.c.b16 %v2358, %v2350
    %v3287 = vpack.c.b16 %v2359, %v2351
    %v3288 = vpack.c.b16 %v2360, %v2352
    %v3289 = vpack.c.b16 %v2369, %v2361
    %v3290 = vpack.c.b16 %v2370, %v2362
    %v3291 = vpack.c.b16 %v2371, %v2363
    %v3292 = vpack.c.b16 %v2372, %v2364
    %v3293 = vpack.c.b16 %v2373, %v2365
    %v3294 = vpack.c.b16 %v2374, %v2366
    %v3295 = vpack.c.b16 %v2375, %v2367
    %v3296 = vpack.c.b16 %v2376, %v2368
    %v3297 = vpack.c.b16 %v2385, %v2377
    %v3298 = vpack.c.b16 %v2386, %v2378
    %v3299 = vpack.c.b16 %v2387, %v2379
    %v3300 = vpack.c.b16 %v2388, %v2380
    %v3301 = vpack.c.b16 %v2389, %v2381
    %v3302 = vpack.c.b16 %v2390, %v2382
    %v3303 = vpack.c.b16 %v2391, %v2383
    %v3304 = vpack.c.b16 %v2392, %v2384
    %v3305 = vpack.c.b16 %v2401, %v2393
    %v3306 = vpack.c.b16 %v2402, %v2394
    %v3307 = vpack.c.b16 %v2403, %v2395
    %v3308 = vpack.c.b16 %v2404, %v2396
    %v3309 = vpack.c.b16 %v2405, %v2397
    %v3310 = vpack.c.b16 %v2406, %v2398
    %v3311 = vpack.c.b16 %v2407, %v2399
    %v3312 = vpack.c.b16 %v2408, %v2400
    %v3313 = vpack.c.b16 %v2417, %v2409
    %v3314 = vpack.c.b16 %v2418, %v2410
    %v3315 = vpack.c.b16 %v2419, %v2411
    %v3316 = vpack.c.b16 %v2420, %v2412
    %v3317 = vpack.c.b16 %v2421, %v2413
    %v3318 = vpack.c.b16 %v2422, %v2414
    %v3319 = vpack.c.b16 %v2423, %v2415
    %v3320 = vpack.c.b16 %v2424, %v2416
    %v3321 = vpack.c.b16 %v2433, %v2425
    %v3322 = vpack.c.b16 %v2434, %v2426
    %v3323 = vpack.c.b16 %v2435, %v2427
    %v3324 = vpack.c.b16 %v2436, %v2428
    %v3325 = vpack.c.b16 %v2437, %v2429
    %v3326 = vpack.c.b16 %v2438, %v2430
    %v3327 = vpack.c.b16 %v2439, %v2431
    %v3328 = vpack.c.b16 %v2440, %v2432
    %v3329 = vpack.c.b16 %v2449, %v2441
    %v3330 = vpack.c.b16 %v2450, %v2442
    %v3331 = vpack.c.b16 %v2451, %v2443
    %v3332 = vpack.c.b16 %v2452, %v2444
    %v3333 = vpack.c.b16 %v2453, %v2445
    %v3334 = vpack.c.b16 %v2454, %v2446
    %v3335 = vpack.c.b16 %v2455, %v2447
    %v3336 = vpack.c.b16 %v2456, %v2448
    %v3337 = vpack.c.b16 %v2465, %v2457
    %v3338 = vpack.c.b16 %v2466, %v2458
    %v3339 = vpack.c.b16 %v2467, %v2459
    %v3340 = vpack.c.b16 %v2468, %v2460
    %v3341 = vpack.c.b16 %v2469, %v2461
    %v3342 = vpack.c.b16 %v2470, %v2462
    %v3343 = vpack.c.b16 %v2471, %v2463
    %v3344 = vpack.c.b16 %v2472, %v2464
    %v3345 = vpack.c.b16 %v2481, %v2473
    %v3346 = vpack.c.b16 %v2482, %v2474
    %v3347 = vpack.c.b16 %v2483, %v2475
    %v3348 = vpack.c.b16 %v2484, %v2476
    %v3349 = vpack.c.b16 %v2485, %v2477
    %v3350 = vpack.c.b16 %v2486, %v2478
    %v3351 = vpack.c.b16 %v2487, %v2479
    %v3352 = vpack.c.b16 %v2488, %v2480
    %v3353 = vpack.c.b16 %v2497, %v2489
    %v3354 = vpack.c.b16 %v2498, %v2490
    %v3355 = vpack.c.b16 %v2499, %v2491
    %v3356 = vpack.c.b16 %v2500, %v2492
    %v3357 = vpack.c.b16 %v2501, %v2493
    %v3358 = vpack.c.b16 %v2502, %v2494
    %v3359 = vpack.c.b16 %v2503, %v2495
    %v3360 = vpack.c.b16 %v2504, %v2496
    %v3361 = vpack.c.b16 %v2513, %v2505
    %v3362 = vpack.c.b16 %v2514, %v2506
    %v3363 = vpack.c.b16 %v2515, %v2507
    %v3364 = vpack.c.b16 %v2516, %v2508
    %v3365 = vpack.c.b16 %v2517, %v2509
    %v3366 = vpack.c.b16 %v2518, %v2510
    %v3367 = vpack.c.b16 %v2519, %v2511
    %v3368 = vpack.c.b16 %v2520, %v2512
    %v3369 = vpack.c.b16 %v2529, %v2521
    %v3370 = vpack.c.b16 %v2530, %v2522
    %v3371 = vpack.c.b16 %v2531, %v2523
    %v3372 = vpack.c.b16 %v2532, %v2524
    %v3373 = vpack.c.b16 %v2533, %v2525
    %v3374 = vpack.c.b16 %v2534, %v2526
    %v3375 = vpack.c.b16 %v2535, %v2527
    %v3376 = vpack.c.b16 %v2536, %v2528
    %v3377 = vpack.c.b16 %v2545, %v2537
    %v3378 = vpack.c.b16 %v2546, %v2538
    %v3379 = vpack.c.b16 %v2547, %v2539
    %v3380 = vpack.c.b16 %v2548, %v2540
    %v3381 = vpack.c.b16 %v2549, %v2541
    %v3382 = vpack.c.b16 %v2550, %v2542
    %v3383 = vpack.c.b16 %v2551, %v2543
    %v3384 = vpack.c.b16 %v2552, %v2544
    %v3385 = vpack.c.b16 %v2561, %v2553
    %v3386 = vpack.c.b16 %v2562, %v2554
    %v3387 = vpack.c.b16 %v2563, %v2555
    %v3388 = vpack.c.b16 %v2564, %v2556
    %v3389 = vpack.c.b16 %v2565, %v2557
    %v3390 = vpack.c.b16 %v2566, %v2558
    %v3391 = vpack.c.b16 %v2567, %v2559
    %v3392 = vpack.c.b16 %v2568, %v2560
    %v3393 = vpack.c.b16 %v2577, %v2569
    %v3394 = vpack.c.b16 %v2578, %v2570
    %v3395 = vpack.c.b16 %v2579, %v2571
    %v3396 = vpack.c.b16 %v2580, %v2572
    %v3397 = vpack.c.b16 %v2581, %v2573
    %v3398 = vpack.c.b16 %v2582, %v2574
    %v3399 = vpack.c.b16 %v2583, %v2575
    %v3400 = vpack.c.b16 %v2584, %v2576
    %v3401 = vpack.c.b16 %v2593, %v2585
    %v3402 = vpack.c.b16 %v2594, %v2586
    %v3403 = vpack.c.b16 %v2595, %v2587
    %v3404 = vpack.c.b16 %v2596, %v2588
    %v3405 = vpack.c.b16 %v2597, %v2589
    %v3406 = vpack.c.b16 %v2598, %v2590
    %v3407 = vpack.c.b16 %v2599, %v2591
    %v3408 = vpack.c.b16 %v2600, %v2592
    %v3409 = vpack.c.b16 %v2609, %v2601
    %v3410 = vpack.c.b16 %v2610, %v2602
    %v3411 = vpack.c.b16 %v2611, %v2603
    %v3412 = vpack.c.b16 %v2612, %v2604
    %v3413 = vpack.c.b16 %v2613, %v2605
    %v3414 = vpack.c.b16 %v2614, %v2606
    %v3415 = vpack.c.b16 %v2615, %v2607
    %v3416 = vpack.c.b16 %v2616, %v2608
    %v3417 = vpack.c.b16 %v2625, %v2617
    %v3418 = vpack.c.b16 %v2626, %v2618
    %v3419 = vpack.c.b16 %v2627, %v2619
    %v3420 = vpack.c.b16 %v2628, %v2620
    %v3421 = vpack.c.b16 %v2629, %v2621
    %v3422 = vpack.c.b16 %v2630, %v2622
    %v3423 = vpack.c.b16 %v2631, %v2623
    %v3424 = vpack.c.b16 %v2632, %v2624
    %v3425 = vpack.c.b16 %v2641, %v2633
    %v3426 = vpack.c.b16 %v2642, %v2634
    %v3427 = vpack.c.b16 %v2643, %v2635
    %v3428 = vpack.c.b16 %v2644, %v2636
    %v3429 = vpack.c.b16 %v2645, %v2637
    %v3430 = vpack.c.b16 %v2646, %v2638
    %v3431 = vpack.c.b16 %v2647, %v2639
    %v3432 = vpack.c.b16 %v2648, %v2640
    %v3433 = vpack.c.b16 %v2657, %v2649
    %v3434 = vpack.c.b16 %v2658, %v2650
    %v3435 = vpack.c.b16 %v2659, %v2651
    %v3436 = vpack.c.b16 %v2660, %v2652
    %v3437 = vpack.c.b16 %v2661, %v2653
    %v3438 = vpack.c.b16 %v2662, %v2654
    %v3439 = vpack.c.b16 %v2663, %v2655
    %v3440 = vpack.c.b16 %v2664, %v2656
    %v3441 = vpack.c.b16 %v2673, %v2665
    %v3442 = vpack.c.b16 %v2674, %v2666
    %v3443 = vpack.c.b16 %v2675, %v2667
    %v3444 = vpack.c.b16 %v2676, %v2668
    %v3445 = vpack.c.b16 %v2677, %v2669
    %v3446 = vpack.c.b16 %v2678, %v2670
    %v3447 = vpack.c.b16 %v2679, %v2671
    %v3448 = vpack.c.b16 %v2680, %v2672
    %v3449 = vpack.c.b16 %v2689, %v2681
    %v3450 = vpack.c.b16 %v2690, %v2682
    %v3451 = vpack.c.b16 %v2691, %v2683
    %v3452 = vpack.c.b16 %v2692, %v2684
    %v3453 = vpack.c.b16 %v2693, %v2685
    %v3454 = vpack.c.b16 %v2694, %v2686
    %v3455 = vpack.c.b16 %v2695, %v2687
    %v3456 = vpack.c.b16 %v2696, %v2688
    %v3457 = vpack.c.b16 %v2705, %v2697
    %v3458 = vpack.c.b16 %v2706, %v2698
    %v3459 = vpack.c.b16 %v2707, %v2699
    %v3460 = vpack.c.b16 %v2708, %v2700
    %v3461 = vpack.c.b16 %v2709, %v2701
    %v3462 = vpack.c.b16 %v2710, %v2702
    %v3463 = vpack.c.b16 %v2711, %v2703
    %v3464 = vpack.c.b16 %v2712, %v2704
    %v3465 = vpack.c.b16 %v2721, %v2713
    %v3466 = vpack.c.b16 %v2722, %v2714
    %v3467 = vpack.c.b16 %v2723, %v2715
    %v3468 = vpack.c.b16 %v2724, %v2716
    %v3469 = vpack.c.b16 %v2725, %v2717
    %v3470 = vpack.c.b16 %v2726, %v2718
    %v3471 = vpack.c.b16 %v2727, %v2719
    %v3472 = vpack.c.b16 %v2728, %v2720
    %v3473 = vpack.c.b16 %v2737, %v2729
    %v3474 = vpack.c.b16 %v2738, %v2730
    %v3475 = vpack.c.b16 %v2739, %v2731
    %v3476 = vpack.c.b16 %v2740, %v2732
    %v3477 = vpack.c.b16 %v2741, %v2733
    %v3478 = vpack.c.b16 %v2742, %v2734
    %v3479 = vpack.c.b16 %v2743, %v2735
    %v3480 = vpack.c.b16 %v2744, %v2736
    %v3481 = vpack.c.b16 %v2753, %v2745
    %v3482 = vpack.c.b16 %v2754, %v2746
    %v3483 = vpack.c.b16 %v2755, %v2747
    %v3484 = vpack.c.b16 %v2756, %v2748
    %v3485 = vpack.c.b16 %v2757, %v2749
    %v3486 = vpack.c.b16 %v2758, %v2750
    %v3487 = vpack.c.b16 %v2759, %v2751
    %v3488 = vpack.c.b16 %v2760, %v2752
    %v3489 = vpack.c.b16 %v2769, %v2761
    %v3490 = vpack.c.b16 %v2770, %v2762
    %v3491 = vpack.c.b16 %v2771, %v2763
    %v3492 = vpack.c.b16 %v2772, %v2764
    %v3493 = vpack.c.b16 %v2773, %v2765
    %v3494 = vpack.c.b16 %v2774, %v2766
    %v3495 = vpack.c.b16 %v2775, %v2767
    %v3496 = vpack.c.b16 %v2776, %v2768
    %v3497 = vpack.c.b16 %v2785, %v2777
    %v3498 = vpack.c.b16 %v2786, %v2778
    %v3499 = vpack.c.b16 %v2787, %v2779
    %v3500 = vpack.c.b16 %v2788, %v2780
    %v3501 = vpack.c.b16 %v2789, %v2781
    %v3502 = vpack.c.b16 %v2790, %v2782
    %v3503 = vpack.c.b16 %v2791, %v2783
    %v3504 = vpack.c.b16 %v2792, %v2784
    %v3505 = vpack.c.b16 %v2801, %v2793
    %v3506 = vpack.c.b16 %v2802, %v2794
    %v3507 = vpack.c.b16 %v2803, %v2795
    %v3508 = vpack.c.b16 %v2804, %v2796
    %v3509 = vpack.c.b16 %v2805, %v2797
    %v3510 = vpack.c.b16 %v2806, %v2798
    %v3511 = vpack.c.b16 %v2807, %v2799
    %v3512 = vpack.c.b16 %v2808, %v2800
    %v3513 = vpack.c.b16 %v2817, %v2809
    %v3514 = vpack.c.b16 %v2818, %v2810
    %v3515 = vpack.c.b16 %v2819, %v2811
    %v3516 = vpack.c.b16 %v2820, %v2812
    %v3517 = vpack.c.b16 %v2821, %v2813
    %v3518 = vpack.c.b16 %v2822, %v2814
    %v3519 = vpack.c.b16 %v2823, %v2815
    %v3520 = vpack.c.b16 %v2824, %v2816
    %v3521 = vpack.c.b16 %v2833, %v2825
    %v3522 = vpack.c.b16 %v2834, %v2826
    %v3523 = vpack.c.b16 %v2835, %v2827
    %v3524 = vpack.c.b16 %v2836, %v2828
    %v3525 = vpack.c.b16 %v2837, %v2829
    %v3526 = vpack.c.b16 %v2838, %v2830
    %v3527 = vpack.c.b16 %v2839, %v2831
    %v3528 = vpack.c.b16 %v2840, %v2832
    %v3529 = vpack.c.b16 %v2849, %v2841
    %v3530 = vpack.c.b16 %v2850, %v2842
    %v3531 = vpack.c.b16 %v2851, %v2843
    %v3532 = vpack.c.b16 %v2852, %v2844
    %v3533 = vpack.c.b16 %v2853, %v2845
    %v3534 = vpack.c.b16 %v2854, %v2846
    %v3535 = vpack.c.b16 %v2855, %v2847
    %v3536 = vpack.c.b16 %v2856, %v2848
    %v3537 = vpack.c.b16 %v2865, %v2857
    %v3538 = vpack.c.b16 %v2866, %v2858
    %v3539 = vpack.c.b16 %v2867, %v2859
    %v3540 = vpack.c.b16 %v2868, %v2860
    %v3541 = vpack.c.b16 %v2869, %v2861
    %v3542 = vpack.c.b16 %v2870, %v2862
    %v3543 = vpack.c.b16 %v2871, %v2863
    %v3544 = vpack.c.b16 %v2872, %v2864
    %v3545 = vpack.c.b16 %v2881, %v2873
    %v3546 = vpack.c.b16 %v2882, %v2874
    %v3547 = vpack.c.b16 %v2883, %v2875
    %v3548 = vpack.c.b16 %v2884, %v2876
    %v3549 = vpack.c.b16 %v2885, %v2877
    %v3550 = vpack.c.b16 %v2886, %v2878
    %v3551 = vpack.c.b16 %v2887, %v2879
    %v3552 = vpack.c.b16 %v2888, %v2880
    %v3553 = vpack.c.b16 %v2897, %v2889
    %v3554 = vpack.c.b16 %v2898, %v2890
    %v3555 = vpack.c.b16 %v2899, %v2891
    %v3556 = vpack.c.b16 %v2900, %v2892
    %v3557 = vpack.c.b16 %v2901, %v2893
    %v3558 = vpack.c.b16 %v2902, %v2894
    %v3559 = vpack.c.b16 %v2903, %v2895
    %v3560 = vpack.c.b16 %v2904, %v2896
    %v3561 = vpack.c.b16 %v2913, %v2905
    %v3562 = vpack.c.b16 %v2914, %v2906
    %v3563 = vpack.c.b16 %v2915, %v2907
    %v3564 = vpack.c.b16 %v2916, %v2908
    %v3565 = vpack.c.b16 %v2917, %v2909
    %v3566 = vpack.c.b16 %v2918, %v2910
    %v3567 = vpack.c.b16 %v2919, %v2911
    %v3568 = vpack.c.b16 %v2920, %v2912
    %v3569 = vpack.c.b16 %v2929, %v2921
    %v3570 = vpack.c.b16 %v2930, %v2922
    %v3571 = vpack.c.b16 %v2931, %v2923
    %v3572 = vpack.c.b16 %v2932, %v2924
    %v3573 = vpack.c.b16 %v2933, %v2925
    %v3574 = vpack.c.b16 %v2934, %v2926
    %v3575 = vpack.c.b16 %v2935, %v2927
    %v3576 = vpack.c.b16 %v2936, %v2928
    %v3577 = vpack.c.b16 %v2945, %v2937
    %v3578 = vpack.c.b16 %v2946, %v2938
    %v3579 = vpack.c.b16 %v2947, %v2939
    %v3580 = vpack.c.b16 %v2948, %v2940
    %v3581 = vpack.c.b16 %v2949, %v2941
    %v3582 = vpack.c.b16 %v2950, %v2942
    %v3583 = vpack.c.b16 %v2951, %v2943
    %v3584 = vpack.c.b16 %v2952, %v2944
    %v3585 = vpack.c.b16 %v2961, %v2953
    %v3586 = vpack.c.b16 %v2962, %v2954
    %v3587 = vpack.c.b16 %v2963, %v2955
    %v3588 = vpack.c.b16 %v2964, %v2956
    %v3589 = vpack.c.b16 %v2965, %v2957
    %v3590 = vpack.c.b16 %v2966, %v2958
    %v3591 = vpack.c.b16 %v2967, %v2959
    %v3592 = vpack.c.b16 %v2968, %v2960
    %v3593 = vpack.c.b16 %v2977, %v2969
    %v3594 = vpack.c.b16 %v2978, %v2970
    %v3595 = vpack.c.b16 %v2979, %v2971
    %v3596 = vpack.c.b16 %v2980, %v2972
    %v3597 = vpack.c.b16 %v2981, %v2973
    %v3598 = vpack.c.b16 %v2982, %v2974
    %v3599 = vpack.c.b16 %v2983, %v2975
    %v3600 = vpack.c.b16 %v2984, %v2976
    %v3601 = vpack.c.b16 %v2993, %v2985
    %v3602 = vpack.c.b16 %v2994, %v2986
    %v3603 = vpack.c.b16 %v2995, %v2987
    %v3604 = vpack.c.b16 %v2996, %v2988
    %v3605 = vpack.c.b16 %v2997, %v2989
    %v3606 = vpack.c.b16 %v2998, %v2990
    %v3607 = vpack.c.b16 %v2999, %v2991
    %v3608 = vpack.c.b16 %v3000, %v2992
    %v3609 = vpack.c.b16 %v3009, %v3001
    %v3610 = vpack.c.b16 %v3010, %v3002
    %v3611 = vpack.c.b16 %v3011, %v3003
    %v3612 = vpack.c.b16 %v3012, %v3004
    %v3613 = vpack.c.b16 %v3013, %v3005
    %v3614 = vpack.c.b16 %v3014, %v3006
    %v3615 = vpack.c.b16 %v3015, %v3007
    %v3616 = vpack.c.b16 %v3016, %v3008
    %v3617 = vpack.c.b16 %v3025, %v3017
    %v3618 = vpack.c.b16 %v3026, %v3018
    %v3619 = vpack.c.b16 %v3027, %v3019
    %v3620 = vpack.c.b16 %v3028, %v3020
    %v3621 = vpack.c.b16 %v3029, %v3021
    %v3622 = vpack.c.b16 %v3030, %v3022
    %v3623 = vpack.c.b16 %v3031, %v3023
    %v3624 = vpack.c.b16 %v3032, %v3024
    %v3625 = vpack.c.b16 %v3041, %v3033
    %v3626 = vpack.c.b16 %v3042, %v3034
    %v3627 = vpack.c.b16 %v3043, %v3035
    %v3628 = vpack.c.b16 %v3044, %v3036
    %v3629 = vpack.c.b16 %v3045, %v3037
    %v3630 = vpack.c.b16 %v3046, %v3038
    %v3631 = vpack.c.b16 %v3047, %v3039
    %v3632 = vpack.c.b16 %v3048, %v3040
    %v3633 = vpack.c.b16 %v3057, %v3049
    %v3634 = vpack.c.b16 %v3058, %v3050
    %v3635 = vpack.c.b16 %v3059, %v3051
    %v3636 = vpack.c.b16 %v3060, %v3052
    %v3637 = vpack.c.b16 %v3061, %v3053
    %v3638 = vpack.c.b16 %v3062, %v3054
    %v3639 = vpack.c.b16 %v3063, %v3055
    %v3640 = vpack.c.b16 %v3064, %v3056
    %v3641 = vpack.c.b16 %v3073, %v3065
    %v3642 = vpack.c.b16 %v3074, %v3066
    %v3643 = vpack.c.b16 %v3075, %v3067
    %v3644 = vpack.c.b16 %v3076, %v3068
    %v3645 = vpack.c.b16 %v3077, %v3069
    %v3646 = vpack.c.b16 %v3078, %v3070
    %v3647 = vpack.c.b16 %v3079, %v3071
    %v3648 = vpack.c.b16 %v3080, %v3072
    %v3649 = vpack.c.b16 %v3089, %v3081
    %v3650 = vpack.c.b16 %v3090, %v3082
    %v3651 = vpack.c.b16 %v3091, %v3083
    %v3652 = vpack.c.b16 %v3092, %v3084
    %v3653 = vpack.c.b16 %v3093, %v3085
    %v3654 = vpack.c.b16 %v3094, %v3086
    %v3655 = vpack.c.b16 %v3095, %v3087
    %v3656 = vpack.c.b16 %v3096, %v3088
    %v3657 = vpack.c.b16 %v3105, %v3097
    %v3658 = vpack.c.b16 %v3106, %v3098
    %v3659 = vpack.c.b16 %v3107, %v3099
    %v3660 = vpack.c.b16 %v3108, %v3100
    %v3661 = vpack.c.b16 %v3109, %v3101
    %v3662 = vpack.c.b16 %v3110, %v3102
    %v3663 = vpack.c.b16 %v3111, %v3103
    %v3664 = vpack.c.b16 %v3112, %v3104
    %v3665 = vpack.c.b16 %v3121, %v3113
    %v3666 = vpack.c.b16 %v3122, %v3114
    %v3667 = vpack.c.b16 %v3123, %v3115
    %v3668 = vpack.c.b16 %v3124, %v3116
    %v3669 = vpack.c.b16 %v3125, %v3117
    %v3670 = vpack.c.b16 %v3126, %v3118
    %v3671 = vpack.c.b16 %v3127, %v3119
    %v3672 = vpack.c.b16 %v3128, %v3120
    %v3673 = vpack.c.b16 %v3137, %v3129
    %v3674 = vpack.c.b16 %v3138, %v3130
    %v3675 = vpack.c.b16 %v3139, %v3131
    %v3676 = vpack.c.b16 %v3140, %v3132
    %v3677 = vpack.c.b16 %v3141, %v3133
    %v3678 = vpack.c.b16 %v3142, %v3134
    %v3679 = vpack.c.b16 %v3143, %v3135
    %v3680 = vpack.c.b16 %v3144, %v3136
    %v3681 = vpack.c.b16 %v3153, %v3145
    %v3682 = vpack.c.b16 %v3154, %v3146
    %v3683 = vpack.c.b16 %v3155, %v3147
    %v3684 = vpack.c.b16 %v3156, %v3148
    %v3685 = vpack.c.b16 %v3157, %v3149
    %v3686 = vpack.c.b16 %v3158, %v3150
    %v3687 = vpack.c.b16 %v3159, %v3151
    %v3688 = vpack.c.b16 %v3160, %v3152
    %v3689 = vpack.c.b16 %v3169, %v3161
    %v3690 = vpack.c.b16 %v3170, %v3162
    %v3691 = vpack.c.b16 %v3171, %v3163
    %v3692 = vpack.c.b16 %v3172, %v3164
    %v3693 = vpack.c.b16 %v3173, %v3165
    %v3694 = vpack.c.b16 %v3174, %v3166
    %v3695 = vpack.c.b16 %v3175, %v3167
    %v3696 = vpack.c.b16 %v3176, %v3168
    %v3697 = vpack.c.b16 %v3185, %v3177
    %v3698 = vpack.c.b16 %v3186, %v3178
    %v3699 = vpack.c.b16 %v3187, %v3179
    %v3700 = vpack.c.b16 %v3188, %v3180
    %v3701 = vpack.c.b16 %v3189, %v3181
    %v3702 = vpack.c.b16 %v3190, %v3182
    %v3703 = vpack.c.b16 %v3191, %v3183
    %v3704 = vpack.c.b16 %v3192, %v3184
    %4217 = vmatpush.bf16.msra.mxu0 %v3249
    %4218 = vmatpush.bf16.msra.mxu0 %v3241
    %4219 = vmatpush.bf16.msra.mxu0 %v3233
    %4220 = vmatpush.bf16.msra.mxu0 %v3225
    %4221 = vmatpush.bf16.msra.mxu0 %v3217
    %4222 = vmatpush.bf16.msra.mxu0 %v3209
    %4223 = vmatpush.bf16.msra.mxu0 %v3201
    %4224 = vmatpush.bf16.msra.mxu0 %v3193
    %4225 = vmatmul.bf16.gmra.mxu0 %v1119
    %v4226 = vpop.f32.mrf.mxu0
    %v4227 = vadd.f32 %v1641, %v4226
    %v4228 = vpop.f32.mrf.mxu0
    %4229 = vdwg.mxu0
    %4230 = vmatpush.bf16.msra.mxu0 %v3313
    %4231 = vmatpush.bf16.msra.mxu0 %v3305
    %4232 = vmatpush.bf16.msra.mxu0 %v3297
    %4233 = vmatpush.bf16.msra.mxu0 %v3289
    %4234 = vmatpush.bf16.msra.mxu0 %v3281
    %4235 = vmatpush.bf16.msra.mxu0 %v3273
    %4236 = vmatpush.bf16.msra.mxu0 %v3265
    %4237 = vmatpush.bf16.msra.mxu0 %v3257
    %4238 = vmatmul.bf16.gmra.mxu0 %v1120
    %v4239 = vpop.f32.mrf.mxu0
    %v4240 = vadd.f32 %v4227, %v4239
    %v4241 = vpop.f32.mrf.mxu0
    %4242 = vdwg.mxu0
    %4243 = vmatpush.bf16.msra.mxu0 %v3377
    %4244 = vmatpush.bf16.msra.mxu0 %v3369
    %4245 = vmatpush.bf16.msra.mxu0 %v3361
    %4246 = vmatpush.bf16.msra.mxu0 %v3353
    %4247 = vmatpush.bf16.msra.mxu0 %v3345
    %4248 = vmatpush.bf16.msra.mxu0 %v3337
    %4249 = vmatpush.bf16.msra.mxu0 %v3329
    %4250 = vmatpush.bf16.msra.mxu0 %v3321
    %4251 = vmatmul.bf16.gmra.mxu0 %v1121
    %v4252 = vpop.f32.mrf.mxu0
    %v4253 = vadd.f32 %v4240, %v4252
    %v4254 = vpop.f32.mrf.mxu0
    %4255 = vdwg.mxu0
    %4256 = vmatpush.bf16.msra.mxu0 %v3441
    %4257 = vmatpush.bf16.msra.mxu0 %v3433
    %4258 = vmatpush.bf16.msra.mxu0 %v3425
    %4259 = vmatpush.bf16.msra.mxu0 %v3417
    %4260 = vmatpush.bf16.msra.mxu0 %v3409
    %4261 = vmatpush.bf16.msra.mxu0 %v3401
    %4262 = vmatpush.bf16.msra.mxu0 %v3393
    %4263 = vmatpush.bf16.msra.mxu0 %v3385
    %4264 = vmatmul.bf16.gmra.mxu0 %v1122
    %v4265 = vpop.f32.mrf.mxu0
    %v4266 = vadd.f32 %v4253, %v4265
    %v4267 = vpop.f32.mrf.mxu0
    %4268 = vdwg.mxu0
    %4269 = vmatpush.bf16.msra.mxu0 %v3505
    %4270 = vmatpush.bf16.msra.mxu0 %v3497
    %4271 = vmatpush.bf16.msra.mxu0 %v3489
    %4272 = vmatpush.bf16.msra.mxu0 %v3481
    %4273 = vmatpush.bf16.msra.mxu0 %v3473
    %4274 = vmatpush.bf16.msra.mxu0 %v3465
    %4275 = vmatpush.bf16.msra.mxu0 %v3457
    %4276 = vmatpush.bf16.msra.mxu0 %v3449
    %4277 = vmatmul.bf16.gmra.mxu0 %v1123
    %v4278 = vpop.f32.mrf.mxu0
    %v4279 = vadd.f32 %v4266, %v4278
    %v4280 = vpop.f32.mrf.mxu0
    %4281 = vdwg.mxu0
    %4282 = vmatpush.bf16.msra.mxu0 %v3569
    %4283 = vmatpush.bf16.msra.mxu0 %v3561
    %4284 = vmatpush.bf16.msra.mxu0 %v3553
    %4285 = vmatpush.bf16.msra.mxu0 %v3545
    %4286 = vmatpush.bf16.msra.mxu0 %v3537
    %4287 = vmatpush.bf16.msra.mxu0 %v3529
    %4288 = vmatpush.bf16.msra.mxu0 %v3521
    %4289 = vmatpush.bf16.msra.mxu0 %v3513
    %4290 = vmatmul.bf16.gmra.mxu0 %v1124
    %v4291 = vpop.f32.mrf.mxu0
    %v4292 = vadd.f32 %v4279, %v4291
    %v4293 = vpop.f32.mrf.mxu0
    %4294 = vdwg.mxu0
    %4295 = vmatpush.bf16.msra.mxu0 %v3633
    %4296 = vmatpush.bf16.msra.mxu0 %v3625
    %4297 = vmatpush.bf16.msra.mxu0 %v3617
    %4298 = vmatpush.bf16.msra.mxu0 %v3609
    %4299 = vmatpush.bf16.msra.mxu0 %v3601
    %4300 = vmatpush.bf16.msra.mxu0 %v3593
    %4301 = vmatpush.bf16.msra.mxu0 %v3585
    %4302 = vmatpush.bf16.msra.mxu0 %v3577
    %4303 = vmatmul.bf16.gmra.mxu0 %v1125
    %v4304 = vpop.f32.mrf.mxu0
    %v4305 = vadd.f32 %v4292, %v4304
    %v4306 = vpop.f32.mrf.mxu0
    %4307 = vdwg.mxu0
    %4308 = vmatpush.bf16.msra.mxu0 %v3697
    %4309 = vmatpush.bf16.msra.mxu0 %v3689
    %4310 = vmatpush.bf16.msra.mxu0 %v3681
    %4311 = vmatpush.bf16.msra.mxu0 %v3673
    %4312 = vmatpush.bf16.msra.mxu0 %v3665
    %4313 = vmatpush.bf16.msra.mxu0 %v3657
    %4314 = vmatpush.bf16.msra.mxu0 %v3649
    %4315 = vmatpush.bf16.msra.mxu0 %v3641
    %4316 = vmatmul.bf16.gmra.mxu0 %v1126
    %v4317 = vpop.f32.mrf.mxu0
    %v4318 = vadd.f32 %v4305, %v4317
    %v4319 = vpop.f32.mrf.mxu0
    %4320 = vdwg.mxu0
    %4321 = vmatpush.bf16.msra.mxu0 %v3250
    %4322 = vmatpush.bf16.msra.mxu0 %v3242
    %4323 = vmatpush.bf16.msra.mxu0 %v3234
    %4324 = vmatpush.bf16.msra.mxu0 %v3226
    %4325 = vmatpush.bf16.msra.mxu0 %v3218
    %4326 = vmatpush.bf16.msra.mxu0 %v3210
    %4327 = vmatpush.bf16.msra.mxu0 %v3202
    %4328 = vmatpush.bf16.msra.mxu0 %v3194
    %4329 = vmatmul.bf16.gmra.mxu0 %v1119
    %v4330 = vpop.f32.mrf.mxu0
    %v4331 = vadd.f32 %v1642, %v4330
    %v4332 = vpop.f32.mrf.mxu0
    %4333 = vdwg.mxu0
    %4334 = vmatpush.bf16.msra.mxu0 %v3314
    %4335 = vmatpush.bf16.msra.mxu0 %v3306
    %4336 = vmatpush.bf16.msra.mxu0 %v3298
    %4337 = vmatpush.bf16.msra.mxu0 %v3290
    %4338 = vmatpush.bf16.msra.mxu0 %v3282
    %4339 = vmatpush.bf16.msra.mxu0 %v3274
    %4340 = vmatpush.bf16.msra.mxu0 %v3266
    %4341 = vmatpush.bf16.msra.mxu0 %v3258
    %4342 = vmatmul.bf16.gmra.mxu0 %v1120
    %v4343 = vpop.f32.mrf.mxu0
    %v4344 = vadd.f32 %v4331, %v4343
    %v4345 = vpop.f32.mrf.mxu0
    %4346 = vdwg.mxu0
    %4347 = vmatpush.bf16.msra.mxu0 %v3378
    %4348 = vmatpush.bf16.msra.mxu0 %v3370
    %4349 = vmatpush.bf16.msra.mxu0 %v3362
    %4350 = vmatpush.bf16.msra.mxu0 %v3354
    %4351 = vmatpush.bf16.msra.mxu0 %v3346
    %4352 = vmatpush.bf16.msra.mxu0 %v3338
    %4353 = vmatpush.bf16.msra.mxu0 %v3330
    %4354 = vmatpush.bf16.msra.mxu0 %v3322
    %4355 = vmatmul.bf16.gmra.mxu0 %v1121
    %v4356 = vpop.f32.mrf.mxu0
    %v4357 = vadd.f32 %v4344, %v4356
    %v4358 = vpop.f32.mrf.mxu0
    %4359 = vdwg.mxu0
    %4360 = vmatpush.bf16.msra.mxu0 %v3442
    %4361 = vmatpush.bf16.msra.mxu0 %v3434
    %4362 = vmatpush.bf16.msra.mxu0 %v3426
    %4363 = vmatpush.bf16.msra.mxu0 %v3418
    %4364 = vmatpush.bf16.msra.mxu0 %v3410
    %4365 = vmatpush.bf16.msra.mxu0 %v3402
    %4366 = vmatpush.bf16.msra.mxu0 %v3394
    %4367 = vmatpush.bf16.msra.mxu0 %v3386
    %4368 = vmatmul.bf16.gmra.mxu0 %v1122
    %v4369 = vpop.f32.mrf.mxu0
    %v4370 = vadd.f32 %v4357, %v4369
    %v4371 = vpop.f32.mrf.mxu0
    %4372 = vdwg.mxu0
    %4373 = vmatpush.bf16.msra.mxu0 %v3506
    %4374 = vmatpush.bf16.msra.mxu0 %v3498
    %4375 = vmatpush.bf16.msra.mxu0 %v3490
    %4376 = vmatpush.bf16.msra.mxu0 %v3482
    %4377 = vmatpush.bf16.msra.mxu0 %v3474
    %4378 = vmatpush.bf16.msra.mxu0 %v3466
    %4379 = vmatpush.bf16.msra.mxu0 %v3458
    %4380 = vmatpush.bf16.msra.mxu0 %v3450
    %4381 = vmatmul.bf16.gmra.mxu0 %v1123
    %v4382 = vpop.f32.mrf.mxu0
    %v4383 = vadd.f32 %v4370, %v4382
    %v4384 = vpop.f32.mrf.mxu0
    %4385 = vdwg.mxu0
    %4386 = vmatpush.bf16.msra.mxu0 %v3570
    %4387 = vmatpush.bf16.msra.mxu0 %v3562
    %4388 = vmatpush.bf16.msra.mxu0 %v3554
    %4389 = vmatpush.bf16.msra.mxu0 %v3546
    %4390 = vmatpush.bf16.msra.mxu0 %v3538
    %4391 = vmatpush.bf16.msra.mxu0 %v3530
    %4392 = vmatpush.bf16.msra.mxu0 %v3522
    %4393 = vmatpush.bf16.msra.mxu0 %v3514
    %4394 = vmatmul.bf16.gmra.mxu0 %v1124
    %v4395 = vpop.f32.mrf.mxu0
    %v4396 = vadd.f32 %v4383, %v4395
    %v4397 = vpop.f32.mrf.mxu0
    %4398 = vdwg.mxu0
    %4399 = vmatpush.bf16.msra.mxu0 %v3634
    %4400 = vmatpush.bf16.msra.mxu0 %v3626
    %4401 = vmatpush.bf16.msra.mxu0 %v3618
    %4402 = vmatpush.bf16.msra.mxu0 %v3610
    %4403 = vmatpush.bf16.msra.mxu0 %v3602
    %4404 = vmatpush.bf16.msra.mxu0 %v3594
    %4405 = vmatpush.bf16.msra.mxu0 %v3586
    %4406 = vmatpush.bf16.msra.mxu0 %v3578
    %4407 = vmatmul.bf16.gmra.mxu0 %v1125
    %v4408 = vpop.f32.mrf.mxu0
    %v4409 = vadd.f32 %v4396, %v4408
    %v4410 = vpop.f32.mrf.mxu0
    %4411 = vdwg.mxu0
    %4412 = vmatpush.bf16.msra.mxu0 %v3698
    %4413 = vmatpush.bf16.msra.mxu0 %v3690
    %4414 = vmatpush.bf16.msra.mxu0 %v3682
    %4415 = vmatpush.bf16.msra.mxu0 %v3674
    %4416 = vmatpush.bf16.msra.mxu0 %v3666
    %4417 = vmatpush.bf16.msra.mxu0 %v3658
    %4418 = vmatpush.bf16.msra.mxu0 %v3650
    %4419 = vmatpush.bf16.msra.mxu0 %v3642
    %4420 = vmatmul.bf16.gmra.mxu0 %v1126
    %v4421 = vpop.f32.mrf.mxu0
    %v4422 = vadd.f32 %v4409, %v4421
    %v4423 = vpop.f32.mrf.mxu0
    %4424 = vdwg.mxu0
    %4425 = vmatpush.bf16.msra.mxu0 %v3251
    %4426 = vmatpush.bf16.msra.mxu0 %v3243
    %4427 = vmatpush.bf16.msra.mxu0 %v3235
    %4428 = vmatpush.bf16.msra.mxu0 %v3227
    %4429 = vmatpush.bf16.msra.mxu0 %v3219
    %4430 = vmatpush.bf16.msra.mxu0 %v3211
    %4431 = vmatpush.bf16.msra.mxu0 %v3203
    %4432 = vmatpush.bf16.msra.mxu0 %v3195
    %4433 = vmatmul.bf16.gmra.mxu0 %v1119
    %v4434 = vpop.f32.mrf.mxu0
    %v4435 = vadd.f32 %v1643, %v4434
    %v4436 = vpop.f32.mrf.mxu0
    %4437 = vdwg.mxu0
    %4438 = vmatpush.bf16.msra.mxu0 %v3315
    %4439 = vmatpush.bf16.msra.mxu0 %v3307
    %4440 = vmatpush.bf16.msra.mxu0 %v3299
    %4441 = vmatpush.bf16.msra.mxu0 %v3291
    %4442 = vmatpush.bf16.msra.mxu0 %v3283
    %4443 = vmatpush.bf16.msra.mxu0 %v3275
    %4444 = vmatpush.bf16.msra.mxu0 %v3267
    %4445 = vmatpush.bf16.msra.mxu0 %v3259
    %4446 = vmatmul.bf16.gmra.mxu0 %v1120
    %v4447 = vpop.f32.mrf.mxu0
    %v4448 = vadd.f32 %v4435, %v4447
    %v4449 = vpop.f32.mrf.mxu0
    %4450 = vdwg.mxu0
    %4451 = vmatpush.bf16.msra.mxu0 %v3379
    %4452 = vmatpush.bf16.msra.mxu0 %v3371
    %4453 = vmatpush.bf16.msra.mxu0 %v3363
    %4454 = vmatpush.bf16.msra.mxu0 %v3355
    %4455 = vmatpush.bf16.msra.mxu0 %v3347
    %4456 = vmatpush.bf16.msra.mxu0 %v3339
    %4457 = vmatpush.bf16.msra.mxu0 %v3331
    %4458 = vmatpush.bf16.msra.mxu0 %v3323
    %4459 = vmatmul.bf16.gmra.mxu0 %v1121
    %v4460 = vpop.f32.mrf.mxu0
    %v4461 = vadd.f32 %v4448, %v4460
    %v4462 = vpop.f32.mrf.mxu0
    %4463 = vdwg.mxu0
    %4464 = vmatpush.bf16.msra.mxu0 %v3443
    %4465 = vmatpush.bf16.msra.mxu0 %v3435
    %4466 = vmatpush.bf16.msra.mxu0 %v3427
    %4467 = vmatpush.bf16.msra.mxu0 %v3419
    %4468 = vmatpush.bf16.msra.mxu0 %v3411
    %4469 = vmatpush.bf16.msra.mxu0 %v3403
    %4470 = vmatpush.bf16.msra.mxu0 %v3395
    %4471 = vmatpush.bf16.msra.mxu0 %v3387
    %4472 = vmatmul.bf16.gmra.mxu0 %v1122
    %v4473 = vpop.f32.mrf.mxu0
    %v4474 = vadd.f32 %v4461, %v4473
    %v4475 = vpop.f32.mrf.mxu0
    %4476 = vdwg.mxu0
    %4477 = vmatpush.bf16.msra.mxu0 %v3507
    %4478 = vmatpush.bf16.msra.mxu0 %v3499
    %4479 = vmatpush.bf16.msra.mxu0 %v3491
    %4480 = vmatpush.bf16.msra.mxu0 %v3483
    %4481 = vmatpush.bf16.msra.mxu0 %v3475
    %4482 = vmatpush.bf16.msra.mxu0 %v3467
    %4483 = vmatpush.bf16.msra.mxu0 %v3459
    %4484 = vmatpush.bf16.msra.mxu0 %v3451
    %4485 = vmatmul.bf16.gmra.mxu0 %v1123
    %v4486 = vpop.f32.mrf.mxu0
    %v4487 = vadd.f32 %v4474, %v4486
    %v4488 = vpop.f32.mrf.mxu0
    %4489 = vdwg.mxu0
    %4490 = vmatpush.bf16.msra.mxu0 %v3571
    %4491 = vmatpush.bf16.msra.mxu0 %v3563
    %4492 = vmatpush.bf16.msra.mxu0 %v3555
    %4493 = vmatpush.bf16.msra.mxu0 %v3547
    %4494 = vmatpush.bf16.msra.mxu0 %v3539
    %4495 = vmatpush.bf16.msra.mxu0 %v3531
    %4496 = vmatpush.bf16.msra.mxu0 %v3523
    %4497 = vmatpush.bf16.msra.mxu0 %v3515
    %4498 = vmatmul.bf16.gmra.mxu0 %v1124
    %v4499 = vpop.f32.mrf.mxu0
    %v4500 = vadd.f32 %v4487, %v4499
    %v4501 = vpop.f32.mrf.mxu0
    %4502 = vdwg.mxu0
    %4503 = vmatpush.bf16.msra.mxu0 %v3635
    %4504 = vmatpush.bf16.msra.mxu0 %v3627
    %4505 = vmatpush.bf16.msra.mxu0 %v3619
    %4506 = vmatpush.bf16.msra.mxu0 %v3611
    %4507 = vmatpush.bf16.msra.mxu0 %v3603
    %4508 = vmatpush.bf16.msra.mxu0 %v3595
    %4509 = vmatpush.bf16.msra.mxu0 %v3587
    %4510 = vmatpush.bf16.msra.mxu0 %v3579
    %4511 = vmatmul.bf16.gmra.mxu0 %v1125
    %v4512 = vpop.f32.mrf.mxu0
    %v4513 = vadd.f32 %v4500, %v4512
    %v4514 = vpop.f32.mrf.mxu0
    %4515 = vdwg.mxu0
    %4516 = vmatpush.bf16.msra.mxu0 %v3699
    %4517 = vmatpush.bf16.msra.mxu0 %v3691
    %4518 = vmatpush.bf16.msra.mxu0 %v3683
    %4519 = vmatpush.bf16.msra.mxu0 %v3675
    %4520 = vmatpush.bf16.msra.mxu0 %v3667
    %4521 = vmatpush.bf16.msra.mxu0 %v3659
    %4522 = vmatpush.bf16.msra.mxu0 %v3651
    %4523 = vmatpush.bf16.msra.mxu0 %v3643
    %4524 = vmatmul.bf16.gmra.mxu0 %v1126
    %v4525 = vpop.f32.mrf.mxu0
    %v4526 = vadd.f32 %v4513, %v4525
    %v4527 = vpop.f32.mrf.mxu0
    %4528 = vdwg.mxu0
    %4529 = vmatpush.bf16.msra.mxu0 %v3252
    %4530 = vmatpush.bf16.msra.mxu0 %v3244
    %4531 = vmatpush.bf16.msra.mxu0 %v3236
    %4532 = vmatpush.bf16.msra.mxu0 %v3228
    %4533 = vmatpush.bf16.msra.mxu0 %v3220
    %4534 = vmatpush.bf16.msra.mxu0 %v3212
    %4535 = vmatpush.bf16.msra.mxu0 %v3204
    %4536 = vmatpush.bf16.msra.mxu0 %v3196
    %4537 = vmatmul.bf16.gmra.mxu0 %v1119
    %v4538 = vpop.f32.mrf.mxu0
    %v4539 = vadd.f32 %v1644, %v4538
    %v4540 = vpop.f32.mrf.mxu0
    %4541 = vdwg.mxu0
    %4542 = vmatpush.bf16.msra.mxu0 %v3316
    %4543 = vmatpush.bf16.msra.mxu0 %v3308
    %4544 = vmatpush.bf16.msra.mxu0 %v3300
    %4545 = vmatpush.bf16.msra.mxu0 %v3292
    %4546 = vmatpush.bf16.msra.mxu0 %v3284
    %4547 = vmatpush.bf16.msra.mxu0 %v3276
    %4548 = vmatpush.bf16.msra.mxu0 %v3268
    %4549 = vmatpush.bf16.msra.mxu0 %v3260
    %4550 = vmatmul.bf16.gmra.mxu0 %v1120
    %v4551 = vpop.f32.mrf.mxu0
    %v4552 = vadd.f32 %v4539, %v4551
    %v4553 = vpop.f32.mrf.mxu0
    %4554 = vdwg.mxu0
    %4555 = vmatpush.bf16.msra.mxu0 %v3380
    %4556 = vmatpush.bf16.msra.mxu0 %v3372
    %4557 = vmatpush.bf16.msra.mxu0 %v3364
    %4558 = vmatpush.bf16.msra.mxu0 %v3356
    %4559 = vmatpush.bf16.msra.mxu0 %v3348
    %4560 = vmatpush.bf16.msra.mxu0 %v3340
    %4561 = vmatpush.bf16.msra.mxu0 %v3332
    %4562 = vmatpush.bf16.msra.mxu0 %v3324
    %4563 = vmatmul.bf16.gmra.mxu0 %v1121
    %v4564 = vpop.f32.mrf.mxu0
    %v4565 = vadd.f32 %v4552, %v4564
    %v4566 = vpop.f32.mrf.mxu0
    %4567 = vdwg.mxu0
    %4568 = vmatpush.bf16.msra.mxu0 %v3444
    %4569 = vmatpush.bf16.msra.mxu0 %v3436
    %4570 = vmatpush.bf16.msra.mxu0 %v3428
    %4571 = vmatpush.bf16.msra.mxu0 %v3420
    %4572 = vmatpush.bf16.msra.mxu0 %v3412
    %4573 = vmatpush.bf16.msra.mxu0 %v3404
    %4574 = vmatpush.bf16.msra.mxu0 %v3396
    %4575 = vmatpush.bf16.msra.mxu0 %v3388
    %4576 = vmatmul.bf16.gmra.mxu0 %v1122
    %v4577 = vpop.f32.mrf.mxu0
    %v4578 = vadd.f32 %v4565, %v4577
    %v4579 = vpop.f32.mrf.mxu0
    %4580 = vdwg.mxu0
    %4581 = vmatpush.bf16.msra.mxu0 %v3508
    %4582 = vmatpush.bf16.msra.mxu0 %v3500
    %4583 = vmatpush.bf16.msra.mxu0 %v3492
    %4584 = vmatpush.bf16.msra.mxu0 %v3484
    %4585 = vmatpush.bf16.msra.mxu0 %v3476
    %4586 = vmatpush.bf16.msra.mxu0 %v3468
    %4587 = vmatpush.bf16.msra.mxu0 %v3460
    %4588 = vmatpush.bf16.msra.mxu0 %v3452
    %4589 = vmatmul.bf16.gmra.mxu0 %v1123
    %v4590 = vpop.f32.mrf.mxu0
    %v4591 = vadd.f32 %v4578, %v4590
    %v4592 = vpop.f32.mrf.mxu0
    %4593 = vdwg.mxu0
    %4594 = vmatpush.bf16.msra.mxu0 %v3572
    %4595 = vmatpush.bf16.msra.mxu0 %v3564
    %4596 = vmatpush.bf16.msra.mxu0 %v3556
    %4597 = vmatpush.bf16.msra.mxu0 %v3548
    %4598 = vmatpush.bf16.msra.mxu0 %v3540
    %4599 = vmatpush.bf16.msra.mxu0 %v3532
    %4600 = vmatpush.bf16.msra.mxu0 %v3524
    %4601 = vmatpush.bf16.msra.mxu0 %v3516
    %4602 = vmatmul.bf16.gmra.mxu0 %v1124
    %v4603 = vpop.f32.mrf.mxu0
    %v4604 = vadd.f32 %v4591, %v4603
    %v4605 = vpop.f32.mrf.mxu0
    %4606 = vdwg.mxu0
    %4607 = vmatpush.bf16.msra.mxu0 %v3636
    %4608 = vmatpush.bf16.msra.mxu0 %v3628
    %4609 = vmatpush.bf16.msra.mxu0 %v3620
    %4610 = vmatpush.bf16.msra.mxu0 %v3612
    %4611 = vmatpush.bf16.msra.mxu0 %v3604
    %4612 = vmatpush.bf16.msra.mxu0 %v3596
    %4613 = vmatpush.bf16.msra.mxu0 %v3588
    %4614 = vmatpush.bf16.msra.mxu0 %v3580
    %4615 = vmatmul.bf16.gmra.mxu0 %v1125
    %v4616 = vpop.f32.mrf.mxu0
    %v4617 = vadd.f32 %v4604, %v4616
    %v4618 = vpop.f32.mrf.mxu0
    %4619 = vdwg.mxu0
    %4620 = vmatpush.bf16.msra.mxu0 %v3700
    %4621 = vmatpush.bf16.msra.mxu0 %v3692
    %4622 = vmatpush.bf16.msra.mxu0 %v3684
    %4623 = vmatpush.bf16.msra.mxu0 %v3676
    %4624 = vmatpush.bf16.msra.mxu0 %v3668
    %4625 = vmatpush.bf16.msra.mxu0 %v3660
    %4626 = vmatpush.bf16.msra.mxu0 %v3652
    %4627 = vmatpush.bf16.msra.mxu0 %v3644
    %4628 = vmatmul.bf16.gmra.mxu0 %v1126
    %v4629 = vpop.f32.mrf.mxu0
    %v4630 = vadd.f32 %v4617, %v4629
    %v4631 = vpop.f32.mrf.mxu0
    %4632 = vdwg.mxu0
    %4633 = vmatpush.bf16.msra.mxu0 %v3253
    %4634 = vmatpush.bf16.msra.mxu0 %v3245
    %4635 = vmatpush.bf16.msra.mxu0 %v3237
    %4636 = vmatpush.bf16.msra.mxu0 %v3229
    %4637 = vmatpush.bf16.msra.mxu0 %v3221
    %4638 = vmatpush.bf16.msra.mxu0 %v3213
    %4639 = vmatpush.bf16.msra.mxu0 %v3205
    %4640 = vmatpush.bf16.msra.mxu0 %v3197
    %4641 = vmatmul.bf16.gmra.mxu0 %v1119
    %v4642 = vpop.f32.mrf.mxu0
    %v4643 = vadd.f32 %v1645, %v4642
    %v4644 = vpop.f32.mrf.mxu0
    %4645 = vdwg.mxu0
    %4646 = vmatpush.bf16.msra.mxu0 %v3317
    %4647 = vmatpush.bf16.msra.mxu0 %v3309
    %4648 = vmatpush.bf16.msra.mxu0 %v3301
    %4649 = vmatpush.bf16.msra.mxu0 %v3293
    %4650 = vmatpush.bf16.msra.mxu0 %v3285
    %4651 = vmatpush.bf16.msra.mxu0 %v3277
    %4652 = vmatpush.bf16.msra.mxu0 %v3269
    %4653 = vmatpush.bf16.msra.mxu0 %v3261
    %4654 = vmatmul.bf16.gmra.mxu0 %v1120
    %v4655 = vpop.f32.mrf.mxu0
    %v4656 = vadd.f32 %v4643, %v4655
    %v4657 = vpop.f32.mrf.mxu0
    %4658 = vdwg.mxu0
    %4659 = vmatpush.bf16.msra.mxu0 %v3381
    %4660 = vmatpush.bf16.msra.mxu0 %v3373
    %4661 = vmatpush.bf16.msra.mxu0 %v3365
    %4662 = vmatpush.bf16.msra.mxu0 %v3357
    %4663 = vmatpush.bf16.msra.mxu0 %v3349
    %4664 = vmatpush.bf16.msra.mxu0 %v3341
    %4665 = vmatpush.bf16.msra.mxu0 %v3333
    %4666 = vmatpush.bf16.msra.mxu0 %v3325
    %4667 = vmatmul.bf16.gmra.mxu0 %v1121
    %v4668 = vpop.f32.mrf.mxu0
    %v4669 = vadd.f32 %v4656, %v4668
    %v4670 = vpop.f32.mrf.mxu0
    %4671 = vdwg.mxu0
    %4672 = vmatpush.bf16.msra.mxu0 %v3445
    %4673 = vmatpush.bf16.msra.mxu0 %v3437
    %4674 = vmatpush.bf16.msra.mxu0 %v3429
    %4675 = vmatpush.bf16.msra.mxu0 %v3421
    %4676 = vmatpush.bf16.msra.mxu0 %v3413
    %4677 = vmatpush.bf16.msra.mxu0 %v3405
    %4678 = vmatpush.bf16.msra.mxu0 %v3397
    %4679 = vmatpush.bf16.msra.mxu0 %v3389
    %4680 = vmatmul.bf16.gmra.mxu0 %v1122
    %v4681 = vpop.f32.mrf.mxu0
    %v4682 = vadd.f32 %v4669, %v4681
    %v4683 = vpop.f32.mrf.mxu0
    %4684 = vdwg.mxu0
    %4685 = vmatpush.bf16.msra.mxu0 %v3509
    %4686 = vmatpush.bf16.msra.mxu0 %v3501
    %4687 = vmatpush.bf16.msra.mxu0 %v3493
    %4688 = vmatpush.bf16.msra.mxu0 %v3485
    %4689 = vmatpush.bf16.msra.mxu0 %v3477
    %4690 = vmatpush.bf16.msra.mxu0 %v3469
    %4691 = vmatpush.bf16.msra.mxu0 %v3461
    %4692 = vmatpush.bf16.msra.mxu0 %v3453
    %4693 = vmatmul.bf16.gmra.mxu0 %v1123
    %v4694 = vpop.f32.mrf.mxu0
    %v4695 = vadd.f32 %v4682, %v4694
    %v4696 = vpop.f32.mrf.mxu0
    %4697 = vdwg.mxu0
    %4698 = vmatpush.bf16.msra.mxu0 %v3573
    %4699 = vmatpush.bf16.msra.mxu0 %v3565
    %4700 = vmatpush.bf16.msra.mxu0 %v3557
    %4701 = vmatpush.bf16.msra.mxu0 %v3549
    %4702 = vmatpush.bf16.msra.mxu0 %v3541
    %4703 = vmatpush.bf16.msra.mxu0 %v3533
    %4704 = vmatpush.bf16.msra.mxu0 %v3525
    %4705 = vmatpush.bf16.msra.mxu0 %v3517
    %4706 = vmatmul.bf16.gmra.mxu0 %v1124
    %v4707 = vpop.f32.mrf.mxu0
    %v4708 = vadd.f32 %v4695, %v4707
    %v4709 = vpop.f32.mrf.mxu0
    %4710 = vdwg.mxu0
    %4711 = vmatpush.bf16.msra.mxu0 %v3637
    %4712 = vmatpush.bf16.msra.mxu0 %v3629
    %4713 = vmatpush.bf16.msra.mxu0 %v3621
    %4714 = vmatpush.bf16.msra.mxu0 %v3613
    %4715 = vmatpush.bf16.msra.mxu0 %v3605
    %4716 = vmatpush.bf16.msra.mxu0 %v3597
    %4717 = vmatpush.bf16.msra.mxu0 %v3589
    %4718 = vmatpush.bf16.msra.mxu0 %v3581
    %4719 = vmatmul.bf16.gmra.mxu0 %v1125
    %v4720 = vpop.f32.mrf.mxu0
    %v4721 = vadd.f32 %v4708, %v4720
    %v4722 = vpop.f32.mrf.mxu0
    %4723 = vdwg.mxu0
    %4724 = vmatpush.bf16.msra.mxu0 %v3701
    %4725 = vmatpush.bf16.msra.mxu0 %v3693
    %4726 = vmatpush.bf16.msra.mxu0 %v3685
    %4727 = vmatpush.bf16.msra.mxu0 %v3677
    %4728 = vmatpush.bf16.msra.mxu0 %v3669
    %4729 = vmatpush.bf16.msra.mxu0 %v3661
    %4730 = vmatpush.bf16.msra.mxu0 %v3653
    %4731 = vmatpush.bf16.msra.mxu0 %v3645
    %4732 = vmatmul.bf16.gmra.mxu0 %v1126
    %v4733 = vpop.f32.mrf.mxu0
    %v4734 = vadd.f32 %v4721, %v4733
    %v4735 = vpop.f32.mrf.mxu0
    %4736 = vdwg.mxu0
    %4737 = vmatpush.bf16.msra.mxu0 %v3254
    %4738 = vmatpush.bf16.msra.mxu0 %v3246
    %4739 = vmatpush.bf16.msra.mxu0 %v3238
    %4740 = vmatpush.bf16.msra.mxu0 %v3230
    %4741 = vmatpush.bf16.msra.mxu0 %v3222
    %4742 = vmatpush.bf16.msra.mxu0 %v3214
    %4743 = vmatpush.bf16.msra.mxu0 %v3206
    %4744 = vmatpush.bf16.msra.mxu0 %v3198
    %4745 = vmatmul.bf16.gmra.mxu0 %v1119
    %v4746 = vpop.f32.mrf.mxu0
    %v4747 = vadd.f32 %v1646, %v4746
    %v4748 = vpop.f32.mrf.mxu0
    %4749 = vdwg.mxu0
    %4750 = vmatpush.bf16.msra.mxu0 %v3318
    %4751 = vmatpush.bf16.msra.mxu0 %v3310
    %4752 = vmatpush.bf16.msra.mxu0 %v3302
    %4753 = vmatpush.bf16.msra.mxu0 %v3294
    %4754 = vmatpush.bf16.msra.mxu0 %v3286
    %4755 = vmatpush.bf16.msra.mxu0 %v3278
    %4756 = vmatpush.bf16.msra.mxu0 %v3270
    %4757 = vmatpush.bf16.msra.mxu0 %v3262
    %4758 = vmatmul.bf16.gmra.mxu0 %v1120
    %v4759 = vpop.f32.mrf.mxu0
    %v4760 = vadd.f32 %v4747, %v4759
    %v4761 = vpop.f32.mrf.mxu0
    %4762 = vdwg.mxu0
    %4763 = vmatpush.bf16.msra.mxu0 %v3382
    %4764 = vmatpush.bf16.msra.mxu0 %v3374
    %4765 = vmatpush.bf16.msra.mxu0 %v3366
    %4766 = vmatpush.bf16.msra.mxu0 %v3358
    %4767 = vmatpush.bf16.msra.mxu0 %v3350
    %4768 = vmatpush.bf16.msra.mxu0 %v3342
    %4769 = vmatpush.bf16.msra.mxu0 %v3334
    %4770 = vmatpush.bf16.msra.mxu0 %v3326
    %4771 = vmatmul.bf16.gmra.mxu0 %v1121
    %v4772 = vpop.f32.mrf.mxu0
    %v4773 = vadd.f32 %v4760, %v4772
    %v4774 = vpop.f32.mrf.mxu0
    %4775 = vdwg.mxu0
    %4776 = vmatpush.bf16.msra.mxu0 %v3446
    %4777 = vmatpush.bf16.msra.mxu0 %v3438
    %4778 = vmatpush.bf16.msra.mxu0 %v3430
    %4779 = vmatpush.bf16.msra.mxu0 %v3422
    %4780 = vmatpush.bf16.msra.mxu0 %v3414
    %4781 = vmatpush.bf16.msra.mxu0 %v3406
    %4782 = vmatpush.bf16.msra.mxu0 %v3398
    %4783 = vmatpush.bf16.msra.mxu0 %v3390
    %4784 = vmatmul.bf16.gmra.mxu0 %v1122
    %v4785 = vpop.f32.mrf.mxu0
    %v4786 = vadd.f32 %v4773, %v4785
    %v4787 = vpop.f32.mrf.mxu0
    %4788 = vdwg.mxu0
    %4789 = vmatpush.bf16.msra.mxu0 %v3510
    %4790 = vmatpush.bf16.msra.mxu0 %v3502
    %4791 = vmatpush.bf16.msra.mxu0 %v3494
    %4792 = vmatpush.bf16.msra.mxu0 %v3486
    %4793 = vmatpush.bf16.msra.mxu0 %v3478
    %4794 = vmatpush.bf16.msra.mxu0 %v3470
    %4795 = vmatpush.bf16.msra.mxu0 %v3462
    %4796 = vmatpush.bf16.msra.mxu0 %v3454
    %4797 = vmatmul.bf16.gmra.mxu0 %v1123
    %v4798 = vpop.f32.mrf.mxu0
    %v4799 = vadd.f32 %v4786, %v4798
    %v4800 = vpop.f32.mrf.mxu0
    %4801 = vdwg.mxu0
    %4802 = vmatpush.bf16.msra.mxu0 %v3574
    %4803 = vmatpush.bf16.msra.mxu0 %v3566
    %4804 = vmatpush.bf16.msra.mxu0 %v3558
    %4805 = vmatpush.bf16.msra.mxu0 %v3550
    %4806 = vmatpush.bf16.msra.mxu0 %v3542
    %4807 = vmatpush.bf16.msra.mxu0 %v3534
    %4808 = vmatpush.bf16.msra.mxu0 %v3526
    %4809 = vmatpush.bf16.msra.mxu0 %v3518
    %4810 = vmatmul.bf16.gmra.mxu0 %v1124
    %v4811 = vpop.f32.mrf.mxu0
    %v4812 = vadd.f32 %v4799, %v4811
    %v4813 = vpop.f32.mrf.mxu0
    %4814 = vdwg.mxu0
    %4815 = vmatpush.bf16.msra.mxu0 %v3638
    %4816 = vmatpush.bf16.msra.mxu0 %v3630
    %4817 = vmatpush.bf16.msra.mxu0 %v3622
    %4818 = vmatpush.bf16.msra.mxu0 %v3614
    %4819 = vmatpush.bf16.msra.mxu0 %v3606
    %4820 = vmatpush.bf16.msra.mxu0 %v3598
    %4821 = vmatpush.bf16.msra.mxu0 %v3590
    %4822 = vmatpush.bf16.msra.mxu0 %v3582
    %4823 = vmatmul.bf16.gmra.mxu0 %v1125
    %v4824 = vpop.f32.mrf.mxu0
    %v4825 = vadd.f32 %v4812, %v4824
    %v4826 = vpop.f32.mrf.mxu0
    %4827 = vdwg.mxu0
    %4828 = vmatpush.bf16.msra.mxu0 %v3702
    %4829 = vmatpush.bf16.msra.mxu0 %v3694
    %4830 = vmatpush.bf16.msra.mxu0 %v3686
    %4831 = vmatpush.bf16.msra.mxu0 %v3678
    %4832 = vmatpush.bf16.msra.mxu0 %v3670
    %4833 = vmatpush.bf16.msra.mxu0 %v3662
    %4834 = vmatpush.bf16.msra.mxu0 %v3654
    %4835 = vmatpush.bf16.msra.mxu0 %v3646
    %4836 = vmatmul.bf16.gmra.mxu0 %v1126
    %v4837 = vpop.f32.mrf.mxu0
    %v4838 = vadd.f32 %v4825, %v4837
    %v4839 = vpop.f32.mrf.mxu0
    %4840 = vdwg.mxu0
    %4841 = vmatpush.bf16.msra.mxu0 %v3255
    %4842 = vmatpush.bf16.msra.mxu0 %v3247
    %4843 = vmatpush.bf16.msra.mxu0 %v3239
    %4844 = vmatpush.bf16.msra.mxu0 %v3231
    %4845 = vmatpush.bf16.msra.mxu0 %v3223
    %4846 = vmatpush.bf16.msra.mxu0 %v3215
    %4847 = vmatpush.bf16.msra.mxu0 %v3207
    %4848 = vmatpush.bf16.msra.mxu0 %v3199
    %4849 = vmatmul.bf16.gmra.mxu0 %v1119
    %v4850 = vpop.f32.mrf.mxu0
    %v4851 = vadd.f32 %v1647, %v4850
    %v4852 = vpop.f32.mrf.mxu0
    %4853 = vdwg.mxu0
    %4854 = vmatpush.bf16.msra.mxu0 %v3319
    %4855 = vmatpush.bf16.msra.mxu0 %v3311
    %4856 = vmatpush.bf16.msra.mxu0 %v3303
    %4857 = vmatpush.bf16.msra.mxu0 %v3295
    %4858 = vmatpush.bf16.msra.mxu0 %v3287
    %4859 = vmatpush.bf16.msra.mxu0 %v3279
    %4860 = vmatpush.bf16.msra.mxu0 %v3271
    %4861 = vmatpush.bf16.msra.mxu0 %v3263
    %4862 = vmatmul.bf16.gmra.mxu0 %v1120
    %v4863 = vpop.f32.mrf.mxu0
    %v4864 = vadd.f32 %v4851, %v4863
    %v4865 = vpop.f32.mrf.mxu0
    %4866 = vdwg.mxu0
    %4867 = vmatpush.bf16.msra.mxu0 %v3383
    %4868 = vmatpush.bf16.msra.mxu0 %v3375
    %4869 = vmatpush.bf16.msra.mxu0 %v3367
    %4870 = vmatpush.bf16.msra.mxu0 %v3359
    %4871 = vmatpush.bf16.msra.mxu0 %v3351
    %4872 = vmatpush.bf16.msra.mxu0 %v3343
    %4873 = vmatpush.bf16.msra.mxu0 %v3335
    %4874 = vmatpush.bf16.msra.mxu0 %v3327
    %4875 = vmatmul.bf16.gmra.mxu0 %v1121
    %v4876 = vpop.f32.mrf.mxu0
    %v4877 = vadd.f32 %v4864, %v4876
    %v4878 = vpop.f32.mrf.mxu0
    %4879 = vdwg.mxu0
    %4880 = vmatpush.bf16.msra.mxu0 %v3447
    %4881 = vmatpush.bf16.msra.mxu0 %v3439
    %4882 = vmatpush.bf16.msra.mxu0 %v3431
    %4883 = vmatpush.bf16.msra.mxu0 %v3423
    %4884 = vmatpush.bf16.msra.mxu0 %v3415
    %4885 = vmatpush.bf16.msra.mxu0 %v3407
    %4886 = vmatpush.bf16.msra.mxu0 %v3399
    %4887 = vmatpush.bf16.msra.mxu0 %v3391
    %4888 = vmatmul.bf16.gmra.mxu0 %v1122
    %v4889 = vpop.f32.mrf.mxu0
    %v4890 = vadd.f32 %v4877, %v4889
    %v4891 = vpop.f32.mrf.mxu0
    %4892 = vdwg.mxu0
    %4893 = vmatpush.bf16.msra.mxu0 %v3511
    %4894 = vmatpush.bf16.msra.mxu0 %v3503
    %4895 = vmatpush.bf16.msra.mxu0 %v3495
    %4896 = vmatpush.bf16.msra.mxu0 %v3487
    %4897 = vmatpush.bf16.msra.mxu0 %v3479
    %4898 = vmatpush.bf16.msra.mxu0 %v3471
    %4899 = vmatpush.bf16.msra.mxu0 %v3463
    %4900 = vmatpush.bf16.msra.mxu0 %v3455
    %4901 = vmatmul.bf16.gmra.mxu0 %v1123
    %v4902 = vpop.f32.mrf.mxu0
    %v4903 = vadd.f32 %v4890, %v4902
    %v4904 = vpop.f32.mrf.mxu0
    %4905 = vdwg.mxu0
    %4906 = vmatpush.bf16.msra.mxu0 %v3575
    %4907 = vmatpush.bf16.msra.mxu0 %v3567
    %4908 = vmatpush.bf16.msra.mxu0 %v3559
    %4909 = vmatpush.bf16.msra.mxu0 %v3551
    %4910 = vmatpush.bf16.msra.mxu0 %v3543
    %4911 = vmatpush.bf16.msra.mxu0 %v3535
    %4912 = vmatpush.bf16.msra.mxu0 %v3527
    %4913 = vmatpush.bf16.msra.mxu0 %v3519
    %4914 = vmatmul.bf16.gmra.mxu0 %v1124
    %v4915 = vpop.f32.mrf.mxu0
    %v4916 = vadd.f32 %v4903, %v4915
    %v4917 = vpop.f32.mrf.mxu0
    %4918 = vdwg.mxu0
    %4919 = vmatpush.bf16.msra.mxu0 %v3639
    %4920 = vmatpush.bf16.msra.mxu0 %v3631
    %4921 = vmatpush.bf16.msra.mxu0 %v3623
    %4922 = vmatpush.bf16.msra.mxu0 %v3615
    %4923 = vmatpush.bf16.msra.mxu0 %v3607
    %4924 = vmatpush.bf16.msra.mxu0 %v3599
    %4925 = vmatpush.bf16.msra.mxu0 %v3591
    %4926 = vmatpush.bf16.msra.mxu0 %v3583
    %4927 = vmatmul.bf16.gmra.mxu0 %v1125
    %v4928 = vpop.f32.mrf.mxu0
    %v4929 = vadd.f32 %v4916, %v4928
    %v4930 = vpop.f32.mrf.mxu0
    %4931 = vdwg.mxu0
    %4932 = vmatpush.bf16.msra.mxu0 %v3703
    %4933 = vmatpush.bf16.msra.mxu0 %v3695
    %4934 = vmatpush.bf16.msra.mxu0 %v3687
    %4935 = vmatpush.bf16.msra.mxu0 %v3679
    %4936 = vmatpush.bf16.msra.mxu0 %v3671
    %4937 = vmatpush.bf16.msra.mxu0 %v3663
    %4938 = vmatpush.bf16.msra.mxu0 %v3655
    %4939 = vmatpush.bf16.msra.mxu0 %v3647
    %4940 = vmatmul.bf16.gmra.mxu0 %v1126
    %v4941 = vpop.f32.mrf.mxu0
    %v4942 = vadd.f32 %v4929, %v4941
    %v4943 = vpop.f32.mrf.mxu0
    %4944 = vdwg.mxu0
    %4945 = vmatpush.bf16.msra.mxu0 %v3256
    %4946 = vmatpush.bf16.msra.mxu0 %v3248
    %4947 = vmatpush.bf16.msra.mxu0 %v3240
    %4948 = vmatpush.bf16.msra.mxu0 %v3232
    %4949 = vmatpush.bf16.msra.mxu0 %v3224
    %4950 = vmatpush.bf16.msra.mxu0 %v3216
    %4951 = vmatpush.bf16.msra.mxu0 %v3208
    %4952 = vmatpush.bf16.msra.mxu0 %v3200
    %4953 = vmatmul.bf16.gmra.mxu0 %v1119
    %v4954 = vpop.f32.mrf.mxu0
    %v4955 = vadd.f32 %v1648, %v4954
    %v4956 = vpop.f32.mrf.mxu0
    %4957 = vdwg.mxu0
    %4958 = vmatpush.bf16.msra.mxu0 %v3320
    %4959 = vmatpush.bf16.msra.mxu0 %v3312
    %4960 = vmatpush.bf16.msra.mxu0 %v3304
    %4961 = vmatpush.bf16.msra.mxu0 %v3296
    %4962 = vmatpush.bf16.msra.mxu0 %v3288
    %4963 = vmatpush.bf16.msra.mxu0 %v3280
    %4964 = vmatpush.bf16.msra.mxu0 %v3272
    %4965 = vmatpush.bf16.msra.mxu0 %v3264
    %4966 = vmatmul.bf16.gmra.mxu0 %v1120
    %v4967 = vpop.f32.mrf.mxu0
    %v4968 = vadd.f32 %v4955, %v4967
    %v4969 = vpop.f32.mrf.mxu0
    %4970 = vdwg.mxu0
    %4971 = vmatpush.bf16.msra.mxu0 %v3384
    %4972 = vmatpush.bf16.msra.mxu0 %v3376
    %4973 = vmatpush.bf16.msra.mxu0 %v3368
    %4974 = vmatpush.bf16.msra.mxu0 %v3360
    %4975 = vmatpush.bf16.msra.mxu0 %v3352
    %4976 = vmatpush.bf16.msra.mxu0 %v3344
    %4977 = vmatpush.bf16.msra.mxu0 %v3336
    %4978 = vmatpush.bf16.msra.mxu0 %v3328
    %4979 = vmatmul.bf16.gmra.mxu0 %v1121
    %v4980 = vpop.f32.mrf.mxu0
    %v4981 = vadd.f32 %v4968, %v4980
    %v4982 = vpop.f32.mrf.mxu0
    %4983 = vdwg.mxu0
    %4984 = vmatpush.bf16.msra.mxu0 %v3448
    %4985 = vmatpush.bf16.msra.mxu0 %v3440
    %4986 = vmatpush.bf16.msra.mxu0 %v3432
    %4987 = vmatpush.bf16.msra.mxu0 %v3424
    %4988 = vmatpush.bf16.msra.mxu0 %v3416
    %4989 = vmatpush.bf16.msra.mxu0 %v3408
    %4990 = vmatpush.bf16.msra.mxu0 %v3400
    %4991 = vmatpush.bf16.msra.mxu0 %v3392
    %4992 = vmatmul.bf16.gmra.mxu0 %v1122
    %v4993 = vpop.f32.mrf.mxu0
    %v4994 = vadd.f32 %v4981, %v4993
    %v4995 = vpop.f32.mrf.mxu0
    %4996 = vdwg.mxu0
    %4997 = vmatpush.bf16.msra.mxu0 %v3512
    %4998 = vmatpush.bf16.msra.mxu0 %v3504
    %4999 = vmatpush.bf16.msra.mxu0 %v3496
    %5000 = vmatpush.bf16.msra.mxu0 %v3488
    %5001 = vmatpush.bf16.msra.mxu0 %v3480
    %5002 = vmatpush.bf16.msra.mxu0 %v3472
    %5003 = vmatpush.bf16.msra.mxu0 %v3464
    %5004 = vmatpush.bf16.msra.mxu0 %v3456
    %5005 = vmatmul.bf16.gmra.mxu0 %v1123
    %v5006 = vpop.f32.mrf.mxu0
    %v5007 = vadd.f32 %v4994, %v5006
    %v5008 = vpop.f32.mrf.mxu0
    %5009 = vdwg.mxu0
    %5010 = vmatpush.bf16.msra.mxu0 %v3576
    %5011 = vmatpush.bf16.msra.mxu0 %v3568
    %5012 = vmatpush.bf16.msra.mxu0 %v3560
    %5013 = vmatpush.bf16.msra.mxu0 %v3552
    %5014 = vmatpush.bf16.msra.mxu0 %v3544
    %5015 = vmatpush.bf16.msra.mxu0 %v3536
    %5016 = vmatpush.bf16.msra.mxu0 %v3528
    %5017 = vmatpush.bf16.msra.mxu0 %v3520
    %5018 = vmatmul.bf16.gmra.mxu0 %v1124
    %v5019 = vpop.f32.mrf.mxu0
    %v5020 = vadd.f32 %v5007, %v5019
    %v5021 = vpop.f32.mrf.mxu0
    %5022 = vdwg.mxu0
    %5023 = vmatpush.bf16.msra.mxu0 %v3640
    %5024 = vmatpush.bf16.msra.mxu0 %v3632
    %5025 = vmatpush.bf16.msra.mxu0 %v3624
    %5026 = vmatpush.bf16.msra.mxu0 %v3616
    %5027 = vmatpush.bf16.msra.mxu0 %v3608
    %5028 = vmatpush.bf16.msra.mxu0 %v3600
    %5029 = vmatpush.bf16.msra.mxu0 %v3592
    %5030 = vmatpush.bf16.msra.mxu0 %v3584
    %5031 = vmatmul.bf16.gmra.mxu0 %v1125
    %v5032 = vpop.f32.mrf.mxu0
    %v5033 = vadd.f32 %v5020, %v5032
    %v5034 = vpop.f32.mrf.mxu0
    %5035 = vdwg.mxu0
    %5036 = vmatpush.bf16.msra.mxu0 %v3704
    %5037 = vmatpush.bf16.msra.mxu0 %v3696
    %5038 = vmatpush.bf16.msra.mxu0 %v3688
    %5039 = vmatpush.bf16.msra.mxu0 %v3680
    %5040 = vmatpush.bf16.msra.mxu0 %v3672
    %5041 = vmatpush.bf16.msra.mxu0 %v3664
    %5042 = vmatpush.bf16.msra.mxu0 %v3656
    %5043 = vmatpush.bf16.msra.mxu0 %v3648
    %5044 = vmatmul.bf16.gmra.mxu0 %v1126
    %v5045 = vpop.f32.mrf.mxu0
    %v5046 = vadd.f32 %v5033, %v5045
    %v5047 = vpop.f32.mrf.mxu0
    %5048 = vdwg.mxu0
    %v5049 = vmax.f32 %v4318, 0.0
    %v5050 = vmax.f32 %v4422, 0.0
    %v5051 = vmax.f32 %v4526, 0.0
    %v5052 = vmax.f32 %v4630, 0.0
    %v5053 = vmax.f32 %v4734, 0.0
    %v5054 = vmax.f32 %v4838, 0.0
    %v5055 = vmax.f32 %v4942, 0.0
    %v5056 = vmax.f32 %v5046, 0.0
    %v5057 = vld [vmem:[#allocation11] sm:$0xff]
    %v5058 = vunpack.c.l.bf16 %v5057
    %v5059 = vunpack.c.h.bf16 %v5057
    %v5062 = vperm.slane %v5058, 0
    %v5063 = vperm.slane %v5058, 2
    %v5064 = vperm.slane %v5058, 4
    %v5065 = vperm.slane %v5058, 6
    %v5066 = vperm.slane %v5059, 0
    %v5067 = vperm.slane %v5059, 2
    %v5068 = vperm.slane %v5059, 4
    %v5069 = vperm.slane %v5059, 6
    %v5078 = vperm.slane %v5062, 0
    %v5079 = vperm.slane %v5063, 0
    %v5080 = vperm.slane %v5064, 0
    %v5081 = vperm.slane %v5065, 0
    %v5082 = vperm.slane %v5066, 0
    %v5083 = vperm.slane %v5067, 0
    %v5084 = vperm.slane %v5068, 0
    %v5085 = vperm.slane %v5069, 0
    %v5086 = vmul.f32 %v5049, %v5078
    %v5087 = vmul.f32 %v5050, %v5079
    %v5088 = vmul.f32 %v5051, %v5080
    %v5089 = vmul.f32 %v5052, %v5081
    %v5090 = vmul.f32 %v5053, %v5082
    %v5091 = vmul.f32 %v5054, %v5083
    %v5092 = vmul.f32 %v5055, %v5084
    %v5093 = vmul.f32 %v5056, %v5085
    %v5094 = vadd.f32 %v5086, %v5087
    %v5095 = vadd.f32 %v5094, %v5088
    %v5096 = vadd.f32 %v5095, %v5089
    %v5097 = vadd.f32 %v5096, %v5090
    %v5098 = vadd.f32 %v5097, %v5091
    %v5099 = vadd.f32 %v5098, %v5092
    %v5100 = vadd.f32 %v5099, %v5093
    %5101 = vadd.xlane.f32.xlu0 %v5100
    %v5102 = vpop.xlane.xlu0 %5101
    %s5103 = sld [smem:[#allocation2]]
    %v5104 = vstv %s5103
    %v5105 = vadd.f32 %v5102, %v5104
    %vm5106 = vcmask 7168
    %5107 = vst.msk [vmem:[%s7] sm:$0xff] %vm5106, %v5105
    // Predicated region
    $region54: #{tpu_custom_call.1} parent=1 // pred_check
      _
    $region55: #{tpu_custom_call.1} parent=1 // pred_check_branch
      %5109 = sbr.rel (0) target = $region57
    $region56: #{tpu_custom_call.1} parent=1 // pred_region
      _
    $region57: #{tpu_custom_call.1} parent=1 // pred_fallthru
      _
    // Predicated region
    $region58: #{tpu_custom_call.1} parent=1 // pred_check
      _
    $region59: #{tpu_custom_call.1} parent=1 // pred_check_branch
      %5111 = sbr.rel (0) target = $region61
    $region60: #{tpu_custom_call.1} parent=1 // pred_region
      _
    $region61: #{tpu_custom_call.1} parent=1 // pred_fallthru
      _
    %5112 = vsyncpa [#allocation4], 1
    %5113 = vsyncpa [#allocation6], 1
    %5114 = vsyncpa [#allocation9], 1
    %5115 = vsyncpa [#allocation12], 1

</llo_original>
